<compile_context>
chip_gen: v7x
topology: tpu7x:2x2x1
jax: 0.10.0
libtpu: 0.0.40
codegen_flags: <defaults>
</compile_context>

<pallas_src>
import functools

import jax
import jax.numpy as jnp
from jax import lax
from jax.experimental import pallas as pl
from jax.experimental.pallas import tpu as pltpu

EPS = 1e-5


# ----------------------------- Pallas kernels ------------------------------ #

def bn_stats_kernel(x_ref, sum_ref, sumsq_ref, s_scr, q_scr):
    """Tiled per-channel sum / sum-of-squares over the rows of a (P, C) matrix."""
    i = pl.program_id(0)

    @pl.when(i == 0)
    def _():
        s_scr[...] = jnp.zeros_like(s_scr)
        q_scr[...] = jnp.zeros_like(q_scr)

    xb = x_ref[...]                                        # (TP, C)
    s_scr[...] += jnp.sum(xb, axis=0, keepdims=True)
    q_scr[...] += jnp.sum(xb * xb, axis=0, keepdims=True)

    @pl.when(i == pl.num_programs(0) - 1)
    def _():
        sum_ref[...] = s_scr[...]
        sumsq_ref[...] = q_scr[...]


def fused_output_kernel(x0_ref, x1_ref, x2_ref, mask_ref, scale_ref, shift_ref,
                        w_ref, o_ref, y_scr, *, H, W):
    """BN+ReLU -> 3x3x3 conv (single K=27*C im2col matmul) -> 1x1 conv -> softmax.

    Grid point (n, d) produces output depth slice d of batch n.
      x{0,1,2}_ref : (1, 1, F, C)  zero-padded depth slabs d, d+1, d+2, each a
                     flattened padded (H+2)*(W+2) plane (F = that, rounded up to 8).
      mask_ref     : (F, 1)        1.0 on interior voxels, 0.0 on spatial padding.
      scale/shift  : (1, C)        folded BatchNorm scale / shift (batch stats).
      w_ref        : (27*C, 2)     conv1 (kd,kh,kw,c ordering) folded with conv2.
      o_ref        : (1, 1, H*(W+2), 2) softmax probs (junk w-columns kept; wrapper strips).
      y_scr        : (3, F, C)     VMEM scratch holding the BN+ReLU'd, masked slabs.
    """
    d = pl.program_id(1)
    n_d = pl.num_programs(1)
    Wp = W + 2
    M = H * Wp

    scale = scale_ref[...]                                 # (1, C)
    shift = shift_ref[...]                                 # (1, C)
    mask = mask_ref[...]                                   # (F, 1)

    # Depth slabs d and d+2 are pure zero padding when they fall outside [1, D];
    # after BN they would become relu(shift) != 0, so zero them explicitly.
    dvalid = (jnp.where(d > 0, 1.0, 0.0),
              1.0,
              jnp.where(d < n_d - 1, 1.0, 0.0))

    for k, ref in enumerate((x0_ref, x1_ref, x2_ref)):
        t = ref[0, 0]                                      # (F, C)
        t = jnp.maximum(t * scale + shift, 0.0)            # BN (batch stats) + ReLU
        y_scr[k] = t * (mask * dvalid[k])                  # zero the padded voxels

    # In-VMEM im2col: tap (kd, kh, kw) is a contiguous row window of slab kd.
    taps = []
    for kd in range(3):
        for kh in range(3):
            for kw in range(3):
                off = kh * Wp + kw
                taps.append(y_scr[kd, off:off + M, :])     # (M, C)
    a = jnp.concatenate(taps, axis=1)                      # (M, 27*C)

    # conv1 + conv2 as one MXU matmul (default precision -> bf16 feeds, f32 acc).
    logits = jnp.dot(a, w_ref[...], preferred_element_type=jnp.float32)  # (M, 2)

    # Row-wise softmax over the 2 classes.
    m = jnp.max(logits, axis=1, keepdims=True)
    e = jnp.exp(logits - m)
    o_ref[0, 0] = e / jnp.sum(e, axis=1, keepdims=True)


# ------------------------------ Pallas wrapper ------------------------------ #

def output_pallas(x, params):
    N, C, D, H, W = x.shape
    P = N * D * H * W
    Hp, Wp = H + 2, W + 2
    M = H * Wp                                  # rows per grid step (incl. 2 junk w-cols)
    F = ((Hp * Wp + 2 + 7) // 8) * 8            # flattened padded plane, rounded to 8

    xt = jnp.transpose(x, (0, 2, 3, 4, 1)).astype(jnp.float32)   # NCDHW -> NDHWC

    # ---- pass 1: BatchNorm batch statistics (tiled Pallas reduction) ----
    x2d = xt.reshape(P, C)
    tp = next((t for t in (512, 256, 128, 64, 32, 16, 8) if P % t == 0), P)
    s, q = pl.pallas_call(
        bn_stats_kernel,
        grid=(P // tp,),
        in_specs=[pl.BlockSpec((tp, C), lambda i: (i, 0))],
        out_specs=(pl.BlockSpec((1, C), lambda i: (0, 0)),
                   pl.BlockSpec((1, C), lambda i: (0, 0))),
        out_shape=(jax.ShapeDtypeStruct((1, C), jnp.float32),
                   jax.ShapeDtypeStruct((1, C), jnp.float32)),
        scratch_shapes=[pltpu.VMEM((1, C), jnp.float32),
                        pltpu.VMEM((1, C), jnp.float32)],
        compiler_params=pltpu.CompilerParams(
            dimension_semantics=("arbitrary",)),
    )(x2d)

    mean = s / P
    var = q / P - mean * mean                      # biased variance (training-mode BN)
    scale = params['gamma'].reshape(1, C) * lax.rsqrt(var + EPS)
    shift = params['beta'].reshape(1, C) - mean * scale

    # ---- glue: zero-padded flattened input, validity mask, folded conv weight ----
    xpad = jnp.pad(xt, ((0, 0), (1, 1), (1, 1), (1, 1), (0, 0)))   # (N, D+2, Hp, Wp, C)
    xflat = jnp.pad(xpad.reshape(N, D + 2, Hp * Wp, C),
                    ((0, 0), (0, 0), (0, F - Hp * Wp), (0, 0)))    # (N, D+2, F, C)

    hw_valid = jnp.zeros((Hp, Wp), jnp.float32).at[1:H + 1, 1:W + 1].set(1.0)
    mask = jnp.pad(hw_valid.reshape(Hp * Wp, 1),
                   ((0, F - Hp * Wp), (0, 0)))                     # (F, 1)

    w_fused = jnp.dot(params['w1'].reshape(27 * C, 2), params['w2'],
                      precision=lax.Precision.HIGHEST)             # (27*C, 2), tiny

    def slab_spec(k):
        return pl.BlockSpec((1, 1, F, C), lambda n, d: (n, d + k, 0, 0))

    def const_spec(shape):
        return pl.BlockSpec(shape, lambda n, d: (0,) * len(shape))

    # ---- pass 2: fused BN+ReLU + conv1(3x3x3) + conv2(1x1x1) + softmax ----
    out = pl.pallas_call(
        functools.partial(fused_output_kernel, H=H, W=W),
        grid=(N, D),
        in_specs=[slab_spec(0), slab_spec(1), slab_spec(2),
                  const_spec((F, 1)), const_spec((1, C)), const_spec((1, C)),
                  const_spec((27 * C, 2))],
        out_specs=pl.BlockSpec((1, 1, M, 2), lambda n, d: (n, d, 0, 0)),
        out_shape=jax.ShapeDtypeStruct((N, D, M, 2), jnp.float32),
        scratch_shapes=[pltpu.VMEM((3, F, C), jnp.float32)],
        compiler_params=pltpu.CompilerParams(
            dimension_semantics=("parallel", "parallel")),
    )(xflat, xflat, xflat, mask, scale, shift, w_fused)

    # Strip the 2 junk w-columns and flatten to (N*D*H*W, 2) like permute+view.
    return out.reshape(N, D, H, Wp, 2)[:, :, :, :W, :].reshape(P, 2)


# ------------------------------ pure-JAX reference -------------------------- #

def output_reference(x, params):
    N, C, D, H, W = x.shape
    xt = jnp.transpose(x, (0, 2, 3, 4, 1)).astype(jnp.float32)     # NDHWC
    mu = jnp.mean(xt, axis=(0, 1, 2, 3), keepdims=True)
    var = jnp.mean((xt - mu) ** 2, axis=(0, 1, 2, 3), keepdims=True)
    y = jnp.maximum((xt - mu) * lax.rsqrt(var + EPS) * params['gamma']
                    + params['beta'], 0.0)
    z = lax.conv_general_dilated(
        y, params['w1'], window_strides=(1, 1, 1), padding=[(1, 1)] * 3,
        dimension_numbers=('NDHWC', 'DHWIO', 'NDHWC'),
        precision=lax.Precision.HIGHEST)
    z = jnp.einsum('ndhwc,co->ndhwo', z, params['w2'],
                   precision=lax.Precision.HIGHEST)
    return jax.nn.softmax(z.reshape(-1, 2), axis=1)


# ------------------------------ parameter init ------------------------------ #

def init_params(key, C):
    k1, k2, k3, k4 = jax.random.split(key, 4)

    def u(k, shape, bound):
        return jax.random.uniform(k, shape, jnp.float32, -bound, bound)

    return {
        'gamma': 1.0 + u(k1, (C,), 0.1),
        'beta': u(k2, (C,), 0.1),
        'w1': u(k3, (3, 3, 3, C, 2), 1.0 / (27 * C) ** 0.5),   # DHWIO
        'w2': u(k4, (2, 2), 1.0 / 2 ** 0.5),                   # (in, out)
    }


# ----------------------------------- main ----------------------------------- #

if __name__ == "__main__":
    N, C, D, H, W = 2, 4, 8, 8, 8

    key = jax.random.PRNGKey(0)
    kx, kp = jax.random.split(key)
    x = jax.random.normal(kx, (N, C, D, H, W), jnp.float32)
    params = init_params(kp, C)

    out = jax.jit(output_pallas)(x, params)
    out = jax.block_until_ready(out)

    ref = output_reference(x, params)
    assert out.shape == (N * D * H * W, 2), out.shape
    max_err = float(jnp.max(jnp.abs(out - ref)))
    assert max_err < 5e-3, f"max abs error too large: {max_err}"
    print("KERNEL_OK")
</pallas_src>

<mosaic_0001>
module attributes {stable_mosaic.version = 11 : i64} {
  func.func @bn_stats_kernel(%arg0: i32, %arg1: memref<512x4xf32, #tpu.memory_space<vmem>>, %arg2: memref<1x4xf32, #tpu.memory_space<vmem>>, %arg3: memref<1x4xf32, #tpu.memory_space<vmem>>, %arg4: memref<1x4xf32, #tpu.memory_space<vmem>>, %arg5: memref<1x4xf32, #tpu.memory_space<vmem>>) attributes {dimension_semantics = [#tpu.dimension_semantics<arbitrary>], iteration_bounds = array<i64: 2>, scalar_prefetch = 0 : i64, scratch_operands = 2 : i64, tpu.core_type = #tpu.core_type<tc>, window_params = [{transform_indices = @transform_0, window_bounds = array<i64: 512, 4>}, {pipeline_mode = #tpu.pipeline_mode<synchronous>, transform_indices = @transform_1, window_bounds = array<i64: 1, 4>}, {pipeline_mode = #tpu.pipeline_mode<synchronous>, transform_indices = @transform_2, window_bounds = array<i64: 1, 4>}]} {
    %c0_i32 = arith.constant 0 : i32
    %0 = arith.cmpi eq, %arg0, %c0_i32 : i32
    %1 = arith.extui %0 : i1 to i32
    %c0_i32_0 = arith.constant 0 : i32
    %2 = arith.cmpi ne, %1, %c0_i32_0 : i32
    scf.if %2 {
      %cst_12 = arith.constant 0.000000e+00 : f32
      %18 = vector.broadcast %cst_12 : f32 to vector<1x4xf32>
      %c0_13 = arith.constant 0 : index
      %c0_14 = arith.constant 0 : index
      %19 = vector.load %arg4[%c0_13, %c0_14] : memref<1x4xf32, #tpu.memory_space<vmem>>, vector<1x4xf32>
      tpu.vector_store %arg4[%c0_13, %c0_14], %18 {strides = array<i32>} : memref<1x4xf32, #tpu.memory_space<vmem>>, vector<1x4xf32>,
      %cst_15 = arith.constant 0.000000e+00 : f32
      %20 = vector.broadcast %cst_15 : f32 to vector<1x4xf32>
      %c0_16 = arith.constant 0 : index
      %c0_17 = arith.constant 0 : index
      %21 = vector.load %arg5[%c0_16, %c0_17] : memref<1x4xf32, #tpu.memory_space<vmem>>, vector<1x4xf32>
      tpu.vector_store %arg5[%c0_16, %c0_17], %20 {strides = array<i32>} : memref<1x4xf32, #tpu.memory_space<vmem>>, vector<1x4xf32>,
    } else {
    }
    %c0 = arith.constant 0 : index
    %c0_1 = arith.constant 0 : index
    %3 = vector.load %arg1[%c0, %c0_1] : memref<512x4xf32, #tpu.memory_space<vmem>>, vector<512x4xf32>
    %c0_2 = arith.constant 0 : index
    %c0_3 = arith.constant 0 : index
    %4 = vector.load %arg4[%c0_2, %c0_3] : memref<1x4xf32, #tpu.memory_space<vmem>>, vector<1x4xf32>
    %cst = arith.constant dense<0.000000e+00> : vector<4xf32>
    %5 = vector.multi_reduction <add>, %3, %cst [0] : vector<512x4xf32> to vector<4xf32>
    %6 = vector.shape_cast %5 : vector<4xf32> to vector<1x4xf32>
    %7 = arith.addf %4, %6 : vector<1x4xf32>
    %c0_4 = arith.constant 0 : index
    %c0_5 = arith.constant 0 : index
    %8 = vector.load %arg4[%c0_4, %c0_5] : memref<1x4xf32, #tpu.memory_space<vmem>>, vector<1x4xf32>
    tpu.vector_store %arg4[%c0_4, %c0_5], %7 {strides = array<i32>} : memref<1x4xf32, #tpu.memory_space<vmem>>, vector<1x4xf32>,
    %c0_6 = arith.constant 0 : index
    %c0_7 = arith.constant 0 : index
    %9 = vector.load %arg5[%c0_6, %c0_7] : memref<1x4xf32, #tpu.memory_space<vmem>>, vector<1x4xf32>
    %10 = arith.mulf %3, %3 : vector<512x4xf32>
    %cst_8 = arith.constant dense<0.000000e+00> : vector<4xf32>
    %11 = vector.multi_reduction <add>, %10, %cst_8 [0] : vector<512x4xf32> to vector<4xf32>
    %12 = vector.shape_cast %11 : vector<4xf32> to vector<1x4xf32>
    %13 = arith.addf %9, %12 : vector<1x4xf32>
    %c0_9 = arith.constant 0 : index
    %c0_10 = arith.constant 0 : index
    %14 = vector.load %arg5[%c0_9, %c0_10] : memref<1x4xf32, #tpu.memory_space<vmem>>, vector<1x4xf32>
    tpu.vector_store %arg5[%c0_9, %c0_10], %13 {strides = array<i32>} : memref<1x4xf32, #tpu.memory_space<vmem>>, vector<1x4xf32>,
    %c1_i32 = arith.constant 1 : i32
    %15 = arith.cmpi eq, %arg0, %c1_i32 : i32
    %16 = arith.extui %15 : i1 to i32
    %c0_i32_11 = arith.constant 0 : i32
    %17 = arith.cmpi ne, %16, %c0_i32_11 : i32
    scf.if %17 {
      %c0_12 = arith.constant 0 : index
      %c0_13 = arith.constant 0 : index
      %18 = vector.load %arg4[%c0_12, %c0_13] : memref<1x4xf32, #tpu.memory_space<vmem>>, vector<1x4xf32>
      %c0_14 = arith.constant 0 : index
      %c0_15 = arith.constant 0 : index
      %19 = vector.load %arg2[%c0_14, %c0_15] : memref<1x4xf32, #tpu.memory_space<vmem>>, vector<1x4xf32>
      tpu.vector_store %arg2[%c0_14, %c0_15], %18 {strides = array<i32>} : memref<1x4xf32, #tpu.memory_space<vmem>>, vector<1x4xf32>,
      %c0_16 = arith.constant 0 : index
      %c0_17 = arith.constant 0 : index
      %20 = vector.load %arg5[%c0_16, %c0_17] : memref<1x4xf32, #tpu.memory_space<vmem>>, vector<1x4xf32>
      %c0_18 = arith.constant 0 : index
      %c0_19 = arith.constant 0 : index
      %21 = vector.load %arg3[%c0_18, %c0_19] : memref<1x4xf32, #tpu.memory_space<vmem>>, vector<1x4xf32>
      tpu.vector_store %arg3[%c0_18, %c0_19], %20 {strides = array<i32>} : memref<1x4xf32, #tpu.memory_space<vmem>>, vector<1x4xf32>,
    } else {
    }
    return
  }
  func.func @transform_0(%arg0: i32) -> (i32, i32) {
    %c0_i32 = arith.constant 0 : i32
    %c0_i32_0 = arith.constant 0 : i32
    return %arg0, %c0_i32 : i32, i32
  }
  func.func @transform_1(%arg0: i32) -> (i32, i32) {
    %c0_i32 = arith.constant 0 : i32
    %c0_i32_0 = arith.constant 0 : i32
    %c0_i32_1 = arith.constant 0 : i32
    return %c0_i32, %c0_i32_0 : i32, i32
  }
  func.func @transform_2(%arg0: i32) -> (i32, i32) {
    %c0_i32 = arith.constant 0 : i32
    %c0_i32_0 = arith.constant 0 : i32
    %c0_i32_1 = arith.constant 0 : i32
    return %c0_i32, %c0_i32_0 : i32, i32
  }
}

module attributes {stable_mosaic.version = 11 : i64} {
  func.func @fused_output_kernel(%arg0: i32, %arg1: i32, %arg2: memref<1x1x104x4xf32, #tpu.memory_space<vmem>>, %arg3: memref<1x1x104x4xf32, #tpu.memory_space<vmem>>, %arg4: memref<1x1x104x4xf32, #tpu.memory_space<vmem>>, %arg5: memref<104x1xf32, #tpu.memory_space<vmem>>, %arg6: memref<1x4xf32, #tpu.memory_space<vmem>>, %arg7: memref<1x4xf32, #tpu.memory_space<vmem>>, %arg8: memref<108x2xf32, #tpu.memory_space<vmem>>, %arg9: memref<1x1x80x2xf32, #tpu.memory_space<vmem>>, %arg10: memref<3x104x4xf32, #tpu.memory_space<vmem>>) attributes {dimension_semantics = [#tpu.dimension_semantics<parallel>, #tpu.dimension_semantics<parallel>], iteration_bounds = array<i64: 2, 8>, scalar_prefetch = 0 : i64, scratch_operands = 1 : i64, tpu.core_type = #tpu.core_type<tc>, window_params = [{transform_indices = @transform_0, window_bounds = array<i64: 1, 1, 104, 4>}, {transform_indices = @transform_1, window_bounds = array<i64: 1, 1, 104, 4>}, {transform_indices = @transform_2, window_bounds = array<i64: 1, 1, 104, 4>}, {pipeline_mode = #tpu.pipeline_mode<synchronous>, transform_indices = @transform_3, window_bounds = array<i64: 104, 1>}, {pipeline_mode = #tpu.pipeline_mode<synchronous>, transform_indices = @transform_4, window_bounds = array<i64: 1, 4>}, {pipeline_mode = #tpu.pipeline_mode<synchronous>, transform_indices = @transform_5, window_bounds = array<i64: 1, 4>}, {pipeline_mode = #tpu.pipeline_mode<synchronous>, transform_indices = @transform_6, window_bounds = array<i64: 108, 2>}, {transform_indices = @transform_7, window_bounds = array<i64: 1, 1, 80, 2>}]} {
    %c0 = arith.constant 0 : index
    %c0_0 = arith.constant 0 : index
    %0 = vector.load %arg6[%c0, %c0_0] : memref<1x4xf32, #tpu.memory_space<vmem>>, vector<1x4xf32>
    %c0_1 = arith.constant 0 : index
    %c0_2 = arith.constant 0 : index
    %1 = vector.load %arg7[%c0_1, %c0_2] : memref<1x4xf32, #tpu.memory_space<vmem>>, vector<1x4xf32>
    %c0_3 = arith.constant 0 : index
    %c0_4 = arith.constant 0 : index
    %2 = vector.load %arg5[%c0_3, %c0_4] : memref<104x1xf32, #tpu.memory_space<vmem>>, vector<104x1xf32>
    %c0_i32 = arith.constant 0 : i32
    %3 = arith.cmpi sgt, %arg1, %c0_i32 : i32
    %cst = arith.constant 1.000000e+00 : f32
    %cst_5 = arith.constant 0.000000e+00 : f32
    %4 = arith.select %3, %cst, %cst_5 : f32
    %c7_i32 = arith.constant 7 : i32
    %5 = arith.cmpi slt, %arg1, %c7_i32 : i32
    %cst_6 = arith.constant 1.000000e+00 : f32
    %cst_7 = arith.constant 0.000000e+00 : f32
    %6 = arith.select %5, %cst_6, %cst_7 : f32
    %c0_8 = arith.constant 0 : index
    %c0_9 = arith.constant 0 : index
    %c0_10 = arith.constant 0 : index
    %c0_11 = arith.constant 0 : index
    %7 = vector.load %arg2[%c0_8, %c0_9, %c0_10, %c0_11] : memref<1x1x104x4xf32, #tpu.memory_space<vmem>>, vector<1x1x104x4xf32>
    %8 = vector.shape_cast %7 : vector<1x1x104x4xf32> to vector<104x4xf32>
    %9 = vector.broadcast %0 : vector<1x4xf32> to vector<104x4xf32>
    %10 = arith.mulf %8, %9 : vector<104x4xf32>
    %11 = vector.broadcast %1 : vector<1x4xf32> to vector<104x4xf32>
    %12 = arith.addf %10, %11 : vector<104x4xf32>
    %cst_12 = arith.constant 0.000000e+00 : f32
    %13 = vector.broadcast %cst_12 : f32 to vector<104x4xf32>
    %14 = arith.maximumf %12, %13 : vector<104x4xf32>
    %15 = vector.broadcast %4 : f32 to vector<104x1xf32>
    %16 = arith.mulf %2, %15 : vector<104x1xf32>
    %17 = vector.broadcast %16 : vector<104x1xf32> to vector<104x4xf32>
    %18 = arith.mulf %14, %17 : vector<104x4xf32>
    %c0_13 = arith.constant 0 : index
    %c0_14 = arith.constant 0 : index
    %c0_15 = arith.constant 0 : index
    %19 = vector.load %arg10[%c0_13, %c0_14, %c0_15] : memref<3x104x4xf32, #tpu.memory_space<vmem>>, vector<1x104x4xf32>
    %20 = vector.shape_cast %19 : vector<1x104x4xf32> to vector<104x4xf32>
    %21 = vector.shape_cast %18 : vector<104x4xf32> to vector<1x104x4xf32>
    tpu.vector_store %arg10[%c0_13, %c0_14, %c0_15], %21 {strides = array<i32>} : memref<3x104x4xf32, #tpu.memory_space<vmem>>, vector<1x104x4xf32>,
    %c0_16 = arith.constant 0 : index
    %c0_17 = arith.constant 0 : index
    %c0_18 = arith.constant 0 : index
    %c0_19 = arith.constant 0 : index
    %22 = vector.load %arg3[%c0_16, %c0_17, %c0_18, %c0_19] : memref<1x1x104x4xf32, #tpu.memory_space<vmem>>, vector<1x1x104x4xf32>
    %23 = vector.shape_cast %22 : vector<1x1x104x4xf32> to vector<104x4xf32>
    %24 = vector.broadcast %0 : vector<1x4xf32> to vector<104x4xf32>
    %25 = arith.mulf %23, %24 : vector<104x4xf32>
    %26 = vector.broadcast %1 : vector<1x4xf32> to vector<104x4xf32>
    %27 = arith.addf %25, %26 : vector<104x4xf32>
    %cst_20 = arith.constant 0.000000e+00 : f32
    %28 = vector.broadcast %cst_20 : f32 to vector<104x4xf32>
    %29 = arith.maximumf %27, %28 : vector<104x4xf32>
    %cst_21 = arith.constant 1.000000e+00 : f32
    %30 = vector.broadcast %cst_21 : f32 to vector<104x1xf32>
    %31 = arith.mulf %2, %30 : vector<104x1xf32>
    %32 = vector.broadcast %31 : vector<104x1xf32> to vector<104x4xf32>
    %33 = arith.mulf %29, %32 : vector<104x4xf32>
    %c1 = arith.constant 1 : index
    %c0_22 = arith.constant 0 : index
    %c0_23 = arith.constant 0 : index
    %34 = vector.load %arg10[%c1, %c0_22, %c0_23] : memref<3x104x4xf32, #tpu.memory_space<vmem>>, vector<1x104x4xf32>
    %35 = vector.shape_cast %34 : vector<1x104x4xf32> to vector<104x4xf32>
    %36 = vector.shape_cast %33 : vector<104x4xf32> to vector<1x104x4xf32>
    tpu.vector_store %arg10[%c1, %c0_22, %c0_23], %36 {strides = array<i32>} : memref<3x104x4xf32, #tpu.memory_space<vmem>>, vector<1x104x4xf32>,
    %c0_24 = arith.constant 0 : index
    %c0_25 = arith.constant 0 : index
    %c0_26 = arith.constant 0 : index
    %c0_27 = arith.constant 0 : index
    %37 = vector.load %arg4[%c0_24, %c0_25, %c0_26, %c0_27] : memref<1x1x104x4xf32, #tpu.memory_space<vmem>>, vector<1x1x104x4xf32>
    %38 = vector.shape_cast %37 : vector<1x1x104x4xf32> to vector<104x4xf32>
    %39 = vector.broadcast %0 : vector<1x4xf32> to vector<104x4xf32>
    %40 = arith.mulf %38, %39 : vector<104x4xf32>
    %41 = vector.broadcast %1 : vector<1x4xf32> to vector<104x4xf32>
    %42 = arith.addf %40, %41 : vector<104x4xf32>
    %cst_28 = arith.constant 0.000000e+00 : f32
    %43 = vector.broadcast %cst_28 : f32 to vector<104x4xf32>
    %44 = arith.maximumf %42, %43 : vector<104x4xf32>
    %45 = vector.broadcast %6 : f32 to vector<104x1xf32>
    %46 = arith.mulf %2, %45 : vector<104x1xf32>
    %47 = vector.broadcast %46 : vector<104x1xf32> to vector<104x4xf32>
    %48 = arith.mulf %44, %47 : vector<104x4xf32>
    %c2 = arith.constant 2 : index
    %c0_29 = arith.constant 0 : index
    %c0_30 = arith.constant 0 : index
    %49 = vector.load %arg10[%c2, %c0_29, %c0_30] : memref<3x104x4xf32, #tpu.memory_space<vmem>>, vector<1x104x4xf32>
    %50 = vector.shape_cast %49 : vector<1x104x4xf32> to vector<104x4xf32>
    %51 = vector.shape_cast %48 : vector<104x4xf32> to vector<1x104x4xf32>
    tpu.vector_store %arg10[%c2, %c0_29, %c0_30], %51 {strides = array<i32>} : memref<3x104x4xf32, #tpu.memory_space<vmem>>, vector<1x104x4xf32>,
    %c0_31 = arith.constant 0 : index
    %c0_32 = arith.constant 0 : index
    %c0_33 = arith.constant 0 : index
    %52 = vector.load %arg10[%c0_31, %c0_32, %c0_33] : memref<3x104x4xf32, #tpu.memory_space<vmem>>, vector<1x80x4xf32>
    %53 = vector.shape_cast %52 : vector<1x80x4xf32> to vector<80x4xf32>
    %c0_34 = arith.constant 0 : index
    %c1_35 = arith.constant 1 : index
    %c0_36 = arith.constant 0 : index
    %54 = vector.load %arg10[%c0_34, %c1_35, %c0_36] : memref<3x104x4xf32, #tpu.memory_space<vmem>>, vector<1x80x4xf32>
    %55 = vector.shape_cast %54 : vector<1x80x4xf32> to vector<80x4xf32>
    %c0_37 = arith.constant 0 : index
    %c2_38 = arith.constant 2 : index
    %c0_39 = arith.constant 0 : index
    %56 = vector.load %arg10[%c0_37, %c2_38, %c0_39] : memref<3x104x4xf32, #tpu.memory_space<vmem>>, vector<1x80x4xf32>
    %57 = vector.shape_cast %56 : vector<1x80x4xf32> to vector<80x4xf32>
    %c0_40 = arith.constant 0 : index
    %c10 = arith.constant 10 : index
    %c0_41 = arith.constant 0 : index
    %58 = vector.load %arg10[%c0_40, %c10, %c0_41] : memref<3x104x4xf32, #tpu.memory_space<vmem>>, vector<1x80x4xf32>
    %59 = vector.shape_cast %58 : vector<1x80x4xf32> to vector<80x4xf32>
    %c0_42 = arith.constant 0 : index
    %c11 = arith.constant 11 : index
    %c0_43 = arith.constant 0 : index
    %60 = vector.load %arg10[%c0_42, %c11, %c0_43] : memref<3x104x4xf32, #tpu.memory_space<vmem>>, vector<1x80x4xf32>
    %61 = vector.shape_cast %60 : vector<1x80x4xf32> to vector<80x4xf32>
    %c0_44 = arith.constant 0 : index
    %c12 = arith.constant 12 : index
    %c0_45 = arith.constant 0 : index
    %62 = vector.load %arg10[%c0_44, %c12, %c0_45] : memref<3x104x4xf32, #tpu.memory_space<vmem>>, vector<1x80x4xf32>
    %63 = vector.shape_cast %62 : vector<1x80x4xf32> to vector<80x4xf32>
    %c0_46 = arith.constant 0 : index
    %c20 = arith.constant 20 : index
    %c0_47 = arith.constant 0 : index
    %64 = vector.load %arg10[%c0_46, %c20, %c0_47] : memref<3x104x4xf32, #tpu.memory_space<vmem>>, vector<1x80x4xf32>
    %65 = vector.shape_cast %64 : vector<1x80x4xf32> to vector<80x4xf32>
    %c0_48 = arith.constant 0 : index
    %c21 = arith.constant 21 : index
    %c0_49 = arith.constant 0 : index
    %66 = vector.load %arg10[%c0_48, %c21, %c0_49] : memref<3x104x4xf32, #tpu.memory_space<vmem>>, vector<1x80x4xf32>
    %67 = vector.shape_cast %66 : vector<1x80x4xf32> to vector<80x4xf32>
    %c0_50 = arith.constant 0 : index
    %c22 = arith.constant 22 : index
    %c0_51 = arith.constant 0 : index
    %68 = vector.load %arg10[%c0_50, %c22, %c0_51] : memref<3x104x4xf32, #tpu.memory_space<vmem>>, vector<1x80x4xf32>
    %69 = vector.shape_cast %68 : vector<1x80x4xf32> to vector<80x4xf32>
    %c1_52 = arith.constant 1 : index
    %c0_53 = arith.constant 0 : index
    %c0_54 = arith.constant 0 : index
    %70 = vector.load %arg10[%c1_52, %c0_53, %c0_54] : memref<3x104x4xf32, #tpu.memory_space<vmem>>, vector<1x80x4xf32>
    %71 = vector.shape_cast %70 : vector<1x80x4xf32> to vector<80x4xf32>
    %c1_55 = arith.constant 1 : index
    %c1_56 = arith.constant 1 : index
    %c0_57 = arith.constant 0 : index
    %72 = vector.load %arg10[%c1_55, %c1_56, %c0_57] : memref<3x104x4xf32, #tpu.memory_space<vmem>>, vector<1x80x4xf32>
    %73 = vector.shape_cast %72 : vector<1x80x4xf32> to vector<80x4xf32>
    %c1_58 = arith.constant 1 : index
    %c2_59 = arith.constant 2 : index
    %c0_60 = arith.constant 0 : index
    %74 = vector.load %arg10[%c1_58, %c2_59, %c0_60] : memref<3x104x4xf32, #tpu.memory_space<vmem>>, vector<1x80x4xf32>
    %75 = vector.shape_cast %74 : vector<1x80x4xf32> to vector<80x4xf32>
    %c1_61 = arith.constant 1 : index
    %c10_62 = arith.constant 10 : index
    %c0_63 = arith.constant 0 : index
    %76 = vector.load %arg10[%c1_61, %c10_62, %c0_63] : memref<3x104x4xf32, #tpu.memory_space<vmem>>, vector<1x80x4xf32>
    %77 = vector.shape_cast %76 : vector<1x80x4xf32> to vector<80x4xf32>
    %c1_64 = arith.constant 1 : index
    %c11_65 = arith.constant 11 : index
    %c0_66 = arith.constant 0 : index
    %78 = vector.load %arg10[%c1_64, %c11_65, %c0_66] : memref<3x104x4xf32, #tpu.memory_space<vmem>>, vector<1x80x4xf32>
    %79 = vector.shape_cast %78 : vector<1x80x4xf32> to vector<80x4xf32>
    %c1_67 = arith.constant 1 : index
    %c12_68 = arith.constant 12 : index
    %c0_69 = arith.constant 0 : index
    %80 = vector.load %arg10[%c1_67, %c12_68, %c0_69] : memref<3x104x4xf32, #tpu.memory_space<vmem>>, vector<1x80x4xf32>
    %81 = vector.shape_cast %80 : vector<1x80x4xf32> to vector<80x4xf32>
    %c1_70 = arith.constant 1 : index
    %c20_71 = arith.constant 20 : index
    %c0_72 = arith.constant 0 : index
    %82 = vector.load %arg10[%c1_70, %c20_71, %c0_72] : memref<3x104x4xf32, #tpu.memory_space<vmem>>, vector<1x80x4xf32>
    %83 = vector.shape_cast %82 : vector<1x80x4xf32> to vector<80x4xf32>
    %c1_73 = arith.constant 1 : index
    %c21_74 = arith.constant 21 : index
    %c0_75 = arith.constant 0 : index
    %84 = vector.load %arg10[%c1_73, %c21_74, %c0_75] : memref<3x104x4xf32, #tpu.memory_space<vmem>>, vector<1x80x4xf32>
    %85 = vector.shape_cast %84 : vector<1x80x4xf32> to vector<80x4xf32>
    %c1_76 = arith.constant 1 : index
    %c22_77 = arith.constant 22 : index
    %c0_78 = arith.constant 0 : index
    %86 = vector.load %arg10[%c1_76, %c22_77, %c0_78] : memref<3x104x4xf32, #tpu.memory_space<vmem>>, vector<1x80x4xf32>
    %87 = vector.shape_cast %86 : vector<1x80x4xf32> to vector<80x4xf32>
    %c2_79 = arith.constant 2 : index
    %c0_80 = arith.constant 0 : index
    %c0_81 = arith.constant 0 : index
    %88 = vector.load %arg10[%c2_79, %c0_80, %c0_81] : memref<3x104x4xf32, #tpu.memory_space<vmem>>, vector<1x80x4xf32>
    %89 = vector.shape_cast %88 : vector<1x80x4xf32> to vector<80x4xf32>
    %c2_82 = arith.constant 2 : index
    %c1_83 = arith.constant 1 : index
    %c0_84 = arith.constant 0 : index
    %90 = vector.load %arg10[%c2_82, %c1_83, %c0_84] : memref<3x104x4xf32, #tpu.memory_space<vmem>>, vector<1x80x4xf32>
    %91 = vector.shape_cast %90 : vector<1x80x4xf32> to vector<80x4xf32>
    %c2_85 = arith.constant 2 : index
    %c2_86 = arith.constant 2 : index
    %c0_87 = arith.constant 0 : index
    %92 = vector.load %arg10[%c2_85, %c2_86, %c0_87] : memref<3x104x4xf32, #tpu.memory_space<vmem>>, vector<1x80x4xf32>
    %93 = vector.shape_cast %92 : vector<1x80x4xf32> to vector<80x4xf32>
    %c2_88 = arith.constant 2 : index
    %c10_89 = arith.constant 10 : index
    %c0_90 = arith.constant 0 : index
    %94 = vector.load %arg10[%c2_88, %c10_89, %c0_90] : memref<3x104x4xf32, #tpu.memory_space<vmem>>, vector<1x80x4xf32>
    %95 = vector.shape_cast %94 : vector<1x80x4xf32> to vector<80x4xf32>
    %c2_91 = arith.constant 2 : index
    %c11_92 = arith.constant 11 : index
    %c0_93 = arith.constant 0 : index
    %96 = vector.load %arg10[%c2_91, %c11_92, %c0_93] : memref<3x104x4xf32, #tpu.memory_space<vmem>>, vector<1x80x4xf32>
    %97 = vector.shape_cast %96 : vector<1x80x4xf32> to vector<80x4xf32>
    %c2_94 = arith.constant 2 : index
    %c12_95 = arith.constant 12 : index
    %c0_96 = arith.constant 0 : index
    %98 = vector.load %arg10[%c2_94, %c12_95, %c0_96] : memref<3x104x4xf32, #tpu.memory_space<vmem>>, vector<1x80x4xf32>
    %99 = vector.shape_cast %98 : vector<1x80x4xf32> to vector<80x4xf32>
    %c2_97 = arith.constant 2 : index
    %c20_98 = arith.constant 20 : index
    %c0_99 = arith.constant 0 : index
    %100 = vector.load %arg10[%c2_97, %c20_98, %c0_99] : memref<3x104x4xf32, #tpu.memory_space<vmem>>, vector<1x80x4xf32>
    %101 = vector.shape_cast %100 : vector<1x80x4xf32> to vector<80x4xf32>
    %c2_100 = arith.constant 2 : index
    %c21_101 = arith.constant 21 : index
    %c0_102 = arith.constant 0 : index
    %102 = vector.load %arg10[%c2_100, %c21_101, %c0_102] : memref<3x104x4xf32, #tpu.memory_space<vmem>>, vector<1x80x4xf32>
    %103 = vector.shape_cast %102 : vector<1x80x4xf32> to vector<80x4xf32>
    %c2_103 = arith.constant 2 : index
    %c22_104 = arith.constant 22 : index
    %c0_105 = arith.constant 0 : index
    %104 = vector.load %arg10[%c2_103, %c22_104, %c0_105] : memref<3x104x4xf32, #tpu.memory_space<vmem>>, vector<1x80x4xf32>
    %105 = vector.shape_cast %104 : vector<1x80x4xf32> to vector<80x4xf32>
    %106 = tpu.concatenate %53, %55, %57, %59, %61, %63, %65, %67, %69, %71, %73, %75, %77, %79, %81, %83 in 1 : vector<80x4xf32>, vector<80x4xf32>, vector<80x4xf32>, vector<80x4xf32>, vector<80x4xf32>, vector<80x4xf32>, vector<80x4xf32>, vector<80x4xf32>, vector<80x4xf32>, vector<80x4xf32>, vector<80x4xf32>, vector<80x4xf32>, vector<80x4xf32>, vector<80x4xf32>, vector<80x4xf32>, vector<80x4xf32> -> vector<80x64xf32>
    %107 = tpu.concatenate %85, %87, %89, %91, %93, %95, %97, %99, %101, %103, %105 in 1 : vector<80x4xf32>, vector<80x4xf32>, vector<80x4xf32>, vector<80x4xf32>, vector<80x4xf32>, vector<80x4xf32>, vector<80x4xf32>, vector<80x4xf32>, vector<80x4xf32>, vector<80x4xf32>, vector<80x4xf32> -> vector<80x44xf32>
    %108 = tpu.concatenate %106, %107 in 1 : vector<80x64xf32>, vector<80x44xf32> -> vector<80x108xf32>
    %c0_106 = arith.constant 0 : index
    %c0_107 = arith.constant 0 : index
    %109 = vector.load %arg8[%c0_106, %c0_107] : memref<108x2xf32, #tpu.memory_space<vmem>>, vector<108x2xf32>
    %cst_108 = arith.constant dense<0.000000e+00> : vector<80x2xf32>
    %110 = tpu.matmul %108, %109, %cst_108 {dimension_numbers = #tpu.dot_dimension_numbers<[1], [0], [0], [1], [0, 0, 1, 1], [], []>} : vector<80x108xf32>, vector<108x2xf32>, vector<80x2xf32> -> vector<80x2xf32>
    %cst_109 = arith.constant dense<0xFF800000> : vector<80xf32>
    %111 = vector.multi_reduction <maximumf>, %110, %cst_109 [1] : vector<80x2xf32> to vector<80xf32>
    %112 = vector.shape_cast %111 : vector<80xf32> to vector<80x1xf32>
    %113 = vector.broadcast %112 : vector<80x1xf32> to vector<80x2xf32>
    %114 = arith.subf %110, %113 : vector<80x2xf32>
    %115 = math.exp %114 : vector<80x2xf32>
    %cst_110 = arith.constant dense<0.000000e+00> : vector<80xf32>
    %116 = vector.multi_reduction <add>, %115, %cst_110 [1] : vector<80x2xf32> to vector<80xf32>
    %117 = vector.shape_cast %116 : vector<80xf32> to vector<80x1xf32>
    %118 = vector.broadcast %117 : vector<80x1xf32> to vector<80x2xf32>
    %119 = arith.divf %115, %118 : vector<80x2xf32>
    %c0_111 = arith.constant 0 : index
    %c0_112 = arith.constant 0 : index
    %c0_113 = arith.constant 0 : index
    %c0_114 = arith.constant 0 : index
    %120 = vector.load %arg9[%c0_111, %c0_112, %c0_113, %c0_114] : memref<1x1x80x2xf32, #tpu.memory_space<vmem>>, vector<1x1x80x2xf32>
    %121 = vector.shape_cast %120 : vector<1x1x80x2xf32> to vector<80x2xf32>
    %122 = vector.shape_cast %119 : vector<80x2xf32> to vector<1x1x80x2xf32>
    tpu.vector_store %arg9[%c0_111, %c0_112, %c0_113, %c0_114], %122 {strides = array<i32>} : memref<1x1x80x2xf32, #tpu.memory_space<vmem>>, vector<1x1x80x2xf32>,
    return
  }
  func.func @transform_0(%arg0: i32, %arg1: i32) -> (i32, i32, i32, i32) {
    %c0_i32 = arith.constant 0 : i32
    %0 = arith.addi %arg1, %c0_i32 : i32
    %c0_i32_0 = arith.constant 0 : i32
    %c0_i32_1 = arith.constant 0 : i32
    %c0_i32_2 = arith.constant 0 : i32
    return %arg0, %0, %c0_i32_0, %c0_i32_1 : i32, i32, i32, i32
  }
  func.func @transform_1(%arg0: i32, %arg1: i32) -> (i32, i32, i32, i32) {
    %c1_i32 = arith.constant 1 : i32
    %0 = arith.addi %arg1, %c1_i32 : i32
    %c0_i32 = arith.constant 0 : i32
    %c0_i32_0 = arith.constant 0 : i32
    %c0_i32_1 = arith.constant 0 : i32
    return %arg0, %0, %c0_i32, %c0_i32_0 : i32, i32, i32, i32
  }
  func.func @transform_2(%arg0: i32, %arg1: i32) -> (i32, i32, i32, i32) {
    %c2_i32 = arith.constant 2 : i32
    %0 = arith.addi %arg1, %c2_i32 : i32
    %c0_i32 = arith.constant 0 : i32
    %c0_i32_0 = arith.constant 0 : i32
    %c0_i32_1 = arith.constant 0 : i32
    return %arg0, %0, %c0_i32, %c0_i32_0 : i32, i32, i32, i32
  }
  func.func @transform_3(%arg0: i32, %arg1: i32) -> (i32, i32) {
    %c0_i32 = arith.constant 0 : i32
    %c0_i32_0 = arith.constant 0 : i32
    %c0_i32_1 = arith.constant 0 : i32
    return %c0_i32, %c0_i32_0 : i32, i32
  }
  func.func @transform_4(%arg0: i32, %arg1: i32) -> (i32, i32) {
    %c0_i32 = arith.constant 0 : i32
    %c0_i32_0 = arith.constant 0 : i32
    %c0_i32_1 = arith.constant 0 : i32
    return %c0_i32, %c0_i32_0 : i32, i32
  }
  func.func @transform_5(%arg0: i32, %arg1: i32) -> (i32, i32) {
    %c0_i32 = arith.constant 0 : i32
    %c0_i32_0 = arith.constant 0 : i32
    %c0_i32_1 = arith.constant 0 : i32
    return %c0_i32, %c0_i32_0 : i32, i32
  }
  func.func @transform_6(%arg0: i32, %arg1: i32) -> (i32, i32) {
    %c0_i32 = arith.constant 0 : i32
    %c0_i32_0 = arith.constant 0 : i32
    %c0_i32_1 = arith.constant 0 : i32
    return %c0_i32, %c0_i32_0 : i32, i32
  }
  func.func @transform_7(%arg0: i32, %arg1: i32) -> (i32, i32, i32, i32) {
    %c0_i32 = arith.constant 0 : i32
    %c0_i32_0 = arith.constant 0 : i32
    %c0_i32_1 = arith.constant 0 : i32
    return %arg0, %arg1, %c0_i32, %c0_i32_0 : i32, i32, i32, i32
  }
}

</mosaic_0001>

<llo_original>
// kernel: output_pallas.2
$region0: #{output_pallas.2}
  #allocation0 [shape = 'u32[]', space=smem, size = 0x4, offset = 0x4, fixed_abs, tag = 'smem constant byte address 0x4 - core index']
  #allocation1 [shape = 'u32[144,128]{1,0:T(1,128)}', space=vmem, size = 0x12000, scoped, tag = 'internal scratch']
  #allocation2 [shape = 'f32[1,4]{1,0:T(1,128)}', space=vmem, size = 0x200, scoped, tag = 'scratch operand']
  #allocation3 [shape = 'f32[1,4]{1,0:T(1,128)}', space=vmem, size = 0x200, scoped, tag = 'scratch operand']
  %s0 = inlined_call_operand.vmem [shape: f32[1024,4], index: 0, kind: input, shape index: {}]
  %s1 = inlined_call_operand.vmem [shape: f32[1,4], index: 1, kind: output, shape index: {0}]
  %s2 = inlined_call_operand.vmem [shape: f32[1,4], index: 2, kind: output, shape index: {1}]
  %3 = xla_tuple %s1, %s2
  %s4 = sld [smem:[#allocation0]]
  $region53: #{output_pallas.2} parent=0
    _
  %s6 = ssub.s32 1, %s4
  %s7 = scalar_select 0, %s6, %s4
  loop: start=0, step=1, limit=4
  $region2: #{output_pallas.2} parent=0 // loop_pre_header
    _
  $region3: #{output_pallas.2} parent=0 // loop_header
    %s9 = sphi 0, %s13
    %p10 = scmp.ge.s32.totalorder %s9, 4
    %s19 = sphi 0, %s21
    %s22 = sphi 0, %s19
    %s23 = sphi 0, %s22
    %s39 = sphi 0, %s23
    %s43 = sphi 0, %s43
    %s45 = sphi 0, %s43
    %s46 = sphi 0, %s45
    %s60 = sphi 0, %s46
    %s64 = sphi 0, %s64
    %s66 = sphi 0, %s64
    %s67 = sphi 0, %s66
    %s81 = sphi 0, %s67
  $region4: #{output_pallas.2} parent=0 // loop_header_branch
    %12 = sbr.rel (%p10) target = $region8
  $region5: #{output_pallas.2} parent=0 // loop_body
    %s14 = ssub.s32 %s9, 1
    %s15 = ssub.s32 %s9, 2
    %s16 = sadd.s32 %s9, 1
    %s17 = ssub.s32 %s9, %s16
    %p18 = scmp.eq.s32.totalorder %s17, 0
    %s20 = sadd.s32 %s19, 1
    %s21 = scalar_select %p18, %s19, %s20
    %p24 = pneg %p18
    %p25 = scmp.eq.s32.totalorder %s9, 1
    %p26 = por %p24, %p25
    %p27 = scmp.ne.s32.totalorder %s19, %s22
    %p28 = scmp.eq.s32.totalorder %s9, 0
    %p29 = por %p27, %p28
    %p30 = scmp.ne.s32.totalorder %s19, %s22
    %p31 = scmp.eq.s32.totalorder %s14, 1
    %p32 = por %p30, %p31
    %p33 = scmp.ne.s32.totalorder %s22, %s23
    %p34 = scmp.eq.s32.totalorder %s14, 0
    %p35 = por %p33, %p34
    %p36 = scmp.ne.s32.totalorder %s22, %s23
    %p37 = scmp.eq.s32.totalorder %s15, 1
    %p38 = por %p36, %p37
    %p40 = scmp.ne.s32.totalorder %s23, %s39
    %p41 = scmp.eq.s32.totalorder %s15, 0
    %p42 = por %p40, %p41
    %s44 = sadd.s32 %s43, 1
    %p47 = scmp.eq.s32.totalorder %s9, 1
    %p48 = scmp.ne.s32.totalorder %s43, %s45
    %p49 = scmp.eq.s32.totalorder %s9, 0
    %p50 = por %p48, %p49
    %p51 = scmp.ne.s32.totalorder %s43, %s45
    %p52 = scmp.eq.s32.totalorder %s14, 1
    %p53 = por %p51, %p52
    %p54 = scmp.ne.s32.totalorder %s45, %s46
    %p55 = scmp.eq.s32.totalorder %s14, 0
    %p56 = por %p54, %p55
    %p57 = scmp.ne.s32.totalorder %s45, %s46
    %p58 = scmp.eq.s32.totalorder %s15, 1
    %p59 = por %p57, %p58
    %p61 = scmp.ne.s32.totalorder %s46, %s60
    %p62 = scmp.eq.s32.totalorder %s15, 0
    %p63 = por %p61, %p62
    %s65 = sadd.s32 %s64, 1
    %p68 = scmp.eq.s32.totalorder %s9, 1
    %p69 = scmp.ne.s32.totalorder %s64, %s66
    %p70 = scmp.eq.s32.totalorder %s9, 0
    %p71 = por %p69, %p70
    %p72 = scmp.ne.s32.totalorder %s64, %s66
    %p73 = scmp.eq.s32.totalorder %s14, 1
    %p74 = por %p72, %p73
    %p75 = scmp.ne.s32.totalorder %s66, %s67
    %p76 = scmp.eq.s32.totalorder %s14, 0
    %p77 = por %p75, %p76
    %p78 = scmp.ne.s32.totalorder %s66, %s67
    %p79 = scmp.eq.s32.totalorder %s15, 1
    %p80 = por %p78, %p79
    %p82 = scmp.ne.s32.totalorder %s67, %s81
    %p83 = scmp.eq.s32.totalorder %s15, 0
    %p84 = por %p82, %p83
    %p85 = scmp.le.s32.totalorder 1, %s9
    %p86 = scmp.lt.s32.totalorder %s9, 3
    %p87 = pnand %p85, %p86
    %p88 = pneg %p87
    // Predicated region
    $region9: #{output_pallas.2} parent=5 // pred_check
      _
    $region10: #{output_pallas.2} parent=5 // pred_check_branch
      %90 = sbr.rel (%p87) target = $region12
    $region11: #{output_pallas.2} parent=5 // pred_region
      %s91 = ssub.s32 %s9, 1
    $region12: #{output_pallas.2} parent=5 // pred_fallthru
      _
    %p92 = scmp.lt.s32.totalorder %s9, 2
    // Predicated region
    $region13: #{output_pallas.2} parent=5 // pred_check
      %p93 = pneg %p92
    $region14: #{output_pallas.2} parent=5 // pred_check_branch
      %95 = sbr.rel (%p93) target = $region16
    $region15: #{output_pallas.2} parent=5 // pred_region
      // Predicated region
      $region17: #{output_pallas.2} parent=15 // pred_check
        %p96 = pneg %p29
      $region18: #{output_pallas.2} parent=15 // pred_check_branch
        %98 = sbr.rel (%p96) target = $region20
      $region19: #{output_pallas.2} parent=15 // pred_region
        %s99 = smul.u32 64, %s9
        %p100 = scmp.lt.s32.totalorder %s99, 127
        %s101 = scalar_select %p100, %s99, 127
        %s102 = smul.addr %s101, 8
        %s103 = scalar_lea.vmem %s0, %s102
        %s104 = smul.u32 64, %s9
      $region20: #{output_pallas.2} parent=15 // pred_fallthru
        _
    $region16: #{output_pallas.2} parent=5 // pred_fallthru
      _
    %p105 = scmp.le.s32.totalorder 1, %s9
    %p106 = scmp.lt.s32.totalorder %s9, 3
    %p107 = pnand %p105, %p106
    %p108 = pneg %p107
    // Predicated region
    $region21: #{output_pallas.2} parent=5 // pred_check
      _
    $region22: #{output_pallas.2} parent=5 // pred_check_branch
      %110 = sbr.rel (%p107) target = $region24
    $region23: #{output_pallas.2} parent=5 // pred_region
      %s111 = ssub.s32 %s9, 1
      %s112 = smul.u32 64, %s14
      %p113 = scmp.lt.s32.totalorder %s112, 127
      %s114 = scalar_select %p113, %s112, 127
      %s115 = smul.addr %s114, 8
      %s116 = scalar_lea.vmem %s0, %s115
      %p117 = pneg %p35
      %p118 = pneg %p32
      %p119 = pneg %p56
      %p120 = pneg %p53
      %p121 = pneg %p77
      %p122 = pneg %p74
      %s123 = smul.u32 64, %s14
      %p124 = scmp.lt.s32.totalorder %s123, 127
      %s125 = scalar_select %p124, %s123, 127
      %s126 = smul.addr %s125, 8
      %s127 = scalar_lea.vmem %s0, %s126
      %s128 = smul.u32 64, %s14
      %p129 = scmp.eq.s32.totalorder %s14, 0
      // Predicated region
      $region25: #{output_pallas.2} parent=23 // pred_check
        %p130 = pneg %p129
      $region26: #{output_pallas.2} parent=23 // pred_check_branch
        %132 = sbr.rel (%p130) target = $region28
      $region27: #{output_pallas.2} parent=23 // pred_region
        %vm133 = vcmask 24576
        %134 = vst.msk [vmem:[#allocation2] sm:$0x1] %vm133, 0.0
        %135 = vst.msk [vmem:[#allocation3] sm:$0x1] %vm133, 0.0
      $region28: #{output_pallas.2} parent=23 // pred_fallthru
        _
      %v136 = vld [vmem:[%s127] sm:$0xff]
      %v137 = vld [vmem:[%s127 + $0x8] sm:$0xff]
      %v138 = vld [vmem:[%s127 + $0x10] sm:$0xff]
      %v139 = vld [vmem:[%s127 + $0x18] sm:$0xff]
      %v140 = vld [vmem:[%s127 + $0x20] sm:$0xff]
      %v141 = vld [vmem:[%s127 + $0x28] sm:$0xff]
      %v142 = vld [vmem:[%s127 + $0x30] sm:$0xff]
      %v143 = vld [vmem:[%s127 + $0x38] sm:$0xff]
      %v144 = vld [vmem:[%s127 + $0x40] sm:$0xff]
      %v145 = vld [vmem:[%s127 + $0x48] sm:$0xff]
      %v146 = vld [vmem:[%s127 + $0x50] sm:$0xff]
      %v147 = vld [vmem:[%s127 + $0x58] sm:$0xff]
      %v148 = vld [vmem:[%s127 + $0x60] sm:$0xff]
      %v149 = vld [vmem:[%s127 + $0x68] sm:$0xff]
      %v150 = vld [vmem:[%s127 + $0x70] sm:$0xff]
      %v151 = vld [vmem:[%s127 + $0x78] sm:$0xff]
      %v152 = vld [vmem:[%s127 + $0x80] sm:$0xff]
      %v153 = vld [vmem:[%s127 + $0x88] sm:$0xff]
      %v154 = vld [vmem:[%s127 + $0x90] sm:$0xff]
      %v155 = vld [vmem:[%s127 + $0x98] sm:$0xff]
      %v156 = vld [vmem:[%s127 + $0xa0] sm:$0xff]
      %v157 = vld [vmem:[%s127 + $0xa8] sm:$0xff]
      %v158 = vld [vmem:[%s127 + $0xb0] sm:$0xff]
      %v159 = vld [vmem:[%s127 + $0xb8] sm:$0xff]
      %v160 = vld [vmem:[%s127 + $0xc0] sm:$0xff]
      %v161 = vld [vmem:[%s127 + $0xc8] sm:$0xff]
      %v162 = vld [vmem:[%s127 + $0xd0] sm:$0xff]
      %v163 = vld [vmem:[%s127 + $0xd8] sm:$0xff]
      %v164 = vld [vmem:[%s127 + $0xe0] sm:$0xff]
      %v165 = vld [vmem:[%s127 + $0xe8] sm:$0xff]
      %v166 = vld [vmem:[%s127 + $0xf0] sm:$0xff]
      %v167 = vld [vmem:[%s127 + $0xf8] sm:$0xff]
      %v168 = vld [vmem:[%s127 + $0x100] sm:$0xff]
      %v169 = vld [vmem:[%s127 + $0x108] sm:$0xff]
      %v170 = vld [vmem:[%s127 + $0x110] sm:$0xff]
      %v171 = vld [vmem:[%s127 + $0x118] sm:$0xff]
      %v172 = vld [vmem:[%s127 + $0x120] sm:$0xff]
      %v173 = vld [vmem:[%s127 + $0x128] sm:$0xff]
      %v174 = vld [vmem:[%s127 + $0x130] sm:$0xff]
      %v175 = vld [vmem:[%s127 + $0x138] sm:$0xff]
      %v176 = vld [vmem:[%s127 + $0x140] sm:$0xff]
      %v177 = vld [vmem:[%s127 + $0x148] sm:$0xff]
      %v178 = vld [vmem:[%s127 + $0x150] sm:$0xff]
      %v179 = vld [vmem:[%s127 + $0x158] sm:$0xff]
      %v180 = vld [vmem:[%s127 + $0x160] sm:$0xff]
      %v181 = vld [vmem:[%s127 + $0x168] sm:$0xff]
      %v182 = vld [vmem:[%s127 + $0x170] sm:$0xff]
      %v183 = vld [vmem:[%s127 + $0x178] sm:$0xff]
      %v184 = vld [vmem:[%s127 + $0x180] sm:$0xff]
      %v185 = vld [vmem:[%s127 + $0x188] sm:$0xff]
      %v186 = vld [vmem:[%s127 + $0x190] sm:$0xff]
      %v187 = vld [vmem:[%s127 + $0x198] sm:$0xff]
      %v188 = vld [vmem:[%s127 + $0x1a0] sm:$0xff]
      %v189 = vld [vmem:[%s127 + $0x1a8] sm:$0xff]
      %v190 = vld [vmem:[%s127 + $0x1b0] sm:$0xff]
      %v191 = vld [vmem:[%s127 + $0x1b8] sm:$0xff]
      %v192 = vld [vmem:[%s127 + $0x1c0] sm:$0xff]
      %v193 = vld [vmem:[%s127 + $0x1c8] sm:$0xff]
      %v194 = vld [vmem:[%s127 + $0x1d0] sm:$0xff]
      %v195 = vld [vmem:[%s127 + $0x1d8] sm:$0xff]
      %v196 = vld [vmem:[%s127 + $0x1e0] sm:$0xff]
      %v197 = vld [vmem:[%s127 + $0x1e8] sm:$0xff]
      %v198 = vld [vmem:[%s127 + $0x1f0] sm:$0xff]
      %v199 = vld [vmem:[%s127 + $0x1f8] sm:$0xff]
      %v200 = vld [vmem:[#allocation2] sm:$0x1]
      %vm201 = vcmask 31744
      %v202 = vsel %vm201, %v136, 0.0
      %v203 = vsel %vm201, %v137, 0.0
      %v204 = vadd.f32 %v202, %v203
      %v205 = vsel %vm201, %v138, 0.0
      %v206 = vadd.f32 %v204, %v205
      %v207 = vsel %vm201, %v139, 0.0
      %v208 = vadd.f32 %v206, %v207
      %v209 = vsel %vm201, %v140, 0.0
      %v210 = vadd.f32 %v208, %v209
      %v211 = vsel %vm201, %v141, 0.0
      %v212 = vadd.f32 %v210, %v211
      %v213 = vsel %vm201, %v142, 0.0
      %v214 = vadd.f32 %v212, %v213
      %v215 = vsel %vm201, %v143, 0.0
      %v216 = vadd.f32 %v214, %v215
      %v217 = vsel %vm201, %v144, 0.0
      %v218 = vadd.f32 %v216, %v217
      %v219 = vsel %vm201, %v145, 0.0
      %v220 = vadd.f32 %v218, %v219
      %v221 = vsel %vm201, %v146, 0.0
      %v222 = vadd.f32 %v220, %v221
      %v223 = vsel %vm201, %v147, 0.0
      %v224 = vadd.f32 %v222, %v223
      %v225 = vsel %vm201, %v148, 0.0
      %v226 = vadd.f32 %v224, %v225
      %v227 = vsel %vm201, %v149, 0.0
      %v228 = vadd.f32 %v226, %v227
      %v229 = vsel %vm201, %v150, 0.0
      %v230 = vadd.f32 %v228, %v229
      %v231 = vsel %vm201, %v151, 0.0
      %v232 = vadd.f32 %v230, %v231
      %v233 = vsel %vm201, %v152, 0.0
      %v234 = vadd.f32 %v232, %v233
      %v235 = vsel %vm201, %v153, 0.0
      %v236 = vadd.f32 %v234, %v235
      %v237 = vsel %vm201, %v154, 0.0
      %v238 = vadd.f32 %v236, %v237
      %v239 = vsel %vm201, %v155, 0.0
      %v240 = vadd.f32 %v238, %v239
      %v241 = vsel %vm201, %v156, 0.0
      %v242 = vadd.f32 %v240, %v241
      %v243 = vsel %vm201, %v157, 0.0
      %v244 = vadd.f32 %v242, %v243
      %v245 = vsel %vm201, %v158, 0.0
      %v246 = vadd.f32 %v244, %v245
      %v247 = vsel %vm201, %v159, 0.0
      %v248 = vadd.f32 %v246, %v247
      %v249 = vsel %vm201, %v160, 0.0
      %v250 = vadd.f32 %v248, %v249
      %v251 = vsel %vm201, %v161, 0.0
      %v252 = vadd.f32 %v250, %v251
      %v253 = vsel %vm201, %v162, 0.0
      %v254 = vadd.f32 %v252, %v253
      %v255 = vsel %vm201, %v163, 0.0
      %v256 = vadd.f32 %v254, %v255
      %v257 = vsel %vm201, %v164, 0.0
      %v258 = vadd.f32 %v256, %v257
      %v259 = vsel %vm201, %v165, 0.0
      %v260 = vadd.f32 %v258, %v259
      %v261 = vsel %vm201, %v166, 0.0
      %v262 = vadd.f32 %v260, %v261
      %v263 = vsel %vm201, %v167, 0.0
      %v264 = vadd.f32 %v262, %v263
      %v265 = vsel %vm201, %v168, 0.0
      %v266 = vadd.f32 %v264, %v265
      %v267 = vsel %vm201, %v169, 0.0
      %v268 = vadd.f32 %v266, %v267
      %v269 = vsel %vm201, %v170, 0.0
      %v270 = vadd.f32 %v268, %v269
      %v271 = vsel %vm201, %v171, 0.0
      %v272 = vadd.f32 %v270, %v271
      %v273 = vsel %vm201, %v172, 0.0
      %v274 = vadd.f32 %v272, %v273
      %v275 = vsel %vm201, %v173, 0.0
      %v276 = vadd.f32 %v274, %v275
      %v277 = vsel %vm201, %v174, 0.0
      %v278 = vadd.f32 %v276, %v277
      %v279 = vsel %vm201, %v175, 0.0
      %v280 = vadd.f32 %v278, %v279
      %v281 = vsel %vm201, %v176, 0.0
      %v282 = vadd.f32 %v280, %v281
      %v283 = vsel %vm201, %v177, 0.0
      %v284 = vadd.f32 %v282, %v283
      %v285 = vsel %vm201, %v178, 0.0
      %v286 = vadd.f32 %v284, %v285
      %v287 = vsel %vm201, %v179, 0.0
      %v288 = vadd.f32 %v286, %v287
      %v289 = vsel %vm201, %v180, 0.0
      %v290 = vadd.f32 %v288, %v289
      %v291 = vsel %vm201, %v181, 0.0
      %v292 = vadd.f32 %v290, %v291
      %v293 = vsel %vm201, %v182, 0.0
      %v294 = vadd.f32 %v292, %v293
      %v295 = vsel %vm201, %v183, 0.0
      %v296 = vadd.f32 %v294, %v295
      %v297 = vsel %vm201, %v184, 0.0
      %v298 = vadd.f32 %v296, %v297
      %v299 = vsel %vm201, %v185, 0.0
      %v300 = vadd.f32 %v298, %v299
      %v301 = vsel %vm201, %v186, 0.0
      %v302 = vadd.f32 %v300, %v301
      %v303 = vsel %vm201, %v187, 0.0
      %v304 = vadd.f32 %v302, %v303
      %v305 = vsel %vm201, %v188, 0.0
      %v306 = vadd.f32 %v304, %v305
      %v307 = vsel %vm201, %v189, 0.0
      %v308 = vadd.f32 %v306, %v307
      %v309 = vsel %vm201, %v190, 0.0
      %v310 = vadd.f32 %v308, %v309
      %v311 = vsel %vm201, %v191, 0.0
      %v312 = vadd.f32 %v310, %v311
      %v313 = vsel %vm201, %v192, 0.0
      %v314 = vadd.f32 %v312, %v313
      %v315 = vsel %vm201, %v193, 0.0
      %v316 = vadd.f32 %v314, %v315
      %v317 = vsel %vm201, %v194, 0.0
      %v318 = vadd.f32 %v316, %v317
      %v319 = vsel %vm201, %v195, 0.0
      %v320 = vadd.f32 %v318, %v319
      %v321 = vsel %vm201, %v196, 0.0
      %v322 = vadd.f32 %v320, %v321
      %v323 = vsel %vm201, %v197, 0.0
      %v324 = vadd.f32 %v322, %v323
      %v325 = vsel %vm201, %v198, 0.0
      %v326 = vadd.f32 %v324, %v325
      %v327 = vsel %vm201, %v199, 0.0
      %v328 = vadd.f32 %v326, %v327
      %v329 = vrot.slane %v328, 4
      %v330 = vadd.f32 %v328, %v329
      %v331 = vrot.slane %v330, 2
      %v332 = vadd.f32 %v330, %v331
      %v333 = vrot.slane %v332, 1
      %v334 = vadd.f32 %v332, %v333
      %v335 = vadd.f32 %v200, %v334
      %vm336 = vcmask 24576
      %337 = vst.msk [vmem:[#allocation2] sm:$0x1] %vm336, %v335
      %v338 = vld [vmem:[#allocation3] sm:$0x1]
      %v339 = vmul.f32 %v136, %v136
      %v340 = vmul.f32 %v137, %v137
      %v341 = vmul.f32 %v138, %v138
      %v342 = vmul.f32 %v139, %v139
      %v343 = vmul.f32 %v140, %v140
      %v344 = vmul.f32 %v141, %v141
      %v345 = vmul.f32 %v142, %v142
      %v346 = vmul.f32 %v143, %v143
      %v347 = vmul.f32 %v144, %v144
      %v348 = vmul.f32 %v145, %v145
      %v349 = vmul.f32 %v146, %v146
      %v350 = vmul.f32 %v147, %v147
      %v351 = vmul.f32 %v148, %v148
      %v352 = vmul.f32 %v149, %v149
      %v353 = vmul.f32 %v150, %v150
      %v354 = vmul.f32 %v151, %v151
      %v355 = vmul.f32 %v152, %v152
      %v356 = vmul.f32 %v153, %v153
      %v357 = vmul.f32 %v154, %v154
      %v358 = vmul.f32 %v155, %v155
      %v359 = vmul.f32 %v156, %v156
      %v360 = vmul.f32 %v157, %v157
      %v361 = vmul.f32 %v158, %v158
      %v362 = vmul.f32 %v159, %v159
      %v363 = vmul.f32 %v160, %v160
      %v364 = vmul.f32 %v161, %v161
      %v365 = vmul.f32 %v162, %v162
      %v366 = vmul.f32 %v163, %v163
      %v367 = vmul.f32 %v164, %v164
      %v368 = vmul.f32 %v165, %v165
      %v369 = vmul.f32 %v166, %v166
      %v370 = vmul.f32 %v167, %v167
      %v371 = vmul.f32 %v168, %v168
      %v372 = vmul.f32 %v169, %v169
      %v373 = vmul.f32 %v170, %v170
      %v374 = vmul.f32 %v171, %v171
      %v375 = vmul.f32 %v172, %v172
      %v376 = vmul.f32 %v173, %v173
      %v377 = vmul.f32 %v174, %v174
      %v378 = vmul.f32 %v175, %v175
      %v379 = vmul.f32 %v176, %v176
      %v380 = vmul.f32 %v177, %v177
      %v381 = vmul.f32 %v178, %v178
      %v382 = vmul.f32 %v179, %v179
      %v383 = vmul.f32 %v180, %v180
      %v384 = vmul.f32 %v181, %v181
      %v385 = vmul.f32 %v182, %v182
      %v386 = vmul.f32 %v183, %v183
      %v387 = vmul.f32 %v184, %v184
      %v388 = vmul.f32 %v185, %v185
      %v389 = vmul.f32 %v186, %v186
      %v390 = vmul.f32 %v187, %v187
      %v391 = vmul.f32 %v188, %v188
      %v392 = vmul.f32 %v189, %v189
      %v393 = vmul.f32 %v190, %v190
      %v394 = vmul.f32 %v191, %v191
      %v395 = vmul.f32 %v192, %v192
      %v396 = vmul.f32 %v193, %v193
      %v397 = vmul.f32 %v194, %v194
      %v398 = vmul.f32 %v195, %v195
      %v399 = vmul.f32 %v196, %v196
      %v400 = vmul.f32 %v197, %v197
      %v401 = vmul.f32 %v198, %v198
      %v402 = vmul.f32 %v199, %v199
      %v403 = vsel %vm201, %v339, 0.0
      %v404 = vsel %vm201, %v340, 0.0
      %v405 = vadd.f32 %v403, %v404
      %v406 = vsel %vm201, %v341, 0.0
      %v407 = vadd.f32 %v405, %v406
      %v408 = vsel %vm201, %v342, 0.0
      %v409 = vadd.f32 %v407, %v408
      %v410 = vsel %vm201, %v343, 0.0
      %v411 = vadd.f32 %v409, %v410
      %v412 = vsel %vm201, %v344, 0.0
      %v413 = vadd.f32 %v411, %v412
      %v414 = vsel %vm201, %v345, 0.0
      %v415 = vadd.f32 %v413, %v414
      %v416 = vsel %vm201, %v346, 0.0
      %v417 = vadd.f32 %v415, %v416
      %v418 = vsel %vm201, %v347, 0.0
      %v419 = vadd.f32 %v417, %v418
      %v420 = vsel %vm201, %v348, 0.0
      %v421 = vadd.f32 %v419, %v420
      %v422 = vsel %vm201, %v349, 0.0
      %v423 = vadd.f32 %v421, %v422
      %v424 = vsel %vm201, %v350, 0.0
      %v425 = vadd.f32 %v423, %v424
      %v426 = vsel %vm201, %v351, 0.0
      %v427 = vadd.f32 %v425, %v426
      %v428 = vsel %vm201, %v352, 0.0
      %v429 = vadd.f32 %v427, %v428
      %v430 = vsel %vm201, %v353, 0.0
      %v431 = vadd.f32 %v429, %v430
      %v432 = vsel %vm201, %v354, 0.0
      %v433 = vadd.f32 %v431, %v432
      %v434 = vsel %vm201, %v355, 0.0
      %v435 = vadd.f32 %v433, %v434
      %v436 = vsel %vm201, %v356, 0.0
      %v437 = vadd.f32 %v435, %v436
      %v438 = vsel %vm201, %v357, 0.0
      %v439 = vadd.f32 %v437, %v438
      %v440 = vsel %vm201, %v358, 0.0
      %v441 = vadd.f32 %v439, %v440
      %v442 = vsel %vm201, %v359, 0.0
      %v443 = vadd.f32 %v441, %v442
      %v444 = vsel %vm201, %v360, 0.0
      %v445 = vadd.f32 %v443, %v444
      %v446 = vsel %vm201, %v361, 0.0
      %v447 = vadd.f32 %v445, %v446
      %v448 = vsel %vm201, %v362, 0.0
      %v449 = vadd.f32 %v447, %v448
      %v450 = vsel %vm201, %v363, 0.0
      %v451 = vadd.f32 %v449, %v450
      %v452 = vsel %vm201, %v364, 0.0
      %v453 = vadd.f32 %v451, %v452
      %v454 = vsel %vm201, %v365, 0.0
      %v455 = vadd.f32 %v453, %v454
      %v456 = vsel %vm201, %v366, 0.0
      %v457 = vadd.f32 %v455, %v456
      %v458 = vsel %vm201, %v367, 0.0
      %v459 = vadd.f32 %v457, %v458
      %v460 = vsel %vm201, %v368, 0.0
      %v461 = vadd.f32 %v459, %v460
      %v462 = vsel %vm201, %v369, 0.0
      %v463 = vadd.f32 %v461, %v462
      %v464 = vsel %vm201, %v370, 0.0
      %v465 = vadd.f32 %v463, %v464
      %v466 = vsel %vm201, %v371, 0.0
      %v467 = vadd.f32 %v465, %v466
      %v468 = vsel %vm201, %v372, 0.0
      %v469 = vadd.f32 %v467, %v468
      %v470 = vsel %vm201, %v373, 0.0
      %v471 = vadd.f32 %v469, %v470
      %v472 = vsel %vm201, %v374, 0.0
      %v473 = vadd.f32 %v471, %v472
      %v474 = vsel %vm201, %v375, 0.0
      %v475 = vadd.f32 %v473, %v474
      %v476 = vsel %vm201, %v376, 0.0
      %v477 = vadd.f32 %v475, %v476
      %v478 = vsel %vm201, %v377, 0.0
      %v479 = vadd.f32 %v477, %v478
      %v480 = vsel %vm201, %v378, 0.0
      %v481 = vadd.f32 %v479, %v480
      %v482 = vsel %vm201, %v379, 0.0
      %v483 = vadd.f32 %v481, %v482
      %v484 = vsel %vm201, %v380, 0.0
      %v485 = vadd.f32 %v483, %v484
      %v486 = vsel %vm201, %v381, 0.0
      %v487 = vadd.f32 %v485, %v486
      %v488 = vsel %vm201, %v382, 0.0
      %v489 = vadd.f32 %v487, %v488
      %v490 = vsel %vm201, %v383, 0.0
      %v491 = vadd.f32 %v489, %v490
      %v492 = vsel %vm201, %v384, 0.0
      %v493 = vadd.f32 %v491, %v492
      %v494 = vsel %vm201, %v385, 0.0
      %v495 = vadd.f32 %v493, %v494
      %v496 = vsel %vm201, %v386, 0.0
      %v497 = vadd.f32 %v495, %v496
      %v498 = vsel %vm201, %v387, 0.0
      %v499 = vadd.f32 %v497, %v498
      %v500 = vsel %vm201, %v388, 0.0
      %v501 = vadd.f32 %v499, %v500
      %v502 = vsel %vm201, %v389, 0.0
      %v503 = vadd.f32 %v501, %v502
      %v504 = vsel %vm201, %v390, 0.0
      %v505 = vadd.f32 %v503, %v504
      %v506 = vsel %vm201, %v391, 0.0
      %v507 = vadd.f32 %v505, %v506
      %v508 = vsel %vm201, %v392, 0.0
      %v509 = vadd.f32 %v507, %v508
      %v510 = vsel %vm201, %v393, 0.0
      %v511 = vadd.f32 %v509, %v510
      %v512 = vsel %vm201, %v394, 0.0
      %v513 = vadd.f32 %v511, %v512
      %v514 = vsel %vm201, %v395, 0.0
      %v515 = vadd.f32 %v513, %v514
      %v516 = vsel %vm201, %v396, 0.0
      %v517 = vadd.f32 %v515, %v516
      %v518 = vsel %vm201, %v397, 0.0
      %v519 = vadd.f32 %v517, %v518
      %v520 = vsel %vm201, %v398, 0.0
      %v521 = vadd.f32 %v519, %v520
      %v522 = vsel %vm201, %v399, 0.0
      %v523 = vadd.f32 %v521, %v522
      %v524 = vsel %vm201, %v400, 0.0
      %v525 = vadd.f32 %v523, %v524
      %v526 = vsel %vm201, %v401, 0.0
      %v527 = vadd.f32 %v525, %v526
      %v528 = vsel %vm201, %v402, 0.0
      %v529 = vadd.f32 %v527, %v528
      %v530 = vrot.slane %v529, 4
      %v531 = vadd.f32 %v529, %v530
      %v532 = vrot.slane %v531, 2
      %v533 = vadd.f32 %v531, %v532
      %v534 = vrot.slane %v533, 1
      %v535 = vadd.f32 %v533, %v534
      %v536 = vadd.f32 %v338, %v535
      %537 = vst.msk [vmem:[#allocation3] sm:$0x1] %vm336, %v536
      %p538 = scmp.eq.s32.totalorder %s14, 1
      // Predicated region
      $region29: #{output_pallas.2} parent=23 // pred_check
        %p539 = pneg %p538
      $region30: #{output_pallas.2} parent=23 // pred_check_branch
        %541 = sbr.rel (%p539) target = $region32
      $region31: #{output_pallas.2} parent=23 // pred_region
        %v542 = vld [vmem:[#allocation2] sm:$0x1]
        %543 = vst.msk [vmem:[%s1] sm:$0x1] %vm336, %v542
        %v544 = vld [vmem:[#allocation3] sm:$0x1]
        %545 = vst.msk [vmem:[%s2] sm:$0x1] %vm336, %v544
      $region32: #{output_pallas.2} parent=23 // pred_fallthru
        _
      // Predicated region
      $region33: #{output_pallas.2} parent=23 // pred_check
        %p546 = pneg %p53
      $region34: #{output_pallas.2} parent=23 // pred_check_branch
        %548 = sbr.rel (%p546) target = $region36
      $region35: #{output_pallas.2} parent=23 // pred_region
        _
      $region36: #{output_pallas.2} parent=23 // pred_fallthru
        _
      // Predicated region
      $region37: #{output_pallas.2} parent=23 // pred_check
        %p549 = pneg %p74
      $region38: #{output_pallas.2} parent=23 // pred_check_branch
        %551 = sbr.rel (%p549) target = $region40
      $region39: #{output_pallas.2} parent=23 // pred_region
        _
      $region40: #{output_pallas.2} parent=23 // pred_fallthru
        _
      // Predicated region
      $region41: #{output_pallas.2} parent=23 // pred_check
        %p552 = pneg %p53
      $region42: #{output_pallas.2} parent=23 // pred_check_branch
        %554 = sbr.rel (%p552) target = $region44
      $region43: #{output_pallas.2} parent=23 // pred_region
        _
      $region44: #{output_pallas.2} parent=23 // pred_fallthru
        _
      // Predicated region
      $region45: #{output_pallas.2} parent=23 // pred_check
        %p555 = pneg %p74
      $region46: #{output_pallas.2} parent=23 // pred_check_branch
        %557 = sbr.rel (%p555) target = $region48
      $region47: #{output_pallas.2} parent=23 // pred_region
        _
      $region48: #{output_pallas.2} parent=23 // pred_fallthru
        _
    $region24: #{output_pallas.2} parent=5 // pred_fallthru
      _
    %p558 = scmp.le.s32.totalorder 2, %s9
    // Predicated region
    $region49: #{output_pallas.2} parent=5 // pred_check
      %p559 = pneg %p558
    $region50: #{output_pallas.2} parent=5 // pred_check_branch
      %561 = sbr.rel (%p559) target = $region52
    $region51: #{output_pallas.2} parent=5 // pred_region
      %s562 = ssub.s32 %s9, 2
    $region52: #{output_pallas.2} parent=5 // pred_fallthru
      _
  $region6: #{output_pallas.2} parent=0 // loop_footer
    %s13 = sadd.s32 1, %s9
  $region7: #{output_pallas.2} parent=0 // loop_footer_branch
    %8 = sbr.rel target = $region3
  $region8: #{output_pallas.2} parent=0 // loop_exit
    _

// kernel: output_pallas.3
$region0: #{output_pallas.3}
  #allocation0 [shape = 'u32[]', space=smem, size = 0x4, offset = 0x4, fixed_abs, tag = 'smem constant byte address 0x4 - core index']
  #allocation1 [shape = 'u32[144,128]{1,0:T(1,128)}', space=vmem, size = 0x12000, scoped, tag = 'internal scratch']
  #allocation2 [shape = 'f32[3,104,4]{2,1,0:T(8,128)}', space=vmem, size = 0x27000, scoped, tag = 'scratch operand']
  %s0 = inlined_call_operand.vmem [shape: f32[2,10,104,4], index: 0, kind: input, shape index: {}, may-alias: {0,1,2}]
  %s1 = inlined_call_operand.vmem [shape: f32[2,10,104,4], index: 1, kind: input, shape index: {}, may-alias: {0,1,2}]
  %s2 = inlined_call_operand.vmem [shape: f32[2,10,104,4], index: 2, kind: input, shape index: {}, may-alias: {0,1,2}]
  %s3 = inlined_call_operand.vmem [shape: f32[104,1], index: 3, kind: input, shape index: {}]
  %s4 = inlined_call_operand.vmem [shape: f32[1,4], index: 4, kind: input, shape index: {}]
  %s5 = inlined_call_operand.vmem [shape: f32[1,4], index: 5, kind: input, shape index: {}]
  %s6 = inlined_call_operand.vmem [shape: f32[108,2], index: 6, kind: input, shape index: {}]
  %s7 = inlined_call_operand.vmem [shape: f32[2,8,80,2], index: 7, kind: output, shape index: {}]
  %s8 = sld [smem:[#allocation0]]
  $region61: #{output_pallas.3} parent=0
    _
  %s10 = ssub.s32 1, %s8
  %s11 = scalar_select 0, %s10, %s8
  loop: start=0, step=1, limit=18
  $region2: #{output_pallas.3} parent=0 // loop_pre_header
    _
  $region3: #{output_pallas.3} parent=0 // loop_header
    %s13 = sphi 0, %s17
    %p14 = scmp.ge.s32.totalorder %s13, 18
    %s20 = sphi 0, %s32
    %s21 = sphi 0, %s28
    %s22 = sphi 0, %s20
    %s23 = sphi 0, %s21
    %s24 = sphi 0, %s22
    %s25 = sphi 0, %s23
    %s37 = sphi 0, %s39
    %s40 = sphi 0, %s37
    %s41 = sphi 0, %s40
    %s57 = sphi 0, %s41
    %s67 = sphi 0, %s69
    %s70 = sphi 0, %s67
    %s71 = sphi 0, %s70
    %s87 = sphi 0, %s71
    %s97 = sphi 0, %s99
    %s100 = sphi 0, %s97
    %s101 = sphi 0, %s100
    %s117 = sphi 0, %s101
    %s121 = sphi 0, %s121
    %s123 = sphi 0, %s121
    %s124 = sphi 0, %s123
    %s138 = sphi 0, %s124
    %s142 = sphi 0, %s142
    %s144 = sphi 0, %s142
    %s145 = sphi 0, %s144
    %s159 = sphi 0, %s145
    %s163 = sphi 0, %s163
    %s165 = sphi 0, %s163
    %s166 = sphi 0, %s165
    %s180 = sphi 0, %s166
    %s184 = sphi 0, %s184
    %s186 = sphi 0, %s184
    %s187 = sphi 0, %s186
    %s201 = sphi 0, %s187
    %s209 = sphi 0, %s211
    %s212 = sphi 0, %s209
    %s213 = sphi 0, %s212
    %s229 = sphi 0, %s213
  $region4: #{output_pallas.3} parent=0 // loop_header_branch
    %16 = sbr.rel (%p14) target = $region8
  $region5: #{output_pallas.3} parent=0 // loop_body
    %s18 = ssub.s32 %s13, 1
    %s19 = ssub.s32 %s13, 2
    %s26 = sadd.s32 1, %s21
    %p27 = scmp.ge.s32.totalorder %s26, 8
    %s28 = scalar_select %p27, 0, %s26
    %s29 = sadd.s32 1, %s20
    %s30 = scalar_select %p27, %s29, %s20
    %p31 = scmp.ge.s32.totalorder %s30, 2
    %s32 = scalar_select %p31, 0, %s30
    %s33 = ssub.s32 %s20, %s32
    %s34 = ssub.s32 %s21, %s28
    %s35 = sor.u32 %s33, %s34
    %p36 = scmp.eq.s32.totalorder %s35, 0
    %s38 = sadd.s32 %s37, 1
    %s39 = scalar_select %p36, %s37, %s38
    %p42 = pneg %p36
    %p43 = scmp.eq.s32.totalorder %s13, 15
    %p44 = por %p42, %p43
    %p45 = scmp.ne.s32.totalorder %s37, %s40
    %p46 = scmp.eq.s32.totalorder %s13, 0
    %p47 = por %p45, %p46
    %p48 = scmp.ne.s32.totalorder %s37, %s40
    %p49 = scmp.eq.s32.totalorder %s18, 15
    %p50 = por %p48, %p49
    %p51 = scmp.ne.s32.totalorder %s40, %s41
    %p52 = scmp.eq.s32.totalorder %s18, 0
    %p53 = por %p51, %p52
    %p54 = scmp.ne.s32.totalorder %s40, %s41
    %p55 = scmp.eq.s32.totalorder %s19, 15
    %p56 = por %p54, %p55
    %p58 = scmp.ne.s32.totalorder %s41, %s57
    %p59 = scmp.eq.s32.totalorder %s19, 0
    %p60 = por %p58, %p59
    %s61 = sadd.s32 %s21, 1
    %s62 = sadd.s32 %s28, 1
    %s63 = ssub.s32 %s20, %s32
    %s64 = ssub.s32 %s61, %s62
    %s65 = sor.u32 %s63, %s64
    %p66 = scmp.eq.s32.totalorder %s65, 0
    %s68 = sadd.s32 %s67, 1
    %s69 = scalar_select %p66, %s67, %s68
    %p72 = pneg %p66
    %p73 = scmp.eq.s32.totalorder %s13, 15
    %p74 = por %p72, %p73
    %p75 = scmp.ne.s32.totalorder %s67, %s70
    %p76 = scmp.eq.s32.totalorder %s13, 0
    %p77 = por %p75, %p76
    %p78 = scmp.ne.s32.totalorder %s67, %s70
    %p79 = scmp.eq.s32.totalorder %s18, 15
    %p80 = por %p78, %p79
    %p81 = scmp.ne.s32.totalorder %s70, %s71
    %p82 = scmp.eq.s32.totalorder %s18, 0
    %p83 = por %p81, %p82
    %p84 = scmp.ne.s32.totalorder %s70, %s71
    %p85 = scmp.eq.s32.totalorder %s19, 15
    %p86 = por %p84, %p85
    %p88 = scmp.ne.s32.totalorder %s71, %s87
    %p89 = scmp.eq.s32.totalorder %s19, 0
    %p90 = por %p88, %p89
    %s91 = sadd.s32 %s21, 2
    %s92 = sadd.s32 %s28, 2
    %s93 = ssub.s32 %s20, %s32
    %s94 = ssub.s32 %s91, %s92
    %s95 = sor.u32 %s93, %s94
    %p96 = scmp.eq.s32.totalorder %s95, 0
    %s98 = sadd.s32 %s97, 1
    %s99 = scalar_select %p96, %s97, %s98
    %p102 = pneg %p96
    %p103 = scmp.eq.s32.totalorder %s13, 15
    %p104 = por %p102, %p103
    %p105 = scmp.ne.s32.totalorder %s97, %s100
    %p106 = scmp.eq.s32.totalorder %s13, 0
    %p107 = por %p105, %p106
    %p108 = scmp.ne.s32.totalorder %s97, %s100
    %p109 = scmp.eq.s32.totalorder %s18, 15
    %p110 = por %p108, %p109
    %p111 = scmp.ne.s32.totalorder %s100, %s101
    %p112 = scmp.eq.s32.totalorder %s18, 0
    %p113 = por %p111, %p112
    %p114 = scmp.ne.s32.totalorder %s100, %s101
    %p115 = scmp.eq.s32.totalorder %s19, 15
    %p116 = por %p114, %p115
    %p118 = scmp.ne.s32.totalorder %s101, %s117
    %p119 = scmp.eq.s32.totalorder %s19, 0
    %p120 = por %p118, %p119
    %s122 = sadd.s32 %s121, 1
    %p125 = scmp.eq.s32.totalorder %s13, 15
    %p126 = scmp.ne.s32.totalorder %s121, %s123
    %p127 = scmp.eq.s32.totalorder %s13, 0
    %p128 = por %p126, %p127
    %p129 = scmp.ne.s32.totalorder %s121, %s123
    %p130 = scmp.eq.s32.totalorder %s18, 15
    %p131 = por %p129, %p130
    %p132 = scmp.ne.s32.totalorder %s123, %s124
    %p133 = scmp.eq.s32.totalorder %s18, 0
    %p134 = por %p132, %p133
    %p135 = scmp.ne.s32.totalorder %s123, %s124
    %p136 = scmp.eq.s32.totalorder %s19, 15
    %p137 = por %p135, %p136
    %p139 = scmp.ne.s32.totalorder %s124, %s138
    %p140 = scmp.eq.s32.totalorder %s19, 0
    %p141 = por %p139, %p140
    %s143 = sadd.s32 %s142, 1
    %p146 = scmp.eq.s32.totalorder %s13, 15
    %p147 = scmp.ne.s32.totalorder %s142, %s144
    %p148 = scmp.eq.s32.totalorder %s13, 0
    %p149 = por %p147, %p148
    %p150 = scmp.ne.s32.totalorder %s142, %s144
    %p151 = scmp.eq.s32.totalorder %s18, 15
    %p152 = por %p150, %p151
    %p153 = scmp.ne.s32.totalorder %s144, %s145
    %p154 = scmp.eq.s32.totalorder %s18, 0
    %p155 = por %p153, %p154
    %p156 = scmp.ne.s32.totalorder %s144, %s145
    %p157 = scmp.eq.s32.totalorder %s19, 15
    %p158 = por %p156, %p157
    %p160 = scmp.ne.s32.totalorder %s145, %s159
    %p161 = scmp.eq.s32.totalorder %s19, 0
    %p162 = por %p160, %p161
    %s164 = sadd.s32 %s163, 1
    %p167 = scmp.eq.s32.totalorder %s13, 15
    %p168 = scmp.ne.s32.totalorder %s163, %s165
    %p169 = scmp.eq.s32.totalorder %s13, 0
    %p170 = por %p168, %p169
    %p171 = scmp.ne.s32.totalorder %s163, %s165
    %p172 = scmp.eq.s32.totalorder %s18, 15
    %p173 = por %p171, %p172
    %p174 = scmp.ne.s32.totalorder %s165, %s166
    %p175 = scmp.eq.s32.totalorder %s18, 0
    %p176 = por %p174, %p175
    %p177 = scmp.ne.s32.totalorder %s165, %s166
    %p178 = scmp.eq.s32.totalorder %s19, 15
    %p179 = por %p177, %p178
    %p181 = scmp.ne.s32.totalorder %s166, %s180
    %p182 = scmp.eq.s32.totalorder %s19, 0
    %p183 = por %p181, %p182
    %s185 = sadd.s32 %s184, 1
    %p188 = scmp.eq.s32.totalorder %s13, 15
    %p189 = scmp.ne.s32.totalorder %s184, %s186
    %p190 = scmp.eq.s32.totalorder %s13, 0
    %p191 = por %p189, %p190
    %p192 = scmp.ne.s32.totalorder %s184, %s186
    %p193 = scmp.eq.s32.totalorder %s18, 15
    %p194 = por %p192, %p193
    %p195 = scmp.ne.s32.totalorder %s186, %s187
    %p196 = scmp.eq.s32.totalorder %s18, 0
    %p197 = por %p195, %p196
    %p198 = scmp.ne.s32.totalorder %s186, %s187
    %p199 = scmp.eq.s32.totalorder %s19, 15
    %p200 = por %p198, %p199
    %p202 = scmp.ne.s32.totalorder %s187, %s201
    %p203 = scmp.eq.s32.totalorder %s19, 0
    %p204 = por %p202, %p203
    %s205 = ssub.s32 %s20, %s32
    %s206 = ssub.s32 %s21, %s28
    %s207 = sor.u32 %s205, %s206
    %p208 = scmp.eq.s32.totalorder %s207, 0
    %s210 = sadd.s32 %s209, 1
    %s211 = scalar_select %p208, %s209, %s210
    %p214 = pneg %p208
    %p215 = scmp.eq.s32.totalorder %s13, 15
    %p216 = por %p214, %p215
    %p217 = scmp.ne.s32.totalorder %s209, %s212
    %p218 = scmp.eq.s32.totalorder %s13, 0
    %p219 = por %p217, %p218
    %p220 = scmp.ne.s32.totalorder %s209, %s212
    %p221 = scmp.eq.s32.totalorder %s18, 15
    %p222 = por %p220, %p221
    %p223 = scmp.ne.s32.totalorder %s212, %s213
    %p224 = scmp.eq.s32.totalorder %s18, 0
    %p225 = por %p223, %p224
    %p226 = scmp.ne.s32.totalorder %s212, %s213
    %p227 = scmp.eq.s32.totalorder %s19, 15
    %p228 = por %p226, %p227
    %p230 = scmp.ne.s32.totalorder %s213, %s229
    %p231 = scmp.eq.s32.totalorder %s19, 0
    %p232 = por %p230, %p231
    %p233 = scmp.le.s32.totalorder 1, %s13
    %p234 = scmp.lt.s32.totalorder %s13, 17
    %p235 = pnand %p233, %p234
    %p236 = pneg %p235
    // Predicated region
    $region9: #{output_pallas.3} parent=5 // pred_check
      _
    $region10: #{output_pallas.3} parent=5 // pred_check_branch
      %238 = sbr.rel (%p235) target = $region12
    $region11: #{output_pallas.3} parent=5 // pred_region
      %s239 = ssub.s32 %s13, 1
      // Predicated region
      $region13: #{output_pallas.3} parent=11 // pred_check
        %p240 = pneg %p134
      $region14: #{output_pallas.3} parent=11 // pred_check_branch
        %242 = sbr.rel (%p240) target = $region16
      $region15: #{output_pallas.3} parent=11 // pred_region
        _
      $region16: #{output_pallas.3} parent=11 // pred_fallthru
        _
      // Predicated region
      $region17: #{output_pallas.3} parent=11 // pred_check
        %p243 = pneg %p155
      $region18: #{output_pallas.3} parent=11 // pred_check_branch
        %245 = sbr.rel (%p243) target = $region20
      $region19: #{output_pallas.3} parent=11 // pred_region
        _
      $region20: #{output_pallas.3} parent=11 // pred_fallthru
        _
      // Predicated region
      $region21: #{output_pallas.3} parent=11 // pred_check
        %p246 = pneg %p176
      $region22: #{output_pallas.3} parent=11 // pred_check_branch
        %248 = sbr.rel (%p246) target = $region24
      $region23: #{output_pallas.3} parent=11 // pred_region
        _
      $region24: #{output_pallas.3} parent=11 // pred_fallthru
        _
      // Predicated region
      $region25: #{output_pallas.3} parent=11 // pred_check
        %p249 = pneg %p197
      $region26: #{output_pallas.3} parent=11 // pred_check_branch
        %251 = sbr.rel (%p249) target = $region28
      $region27: #{output_pallas.3} parent=11 // pred_region
        _
      $region28: #{output_pallas.3} parent=11 // pred_fallthru
        _
    $region12: #{output_pallas.3} parent=5 // pred_fallthru
      _
    %p252 = scmp.lt.s32.totalorder %s13, 16
    // Predicated region
    $region29: #{output_pallas.3} parent=5 // pred_check
      %p253 = pneg %p252
    $region30: #{output_pallas.3} parent=5 // pred_check_branch
      %255 = sbr.rel (%p253) target = $region32
    $region31: #{output_pallas.3} parent=5 // pred_region
      // Predicated region
      $region33: #{output_pallas.3} parent=31 // pred_check
        %p256 = pneg %p47
      $region34: #{output_pallas.3} parent=31 // pred_check_branch
        %258 = sbr.rel (%p256) target = $region36
      $region35: #{output_pallas.3} parent=31 // pred_region
        %p259 = scmp.lt.s32.totalorder %s20, 1
        %s260 = scalar_select %p259, %s20, 1
        %p261 = scmp.lt.s32.totalorder %s21, 9
        %s262 = scalar_select %p261, %s21, 9
        %s263 = smul.addr %s262, 13
        %s264 = smul.addr %s260, 130
        %s265 = sadd.s32 %s263, %s264
        %s266 = smul.addr %s265, 8
        %s267 = scalar_lea.vmem %s0, %s266
      $region36: #{output_pallas.3} parent=31 // pred_fallthru
        _
      // Predicated region
      $region37: #{output_pallas.3} parent=31 // pred_check
        %p268 = pneg %p77
      $region38: #{output_pallas.3} parent=31 // pred_check_branch
        %270 = sbr.rel (%p268) target = $region40
      $region39: #{output_pallas.3} parent=31 // pred_region
        %s271 = sadd.s32 %s21, 1
        %p272 = scmp.lt.s32.totalorder %s20, 1
        %s273 = scalar_select %p272, %s20, 1
        %p274 = scmp.lt.s32.totalorder %s271, 9
        %s275 = scalar_select %p274, %s271, 9
        %s276 = smul.addr %s275, 13
        %s277 = smul.addr %s273, 130
        %s278 = sadd.s32 %s276, %s277
        %s279 = smul.addr %s278, 8
        %s280 = scalar_lea.vmem %s1, %s279
        %s281 = sadd.s32 %s21, 1
      $region40: #{output_pallas.3} parent=31 // pred_fallthru
        _
      // Predicated region
      $region41: #{output_pallas.3} parent=31 // pred_check
        %p282 = pneg %p107
      $region42: #{output_pallas.3} parent=31 // pred_check_branch
        %284 = sbr.rel (%p282) target = $region44
      $region43: #{output_pallas.3} parent=31 // pred_region
        %s285 = sadd.s32 %s21, 2
        %p286 = scmp.lt.s32.totalorder %s20, 1
        %s287 = scalar_select %p286, %s20, 1
        %p288 = scmp.lt.s32.totalorder %s285, 9
        %s289 = scalar_select %p288, %s285, 9
        %s290 = smul.addr %s289, 13
        %s291 = smul.addr %s287, 130
        %s292 = sadd.s32 %s290, %s291
        %s293 = smul.addr %s292, 8
        %s294 = scalar_lea.vmem %s2, %s293
        %s295 = sadd.s32 %s21, 2
      $region44: #{output_pallas.3} parent=31 // pred_fallthru
        _
    $region32: #{output_pallas.3} parent=5 // pred_fallthru
      _
    %p296 = scmp.le.s32.totalorder 1, %s13
    %p297 = scmp.lt.s32.totalorder %s13, 17
    %p298 = pnand %p296, %p297
    %p299 = pneg %p298
    // Predicated region
    $region45: #{output_pallas.3} parent=5 // pred_check
      _
    $region46: #{output_pallas.3} parent=5 // pred_check_branch
      %301 = sbr.rel (%p298) target = $region48
    $region47: #{output_pallas.3} parent=5 // pred_region
      %s302 = ssub.s32 %s13, 1
      %p303 = scmp.lt.s32.totalorder %s22, 1
      %s304 = scalar_select %p303, %s22, 1
      %p305 = scmp.lt.s32.totalorder %s23, 9
      %s306 = scalar_select %p305, %s23, 9
      %s307 = smul.addr %s306, 13
      %s308 = smul.addr %s304, 130
      %s309 = sadd.s32 %s307, %s308
      %s310 = smul.addr %s309, 8
      %s311 = scalar_lea.vmem %s0, %s310
      %p312 = pneg %p53
      %p313 = pneg %p50
      %s314 = sadd.s32 %s23, 1
      %p315 = scmp.lt.s32.totalorder %s22, 1
      %s316 = scalar_select %p315, %s22, 1
      %p317 = scmp.lt.s32.totalorder %s314, 9
      %s318 = scalar_select %p317, %s314, 9
      %s319 = smul.addr %s318, 13
      %s320 = smul.addr %s316, 130
      %s321 = sadd.s32 %s319, %s320
      %s322 = smul.addr %s321, 8
      %s323 = scalar_lea.vmem %s1, %s322
      %p324 = pneg %p83
      %p325 = pneg %p80
      %s326 = sadd.s32 %s23, 2
      %p327 = scmp.lt.s32.totalorder %s22, 1
      %s328 = scalar_select %p327, %s22, 1
      %p329 = scmp.lt.s32.totalorder %s326, 9
      %s330 = scalar_select %p329, %s326, 9
      %s331 = smul.addr %s330, 13
      %s332 = smul.addr %s328, 130
      %s333 = sadd.s32 %s331, %s332
      %s334 = smul.addr %s333, 8
      %s335 = scalar_lea.vmem %s2, %s334
      %p336 = pneg %p113
      %p337 = pneg %p110
      %p338 = pneg %p134
      %p339 = pneg %p131
      %p340 = pneg %p155
      %p341 = pneg %p152
      %p342 = pneg %p176
      %p343 = pneg %p173
      %p344 = pneg %p197
      %p345 = pneg %p194
      %p346 = pneg %p225
      %p347 = pneg %p222
      %p348 = scmp.lt.s32.totalorder %s22, 1
      %s349 = scalar_select %p348, %s22, 1
      %p350 = scmp.lt.s32.totalorder %s23, 7
      %s351 = scalar_select %p350, %s23, 7
      %s352 = smul.addr %s351, 10
      %s353 = smul.addr %s349, 80
      %s354 = sadd.s32 %s352, %s353
      %s355 = smul.addr %s354, 8
      %s356 = scalar_lea.vmem %s7, %s355
      %p357 = scmp.lt.s32.totalorder %s22, 1
      %s358 = scalar_select %p357, %s22, 1
      %p359 = scmp.lt.s32.totalorder %s23, 9
      %s360 = scalar_select %p359, %s23, 9
      %s361 = smul.addr %s360, 13
      %s362 = smul.addr %s358, 130
      %s363 = sadd.s32 %s361, %s362
      %s364 = smul.addr %s363, 8
      %s365 = scalar_lea.vmem %s0, %s364
      %s366 = sadd.s32 %s23, 1
      %p367 = scmp.lt.s32.totalorder %s22, 1
      %s368 = scalar_select %p367, %s22, 1
      %p369 = scmp.lt.s32.totalorder %s366, 9
      %s370 = scalar_select %p369, %s366, 9
      %s371 = smul.addr %s370, 13
      %s372 = smul.addr %s368, 130
      %s373 = sadd.s32 %s371, %s372
      %s374 = smul.addr %s373, 8
      %s375 = scalar_lea.vmem %s1, %s374
      %s376 = sadd.s32 %s23, 1
      %s377 = sadd.s32 %s23, 2
      %p378 = scmp.lt.s32.totalorder %s22, 1
      %s379 = scalar_select %p378, %s22, 1
      %p380 = scmp.lt.s32.totalorder %s377, 9
      %s381 = scalar_select %p380, %s377, 9
      %s382 = smul.addr %s381, 13
      %s383 = smul.addr %s379, 130
      %s384 = sadd.s32 %s382, %s383
      %s385 = smul.addr %s384, 8
      %s386 = scalar_lea.vmem %s2, %s385
      %s387 = sadd.s32 %s23, 2
      %p388 = scmp.lt.s32.totalorder %s22, 1
      %s389 = scalar_select %p388, %s22, 1
      %p390 = scmp.lt.s32.totalorder %s23, 7
      %s391 = scalar_select %p390, %s23, 7
      %s392 = smul.addr %s391, 10
      %s393 = smul.addr %s389, 80
      %s394 = sadd.s32 %s392, %s393
      %s395 = smul.addr %s394, 8
      %s396 = scalar_lea.vmem %s7, %s395
      %v397 = vld [vmem:[%s4] sm:$0x1]
      %v398 = vld [vmem:[%s5] sm:$0x1]
      %v399 = vld [vmem:[%s3] sm:$0xff]
      %v400 = vld [vmem:[%s3 + $0x8] sm:$0xff]
      %v401 = vld [vmem:[%s3 + $0x10] sm:$0xff]
      %v402 = vld [vmem:[%s3 + $0x18] sm:$0xff]
      %v403 = vld [vmem:[%s3 + $0x20] sm:$0xff]
      %v404 = vld [vmem:[%s3 + $0x28] sm:$0xff]
      %v405 = vld [vmem:[%s3 + $0x30] sm:$0xff]
      %v406 = vld [vmem:[%s3 + $0x38] sm:$0xff]
      %v407 = vld [vmem:[%s3 + $0x40] sm:$0xff]
      %v408 = vld [vmem:[%s3 + $0x48] sm:$0xff]
      %v409 = vld [vmem:[%s3 + $0x50] sm:$0xff]
      %v410 = vld [vmem:[%s3 + $0x58] sm:$0xff]
      %v411 = vld [vmem:[%s3 + $0x60] sm:$0xff]
      %p412 = scmp.gt.s32.totalorder %s23, 0
      %s413 = scalar_select %p412, 1.0, 0.0
      %p414 = scmp.lt.s32.totalorder %s23, 7
      %s415 = scalar_select %p414, 1.0, 0.0
      %v416 = vld [vmem:[%s365] sm:$0xff]
      %v417 = vld [vmem:[%s365 + $0x8] sm:$0xff]
      %v418 = vld [vmem:[%s365 + $0x10] sm:$0xff]
      %v419 = vld [vmem:[%s365 + $0x18] sm:$0xff]
      %v420 = vld [vmem:[%s365 + $0x20] sm:$0xff]
      %v421 = vld [vmem:[%s365 + $0x28] sm:$0xff]
      %v422 = vld [vmem:[%s365 + $0x30] sm:$0xff]
      %v423 = vld [vmem:[%s365 + $0x38] sm:$0xff]
      %v424 = vld [vmem:[%s365 + $0x40] sm:$0xff]
      %v425 = vld [vmem:[%s365 + $0x48] sm:$0xff]
      %v426 = vld [vmem:[%s365 + $0x50] sm:$0xff]
      %v427 = vld [vmem:[%s365 + $0x58] sm:$0xff]
      %v428 = vld [vmem:[%s365 + $0x60] sm:$0xff]
      %v430 = vlaneseq
      %v431 = vshrl.u32 %v430, 7
      %v432 = vsub.s32 0, %v431
      %v433 = vrot.slane %v397, %v432
      %v435 = vmul.f32 %v416, %v433
      %v436 = vmul.f32 %v417, %v433
      %v437 = vmul.f32 %v418, %v433
      %v438 = vmul.f32 %v419, %v433
      %v439 = vmul.f32 %v420, %v433
      %v440 = vmul.f32 %v421, %v433
      %v441 = vmul.f32 %v422, %v433
      %v442 = vmul.f32 %v423, %v433
      %v443 = vmul.f32 %v424, %v433
      %v444 = vmul.f32 %v425, %v433
      %v445 = vmul.f32 %v426, %v433
      %v446 = vmul.f32 %v427, %v433
      %v447 = vmul.f32 %v428, %v433
      %v449 = vlaneseq
      %v450 = vshrl.u32 %v449, 7
      %v451 = vsub.s32 0, %v450
      %v452 = vrot.slane %v398, %v451
      %v454 = vadd.f32 %v435, %v452
      %v455 = vadd.f32 %v436, %v452
      %v456 = vadd.f32 %v437, %v452
      %v457 = vadd.f32 %v438, %v452
      %v458 = vadd.f32 %v439, %v452
      %v459 = vadd.f32 %v440, %v452
      %v460 = vadd.f32 %v441, %v452
      %v461 = vadd.f32 %v442, %v452
      %v462 = vadd.f32 %v443, %v452
      %v463 = vadd.f32 %v444, %v452
      %v464 = vadd.f32 %v445, %v452
      %v465 = vadd.f32 %v446, %v452
      %v466 = vadd.f32 %v447, %v452
      %v467 = vmax.f32 %v454, 0.0
      %v468 = vmax.f32 %v455, 0.0
      %v469 = vmax.f32 %v456, 0.0
      %v470 = vmax.f32 %v457, 0.0
      %v471 = vmax.f32 %v458, 0.0
      %v472 = vmax.f32 %v459, 0.0
      %v473 = vmax.f32 %v460, 0.0
      %v474 = vmax.f32 %v461, 0.0
      %v475 = vmax.f32 %v462, 0.0
      %v476 = vmax.f32 %v463, 0.0
      %v477 = vmax.f32 %v464, 0.0
      %v478 = vmax.f32 %v465, 0.0
      %v479 = vmax.f32 %v466, 0.0
      %v480 = vstv %s413
      %v481 = vmul.f32 %v399, %v480
      %v482 = vmul.f32 %v400, %v480
      %v483 = vmul.f32 %v401, %v480
      %v484 = vmul.f32 %v402, %v480
      %v485 = vmul.f32 %v403, %v480
      %v486 = vmul.f32 %v404, %v480
      %v487 = vmul.f32 %v405, %v480
      %v488 = vmul.f32 %v406, %v480
      %v489 = vmul.f32 %v407, %v480
      %v490 = vmul.f32 %v408, %v480
      %v491 = vmul.f32 %v409, %v480
      %v492 = vmul.f32 %v410, %v480
      %v493 = vmul.f32 %v411, %v480
      %495 = vset.pattern.permute.xlu0 0
      %496 = vperm.xlu0 %495, %v481
      %v497 = vpop.permute.xlu0 %496
      %500 = vset.pattern.permute.xlu0 0
      %501 = vperm.xlu0 %500, %v482
      %v502 = vpop.permute.xlu0 %501
      %505 = vset.pattern.permute.xlu0 0
      %506 = vperm.xlu0 %505, %v483
      %v507 = vpop.permute.xlu0 %506
      %510 = vset.pattern.permute.xlu0 0
      %511 = vperm.xlu0 %510, %v484
      %v512 = vpop.permute.xlu0 %511
      %515 = vset.pattern.permute.xlu0 0
      %516 = vperm.xlu0 %515, %v485
      %v517 = vpop.permute.xlu0 %516
      %520 = vset.pattern.permute.xlu0 0
      %521 = vperm.xlu0 %520, %v486
      %v522 = vpop.permute.xlu0 %521
      %525 = vset.pattern.permute.xlu0 0
      %526 = vperm.xlu0 %525, %v487
      %v527 = vpop.permute.xlu0 %526
      %530 = vset.pattern.permute.xlu0 0
      %531 = vperm.xlu0 %530, %v488
      %v532 = vpop.permute.xlu0 %531
      %535 = vset.pattern.permute.xlu0 0
      %536 = vperm.xlu0 %535, %v489
      %v537 = vpop.permute.xlu0 %536
      %540 = vset.pattern.permute.xlu0 0
      %541 = vperm.xlu0 %540, %v490
      %v542 = vpop.permute.xlu0 %541
      %545 = vset.pattern.permute.xlu0 0
      %546 = vperm.xlu0 %545, %v491
      %v547 = vpop.permute.xlu0 %546
      %550 = vset.pattern.permute.xlu0 0
      %551 = vperm.xlu0 %550, %v492
      %v552 = vpop.permute.xlu0 %551
      %555 = vset.pattern.permute.xlu0 0
      %556 = vperm.xlu0 %555, %v493
      %v557 = vpop.permute.xlu0 %556
      %v559 = vmul.f32 %v467, %v497
      %v560 = vmul.f32 %v468, %v502
      %v561 = vmul.f32 %v469, %v507
      %v562 = vmul.f32 %v470, %v512
      %v563 = vmul.f32 %v471, %v517
      %v564 = vmul.f32 %v472, %v522
      %v565 = vmul.f32 %v473, %v527
      %v566 = vmul.f32 %v474, %v532
      %v567 = vmul.f32 %v475, %v537
      %v568 = vmul.f32 %v476, %v542
      %v569 = vmul.f32 %v477, %v547
      %v570 = vmul.f32 %v478, %v552
      %v571 = vmul.f32 %v479, %v557
      %vm572 = vcmask 31744
      %573 = vst.msk [vmem:[#allocation2] sm:$0xff] %vm572, %v559
      %574 = vst.msk [vmem:[#allocation2 + $0x8] sm:$0xff] %vm572, %v560
      %575 = vst.msk [vmem:[#allocation2 + $0x10] sm:$0xff] %vm572, %v561
      %576 = vst.msk [vmem:[#allocation2 + $0x18] sm:$0xff] %vm572, %v562
      %577 = vst.msk [vmem:[#allocation2 + $0x20] sm:$0xff] %vm572, %v563
      %578 = vst.msk [vmem:[#allocation2 + $0x28] sm:$0xff] %vm572, %v564
      %579 = vst.msk [vmem:[#allocation2 + $0x30] sm:$0xff] %vm572, %v565
      %580 = vst.msk [vmem:[#allocation2 + $0x38] sm:$0xff] %vm572, %v566
      %581 = vst.msk [vmem:[#allocation2 + $0x40] sm:$0xff] %vm572, %v567
      %582 = vst.msk [vmem:[#allocation2 + $0x48] sm:$0xff] %vm572, %v568
      %583 = vst.msk [vmem:[#allocation2 + $0x50] sm:$0xff] %vm572, %v569
      %584 = vst.msk [vmem:[#allocation2 + $0x58] sm:$0xff] %vm572, %v570
      %585 = vst.msk [vmem:[#allocation2 + $0x60] sm:$0xff] %vm572, %v571
      %v586 = vld [vmem:[%s375] sm:$0xff]
      %v587 = vld [vmem:[%s375 + $0x8] sm:$0xff]
      %v588 = vld [vmem:[%s375 + $0x10] sm:$0xff]
      %v589 = vld [vmem:[%s375 + $0x18] sm:$0xff]
      %v590 = vld [vmem:[%s375 + $0x20] sm:$0xff]
      %v591 = vld [vmem:[%s375 + $0x28] sm:$0xff]
      %v592 = vld [vmem:[%s375 + $0x30] sm:$0xff]
      %v593 = vld [vmem:[%s375 + $0x38] sm:$0xff]
      %v594 = vld [vmem:[%s375 + $0x40] sm:$0xff]
      %v595 = vld [vmem:[%s375 + $0x48] sm:$0xff]
      %v596 = vld [vmem:[%s375 + $0x50] sm:$0xff]
      %v597 = vld [vmem:[%s375 + $0x58] sm:$0xff]
      %v598 = vld [vmem:[%s375 + $0x60] sm:$0xff]
      %v599 = vmul.f32 %v586, %v433
      %v600 = vmul.f32 %v587, %v433
      %v601 = vmul.f32 %v588, %v433
      %v602 = vmul.f32 %v589, %v433
      %v603 = vmul.f32 %v590, %v433
      %v604 = vmul.f32 %v591, %v433
      %v605 = vmul.f32 %v592, %v433
      %v606 = vmul.f32 %v593, %v433
      %v607 = vmul.f32 %v594, %v433
      %v608 = vmul.f32 %v595, %v433
      %v609 = vmul.f32 %v596, %v433
      %v610 = vmul.f32 %v597, %v433
      %v611 = vmul.f32 %v598, %v433
      %v612 = vadd.f32 %v599, %v452
      %v613 = vadd.f32 %v600, %v452
      %v614 = vadd.f32 %v601, %v452
      %v615 = vadd.f32 %v602, %v452
      %v616 = vadd.f32 %v603, %v452
      %v617 = vadd.f32 %v604, %v452
      %v618 = vadd.f32 %v605, %v452
      %v619 = vadd.f32 %v606, %v452
      %v620 = vadd.f32 %v607, %v452
      %v621 = vadd.f32 %v608, %v452
      %v622 = vadd.f32 %v609, %v452
      %v623 = vadd.f32 %v610, %v452
      %v624 = vadd.f32 %v611, %v452
      %v625 = vmax.f32 %v612, 0.0
      %v626 = vmax.f32 %v613, 0.0
      %v627 = vmax.f32 %v614, 0.0
      %v628 = vmax.f32 %v615, 0.0
      %v629 = vmax.f32 %v616, 0.0
      %v630 = vmax.f32 %v617, 0.0
      %v631 = vmax.f32 %v618, 0.0
      %v632 = vmax.f32 %v619, 0.0
      %v633 = vmax.f32 %v620, 0.0
      %v634 = vmax.f32 %v621, 0.0
      %v635 = vmax.f32 %v622, 0.0
      %v636 = vmax.f32 %v623, 0.0
      %v637 = vmax.f32 %v624, 0.0
      %639 = vset.pattern.permute.xlu0 0
      %640 = vperm.xlu0 %639, %v399
      %v641 = vpop.permute.xlu0 %640
      %644 = vset.pattern.permute.xlu0 0
      %645 = vperm.xlu0 %644, %v400
      %v646 = vpop.permute.xlu0 %645
      %649 = vset.pattern.permute.xlu0 0
      %650 = vperm.xlu0 %649, %v401
      %v651 = vpop.permute.xlu0 %650
      %654 = vset.pattern.permute.xlu0 0
      %655 = vperm.xlu0 %654, %v402
      %v656 = vpop.permute.xlu0 %655
      %659 = vset.pattern.permute.xlu0 0
      %660 = vperm.xlu0 %659, %v403
      %v661 = vpop.permute.xlu0 %660
      %664 = vset.pattern.permute.xlu0 0
      %665 = vperm.xlu0 %664, %v404
      %v666 = vpop.permute.xlu0 %665
      %669 = vset.pattern.permute.xlu0 0
      %670 = vperm.xlu0 %669, %v405
      %v671 = vpop.permute.xlu0 %670
      %674 = vset.pattern.permute.xlu0 0
      %675 = vperm.xlu0 %674, %v406
      %v676 = vpop.permute.xlu0 %675
      %679 = vset.pattern.permute.xlu0 0
      %680 = vperm.xlu0 %679, %v407
      %v681 = vpop.permute.xlu0 %680
      %684 = vset.pattern.permute.xlu0 0
      %685 = vperm.xlu0 %684, %v408
      %v686 = vpop.permute.xlu0 %685
      %689 = vset.pattern.permute.xlu0 0
      %690 = vperm.xlu0 %689, %v409
      %v691 = vpop.permute.xlu0 %690
      %694 = vset.pattern.permute.xlu0 0
      %695 = vperm.xlu0 %694, %v410
      %v696 = vpop.permute.xlu0 %695
      %699 = vset.pattern.permute.xlu0 0
      %700 = vperm.xlu0 %699, %v411
      %v701 = vpop.permute.xlu0 %700
      %v703 = vmul.f32 %v625, %v641
      %v704 = vmul.f32 %v626, %v646
      %v705 = vmul.f32 %v627, %v651
      %v706 = vmul.f32 %v628, %v656
      %v707 = vmul.f32 %v629, %v661
      %v708 = vmul.f32 %v630, %v666
      %v709 = vmul.f32 %v631, %v671
      %v710 = vmul.f32 %v632, %v676
      %v711 = vmul.f32 %v633, %v681
      %v712 = vmul.f32 %v634, %v686
      %v713 = vmul.f32 %v635, %v691
      %v714 = vmul.f32 %v636, %v696
      %v715 = vmul.f32 %v637, %v701
      %s716 = scalar_lea.vmem [#allocation2], 104
      %717 = vst.msk [vmem:[%s716] sm:$0xff] %vm572, %v703
      %718 = vst.msk [vmem:[%s716 + $0x8] sm:$0xff] %vm572, %v704
      %719 = vst.msk [vmem:[%s716 + $0x10] sm:$0xff] %vm572, %v705
      %720 = vst.msk [vmem:[%s716 + $0x18] sm:$0xff] %vm572, %v706
      %721 = vst.msk [vmem:[%s716 + $0x20] sm:$0xff] %vm572, %v707
      %722 = vst.msk [vmem:[%s716 + $0x28] sm:$0xff] %vm572, %v708
      %723 = vst.msk [vmem:[%s716 + $0x30] sm:$0xff] %vm572, %v709
      %724 = vst.msk [vmem:[%s716 + $0x38] sm:$0xff] %vm572, %v710
      %725 = vst.msk [vmem:[%s716 + $0x40] sm:$0xff] %vm572, %v711
      %726 = vst.msk [vmem:[%s716 + $0x48] sm:$0xff] %vm572, %v712
      %727 = vst.msk [vmem:[%s716 + $0x50] sm:$0xff] %vm572, %v713
      %728 = vst.msk [vmem:[%s716 + $0x58] sm:$0xff] %vm572, %v714
      %729 = vst.msk [vmem:[%s716 + $0x60] sm:$0xff] %vm572, %v715
      %v730 = vld [vmem:[%s386] sm:$0xff]
      %v731 = vld [vmem:[%s386 + $0x8] sm:$0xff]
      %v732 = vld [vmem:[%s386 + $0x10] sm:$0xff]
      %v733 = vld [vmem:[%s386 + $0x18] sm:$0xff]
      %v734 = vld [vmem:[%s386 + $0x20] sm:$0xff]
      %v735 = vld [vmem:[%s386 + $0x28] sm:$0xff]
      %v736 = vld [vmem:[%s386 + $0x30] sm:$0xff]
      %v737 = vld [vmem:[%s386 + $0x38] sm:$0xff]
      %v738 = vld [vmem:[%s386 + $0x40] sm:$0xff]
      %v739 = vld [vmem:[%s386 + $0x48] sm:$0xff]
      %v740 = vld [vmem:[%s386 + $0x50] sm:$0xff]
      %v741 = vld [vmem:[%s386 + $0x58] sm:$0xff]
      %v742 = vld [vmem:[%s386 + $0x60] sm:$0xff]
      %v743 = vmul.f32 %v730, %v433
      %v744 = vmul.f32 %v731, %v433
      %v745 = vmul.f32 %v732, %v433
      %v746 = vmul.f32 %v733, %v433
      %v747 = vmul.f32 %v734, %v433
      %v748 = vmul.f32 %v735, %v433
      %v749 = vmul.f32 %v736, %v433
      %v750 = vmul.f32 %v737, %v433
      %v751 = vmul.f32 %v738, %v433
      %v752 = vmul.f32 %v739, %v433
      %v753 = vmul.f32 %v740, %v433
      %v754 = vmul.f32 %v741, %v433
      %v755 = vmul.f32 %v742, %v433
      %v756 = vadd.f32 %v743, %v452
      %v757 = vadd.f32 %v744, %v452
      %v758 = vadd.f32 %v745, %v452
      %v759 = vadd.f32 %v746, %v452
      %v760 = vadd.f32 %v747, %v452
      %v761 = vadd.f32 %v748, %v452
      %v762 = vadd.f32 %v749, %v452
      %v763 = vadd.f32 %v750, %v452
      %v764 = vadd.f32 %v751, %v452
      %v765 = vadd.f32 %v752, %v452
      %v766 = vadd.f32 %v753, %v452
      %v767 = vadd.f32 %v754, %v452
      %v768 = vadd.f32 %v755, %v452
      %v769 = vmax.f32 %v756, 0.0
      %v770 = vmax.f32 %v757, 0.0
      %v771 = vmax.f32 %v758, 0.0
      %v772 = vmax.f32 %v759, 0.0
      %v773 = vmax.f32 %v760, 0.0
      %v774 = vmax.f32 %v761, 0.0
      %v775 = vmax.f32 %v762, 0.0
      %v776 = vmax.f32 %v763, 0.0
      %v777 = vmax.f32 %v764, 0.0
      %v778 = vmax.f32 %v765, 0.0
      %v779 = vmax.f32 %v766, 0.0
      %v780 = vmax.f32 %v767, 0.0
      %v781 = vmax.f32 %v768, 0.0
      %v782 = vstv %s415
      %v783 = vmul.f32 %v399, %v782
      %v784 = vmul.f32 %v400, %v782
      %v785 = vmul.f32 %v401, %v782
      %v786 = vmul.f32 %v402, %v782
      %v787 = vmul.f32 %v403, %v782
      %v788 = vmul.f32 %v404, %v782
      %v789 = vmul.f32 %v405, %v782
      %v790 = vmul.f32 %v406, %v782
      %v791 = vmul.f32 %v407, %v782
      %v792 = vmul.f32 %v408, %v782
      %v793 = vmul.f32 %v409, %v782
      %v794 = vmul.f32 %v410, %v782
      %v795 = vmul.f32 %v411, %v782
      %797 = vset.pattern.permute.xlu0 0
      %798 = vperm.xlu0 %797, %v783
      %v799 = vpop.permute.xlu0 %798
      %802 = vset.pattern.permute.xlu0 0
      %803 = vperm.xlu0 %802, %v784
      %v804 = vpop.permute.xlu0 %803
      %807 = vset.pattern.permute.xlu0 0
      %808 = vperm.xlu0 %807, %v785
      %v809 = vpop.permute.xlu0 %808
      %812 = vset.pattern.permute.xlu0 0
      %813 = vperm.xlu0 %812, %v786
      %v814 = vpop.permute.xlu0 %813
      %817 = vset.pattern.permute.xlu0 0
      %818 = vperm.xlu0 %817, %v787
      %v819 = vpop.permute.xlu0 %818
      %822 = vset.pattern.permute.xlu0 0
      %823 = vperm.xlu0 %822, %v788
      %v824 = vpop.permute.xlu0 %823
      %827 = vset.pattern.permute.xlu0 0
      %828 = vperm.xlu0 %827, %v789
      %v829 = vpop.permute.xlu0 %828
      %832 = vset.pattern.permute.xlu0 0
      %833 = vperm.xlu0 %832, %v790
      %v834 = vpop.permute.xlu0 %833
      %837 = vset.pattern.permute.xlu0 0
      %838 = vperm.xlu0 %837, %v791
      %v839 = vpop.permute.xlu0 %838
      %842 = vset.pattern.permute.xlu0 0
      %843 = vperm.xlu0 %842, %v792
      %v844 = vpop.permute.xlu0 %843
      %847 = vset.pattern.permute.xlu0 0
      %848 = vperm.xlu0 %847, %v793
      %v849 = vpop.permute.xlu0 %848
      %852 = vset.pattern.permute.xlu0 0
      %853 = vperm.xlu0 %852, %v794
      %v854 = vpop.permute.xlu0 %853
      %857 = vset.pattern.permute.xlu0 0
      %858 = vperm.xlu0 %857, %v795
      %v859 = vpop.permute.xlu0 %858
      %v861 = vmul.f32 %v769, %v799
      %v862 = vmul.f32 %v770, %v804
      %v863 = vmul.f32 %v771, %v809
      %v864 = vmul.f32 %v772, %v814
      %v865 = vmul.f32 %v773, %v819
      %v866 = vmul.f32 %v774, %v824
      %v867 = vmul.f32 %v775, %v829
      %v868 = vmul.f32 %v776, %v834
      %v869 = vmul.f32 %v777, %v839
      %v870 = vmul.f32 %v778, %v844
      %v871 = vmul.f32 %v779, %v849
      %v872 = vmul.f32 %v780, %v854
      %v873 = vmul.f32 %v781, %v859
      %s874 = scalar_lea.vmem [#allocation2], 208
      %875 = vst.msk [vmem:[%s874] sm:$0xff] %vm572, %v861
      %876 = vst.msk [vmem:[%s874 + $0x8] sm:$0xff] %vm572, %v862
      %877 = vst.msk [vmem:[%s874 + $0x10] sm:$0xff] %vm572, %v863
      %878 = vst.msk [vmem:[%s874 + $0x18] sm:$0xff] %vm572, %v864
      %879 = vst.msk [vmem:[%s874 + $0x20] sm:$0xff] %vm572, %v865
      %880 = vst.msk [vmem:[%s874 + $0x28] sm:$0xff] %vm572, %v866
      %881 = vst.msk [vmem:[%s874 + $0x30] sm:$0xff] %vm572, %v867
      %882 = vst.msk [vmem:[%s874 + $0x38] sm:$0xff] %vm572, %v868
      %883 = vst.msk [vmem:[%s874 + $0x40] sm:$0xff] %vm572, %v869
      %884 = vst.msk [vmem:[%s874 + $0x48] sm:$0xff] %vm572, %v870
      %885 = vst.msk [vmem:[%s874 + $0x50] sm:$0xff] %vm572, %v871
      %886 = vst.msk [vmem:[%s874 + $0x58] sm:$0xff] %vm572, %v872
      %887 = vst.msk [vmem:[%s874 + $0x60] sm:$0xff] %vm572, %v873
      %v888 = vld [vmem:[#allocation2] sm:$0xff]
      %v889 = vld [vmem:[#allocation2 + $0x8] sm:$0xff]
      %v890 = vld [vmem:[#allocation2 + $0x10] sm:$0xff]
      %v891 = vld [vmem:[#allocation2 + $0x18] sm:$0xff]
      %v892 = vld [vmem:[#allocation2 + $0x20] sm:$0xff]
      %v893 = vld [vmem:[#allocation2 + $0x28] sm:$0xff]
      %v894 = vld [vmem:[#allocation2 + $0x30] sm:$0xff]
      %v895 = vld [vmem:[#allocation2 + $0x38] sm:$0xff]
      %v896 = vld [vmem:[#allocation2 + $0x40] sm:$0xff]
      %v897 = vld [vmem:[#allocation2 + $0x48] sm:$0xff]
      %v898 = vld [vmem:[#allocation2 + $0x1] sm:$0xff]
      %v899 = vld [vmem:[#allocation2 + $0x9] sm:$0xff]
      %v900 = vld [vmem:[#allocation2 + $0x11] sm:$0xff]
      %v901 = vld [vmem:[#allocation2 + $0x19] sm:$0xff]
      %v902 = vld [vmem:[#allocation2 + $0x21] sm:$0xff]
      %v903 = vld [vmem:[#allocation2 + $0x29] sm:$0xff]
      %v904 = vld [vmem:[#allocation2 + $0x31] sm:$0xff]
      %v905 = vld [vmem:[#allocation2 + $0x39] sm:$0xff]
      %v906 = vld [vmem:[#allocation2 + $0x41] sm:$0xff]
      %v907 = vld [vmem:[#allocation2 + $0x49] sm:$0xff]
      %v908 = vld [vmem:[#allocation2 + $0x2] sm:$0xff]
      %v909 = vld [vmem:[#allocation2 + $0xa] sm:$0xff]
      %v910 = vld [vmem:[#allocation2 + $0x12] sm:$0xff]
      %v911 = vld [vmem:[#allocation2 + $0x1a] sm:$0xff]
      %v912 = vld [vmem:[#allocation2 + $0x22] sm:$0xff]
      %v913 = vld [vmem:[#allocation2 + $0x2a] sm:$0xff]
      %v914 = vld [vmem:[#allocation2 + $0x32] sm:$0xff]
      %v915 = vld [vmem:[#allocation2 + $0x3a] sm:$0xff]
      %v916 = vld [vmem:[#allocation2 + $0x42] sm:$0xff]
      %v917 = vld [vmem:[#allocation2 + $0x4a] sm:$0xff]
      %v918 = vld [vmem:[#allocation2 + $0x52] sm:$0xff]
      %v919 = vld [vmem:[#allocation2 + $0xb] sm:$0xff]
      %v920 = vld [vmem:[#allocation2 + $0x13] sm:$0xff]
      %v921 = vld [vmem:[#allocation2 + $0x1b] sm:$0xff]
      %v922 = vld [vmem:[#allocation2 + $0x23] sm:$0xff]
      %v923 = vld [vmem:[#allocation2 + $0x2b] sm:$0xff]
      %v924 = vld [vmem:[#allocation2 + $0x33] sm:$0xff]
      %v925 = vld [vmem:[#allocation2 + $0x3b] sm:$0xff]
      %v926 = vld [vmem:[#allocation2 + $0x43] sm:$0xff]
      %v927 = vld [vmem:[#allocation2 + $0x4b] sm:$0xff]
      %v928 = vld [vmem:[#allocation2 + $0x53] sm:$0xff]
      %v929 = vld [vmem:[#allocation2 + $0xc] sm:$0xff]
      %v930 = vld [vmem:[#allocation2 + $0x14] sm:$0xff]
      %v931 = vld [vmem:[#allocation2 + $0x1c] sm:$0xff]
      %v932 = vld [vmem:[#allocation2 + $0x24] sm:$0xff]
      %v933 = vld [vmem:[#allocation2 + $0x2c] sm:$0xff]
      %v934 = vld [vmem:[#allocation2 + $0x34] sm:$0xff]
      %v935 = vld [vmem:[#allocation2 + $0x3c] sm:$0xff]
      %v936 = vld [vmem:[#allocation2 + $0x44] sm:$0xff]
      %v937 = vld [vmem:[#allocation2 + $0x4c] sm:$0xff]
      %v938 = vld [vmem:[#allocation2 + $0x54] sm:$0xff]
      %v939 = vld [vmem:[#allocation2 + $0x5c] sm:$0xff]
      %v940 = vld [vmem:[#allocation2 + $0x15] sm:$0xff]
      %v941 = vld [vmem:[#allocation2 + $0x1d] sm:$0xff]
      %v942 = vld [vmem:[#allocation2 + $0x25] sm:$0xff]
      %v943 = vld [vmem:[#allocation2 + $0x2d] sm:$0xff]
      %v944 = vld [vmem:[#allocation2 + $0x35] sm:$0xff]
      %v945 = vld [vmem:[#allocation2 + $0x3d] sm:$0xff]
      %v946 = vld [vmem:[#allocation2 + $0x45] sm:$0xff]
      %v947 = vld [vmem:[#allocation2 + $0x4d] sm:$0xff]
      %v948 = vld [vmem:[#allocation2 + $0x55] sm:$0xff]
      %v949 = vld [vmem:[#allocation2 + $0x5d] sm:$0xff]
      %v950 = vld [vmem:[#allocation2 + $0x16] sm:$0xff]
      %v951 = vld [vmem:[#allocation2 + $0x1e] sm:$0xff]
      %v952 = vld [vmem:[#allocation2 + $0x26] sm:$0xff]
      %v953 = vld [vmem:[#allocation2 + $0x2e] sm:$0xff]
      %v954 = vld [vmem:[#allocation2 + $0x36] sm:$0xff]
      %v955 = vld [vmem:[#allocation2 + $0x3e] sm:$0xff]
      %v956 = vld [vmem:[#allocation2 + $0x46] sm:$0xff]
      %v957 = vld [vmem:[#allocation2 + $0x4e] sm:$0xff]
      %v958 = vld [vmem:[#allocation2 + $0x56] sm:$0xff]
      %v959 = vld [vmem:[#allocation2 + $0x5e] sm:$0xff]
      %v960 = vld [vmem:[%s716] sm:$0xff]
      %v961 = vld [vmem:[%s716 + $0x8] sm:$0xff]
      %v962 = vld [vmem:[%s716 + $0x10] sm:$0xff]
      %v963 = vld [vmem:[%s716 + $0x18] sm:$0xff]
      %v964 = vld [vmem:[%s716 + $0x20] sm:$0xff]
      %v965 = vld [vmem:[%s716 + $0x28] sm:$0xff]
      %v966 = vld [vmem:[%s716 + $0x30] sm:$0xff]
      %v967 = vld [vmem:[%s716 + $0x38] sm:$0xff]
      %v968 = vld [vmem:[%s716 + $0x40] sm:$0xff]
      %v969 = vld [vmem:[%s716 + $0x48] sm:$0xff]
      %v970 = vld [vmem:[%s716 + $0x1] sm:$0xff]
      %v971 = vld [vmem:[%s716 + $0x9] sm:$0xff]
      %v972 = vld [vmem:[%s716 + $0x11] sm:$0xff]
      %v973 = vld [vmem:[%s716 + $0x19] sm:$0xff]
      %v974 = vld [vmem:[%s716 + $0x21] sm:$0xff]
      %v975 = vld [vmem:[%s716 + $0x29] sm:$0xff]
      %v976 = vld [vmem:[%s716 + $0x31] sm:$0xff]
      %v977 = vld [vmem:[%s716 + $0x39] sm:$0xff]
      %v978 = vld [vmem:[%s716 + $0x41] sm:$0xff]
      %v979 = vld [vmem:[%s716 + $0x49] sm:$0xff]
      %v980 = vld [vmem:[%s716 + $0x2] sm:$0xff]
      %v981 = vld [vmem:[%s716 + $0xa] sm:$0xff]
      %v982 = vld [vmem:[%s716 + $0x12] sm:$0xff]
      %v983 = vld [vmem:[%s716 + $0x1a] sm:$0xff]
      %v984 = vld [vmem:[%s716 + $0x22] sm:$0xff]
      %v985 = vld [vmem:[%s716 + $0x2a] sm:$0xff]
      %v986 = vld [vmem:[%s716 + $0x32] sm:$0xff]
      %v987 = vld [vmem:[%s716 + $0x3a] sm:$0xff]
      %v988 = vld [vmem:[%s716 + $0x42] sm:$0xff]
      %v989 = vld [vmem:[%s716 + $0x4a] sm:$0xff]
      %v990 = vld [vmem:[%s716 + $0x52] sm:$0xff]
      %v991 = vld [vmem:[%s716 + $0xb] sm:$0xff]
      %v992 = vld [vmem:[%s716 + $0x13] sm:$0xff]
      %v993 = vld [vmem:[%s716 + $0x1b] sm:$0xff]
      %v994 = vld [vmem:[%s716 + $0x23] sm:$0xff]
      %v995 = vld [vmem:[%s716 + $0x2b] sm:$0xff]
      %v996 = vld [vmem:[%s716 + $0x33] sm:$0xff]
      %v997 = vld [vmem:[%s716 + $0x3b] sm:$0xff]
      %v998 = vld [vmem:[%s716 + $0x43] sm:$0xff]
      %v999 = vld [vmem:[%s716 + $0x4b] sm:$0xff]
      %v1000 = vld [vmem:[%s716 + $0x53] sm:$0xff]
      %v1001 = vld [vmem:[%s716 + $0xc] sm:$0xff]
      %v1002 = vld [vmem:[%s716 + $0x14] sm:$0xff]
      %v1003 = vld [vmem:[%s716 + $0x1c] sm:$0xff]
      %v1004 = vld [vmem:[%s716 + $0x24] sm:$0xff]
      %v1005 = vld [vmem:[%s716 + $0x2c] sm:$0xff]
      %v1006 = vld [vmem:[%s716 + $0x34] sm:$0xff]
      %v1007 = vld [vmem:[%s716 + $0x3c] sm:$0xff]
      %v1008 = vld [vmem:[%s716 + $0x44] sm:$0xff]
      %v1009 = vld [vmem:[%s716 + $0x4c] sm:$0xff]
      %v1010 = vld [vmem:[%s716 + $0x54] sm:$0xff]
      %v1011 = vld [vmem:[%s716 + $0x5c] sm:$0xff]
      %v1012 = vld [vmem:[%s716 + $0x15] sm:$0xff]
      %v1013 = vld [vmem:[%s716 + $0x1d] sm:$0xff]
      %v1014 = vld [vmem:[%s716 + $0x25] sm:$0xff]
      %v1015 = vld [vmem:[%s716 + $0x2d] sm:$0xff]
      %v1016 = vld [vmem:[%s716 + $0x35] sm:$0xff]
      %v1017 = vld [vmem:[%s716 + $0x3d] sm:$0xff]
      %v1018 = vld [vmem:[%s716 + $0x45] sm:$0xff]
      %v1019 = vld [vmem:[%s716 + $0x4d] sm:$0xff]
      %v1020 = vld [vmem:[%s716 + $0x55] sm:$0xff]
      %v1021 = vld [vmem:[%s716 + $0x5d] sm:$0xff]
      %v1022 = vld [vmem:[%s716 + $0x16] sm:$0xff]
      %v1023 = vld [vmem:[%s716 + $0x1e] sm:$0xff]
      %v1024 = vld [vmem:[%s716 + $0x26] sm:$0xff]
      %v1025 = vld [vmem:[%s716 + $0x2e] sm:$0xff]
      %v1026 = vld [vmem:[%s716 + $0x36] sm:$0xff]
      %v1027 = vld [vmem:[%s716 + $0x3e] sm:$0xff]
      %v1028 = vld [vmem:[%s716 + $0x46] sm:$0xff]
      %v1029 = vld [vmem:[%s716 + $0x4e] sm:$0xff]
      %v1030 = vld [vmem:[%s716 + $0x56] sm:$0xff]
      %v1031 = vld [vmem:[%s716 + $0x5e] sm:$0xff]
      %v1032 = vld [vmem:[%s874] sm:$0xff]
      %v1033 = vld [vmem:[%s874 + $0x8] sm:$0xff]
      %v1034 = vld [vmem:[%s874 + $0x10] sm:$0xff]
      %v1035 = vld [vmem:[%s874 + $0x18] sm:$0xff]
      %v1036 = vld [vmem:[%s874 + $0x20] sm:$0xff]
      %v1037 = vld [vmem:[%s874 + $0x28] sm:$0xff]
      %v1038 = vld [vmem:[%s874 + $0x30] sm:$0xff]
      %v1039 = vld [vmem:[%s874 + $0x38] sm:$0xff]
      %v1040 = vld [vmem:[%s874 + $0x40] sm:$0xff]
      %v1041 = vld [vmem:[%s874 + $0x48] sm:$0xff]
      %v1042 = vld [vmem:[%s874 + $0x1] sm:$0xff]
      %v1043 = vld [vmem:[%s874 + $0x9] sm:$0xff]
      %v1044 = vld [vmem:[%s874 + $0x11] sm:$0xff]
      %v1045 = vld [vmem:[%s874 + $0x19] sm:$0xff]
      %v1046 = vld [vmem:[%s874 + $0x21] sm:$0xff]
      %v1047 = vld [vmem:[%s874 + $0x29] sm:$0xff]
      %v1048 = vld [vmem:[%s874 + $0x31] sm:$0xff]
      %v1049 = vld [vmem:[%s874 + $0x39] sm:$0xff]
      %v1050 = vld [vmem:[%s874 + $0x41] sm:$0xff]
      %v1051 = vld [vmem:[%s874 + $0x49] sm:$0xff]
      %v1052 = vld [vmem:[%s874 + $0x2] sm:$0xff]
      %v1053 = vld [vmem:[%s874 + $0xa] sm:$0xff]
      %v1054 = vld [vmem:[%s874 + $0x12] sm:$0xff]
      %v1055 = vld [vmem:[%s874 + $0x1a] sm:$0xff]
      %v1056 = vld [vmem:[%s874 + $0x22] sm:$0xff]
      %v1057 = vld [vmem:[%s874 + $0x2a] sm:$0xff]
      %v1058 = vld [vmem:[%s874 + $0x32] sm:$0xff]
      %v1059 = vld [vmem:[%s874 + $0x3a] sm:$0xff]
      %v1060 = vld [vmem:[%s874 + $0x42] sm:$0xff]
      %v1061 = vld [vmem:[%s874 + $0x4a] sm:$0xff]
      %v1062 = vld [vmem:[%s874 + $0x52] sm:$0xff]
      %v1063 = vld [vmem:[%s874 + $0xb] sm:$0xff]
      %v1064 = vld [vmem:[%s874 + $0x13] sm:$0xff]
      %v1065 = vld [vmem:[%s874 + $0x1b] sm:$0xff]
      %v1066 = vld [vmem:[%s874 + $0x23] sm:$0xff]
      %v1067 = vld [vmem:[%s874 + $0x2b] sm:$0xff]
      %v1068 = vld [vmem:[%s874 + $0x33] sm:$0xff]
      %v1069 = vld [vmem:[%s874 + $0x3b] sm:$0xff]
      %v1070 = vld [vmem:[%s874 + $0x43] sm:$0xff]
      %v1071 = vld [vmem:[%s874 + $0x4b] sm:$0xff]
      %v1072 = vld [vmem:[%s874 + $0x53] sm:$0xff]
      %v1073 = vld [vmem:[%s874 + $0xc] sm:$0xff]
      %v1074 = vld [vmem:[%s874 + $0x14] sm:$0xff]
      %v1075 = vld [vmem:[%s874 + $0x1c] sm:$0xff]
      %v1076 = vld [vmem:[%s874 + $0x24] sm:$0xff]
      %v1077 = vld [vmem:[%s874 + $0x2c] sm:$0xff]
      %v1078 = vld [vmem:[%s874 + $0x34] sm:$0xff]
      %v1079 = vld [vmem:[%s874 + $0x3c] sm:$0xff]
      %v1080 = vld [vmem:[%s874 + $0x44] sm:$0xff]
      %v1081 = vld [vmem:[%s874 + $0x4c] sm:$0xff]
      %v1082 = vld [vmem:[%s874 + $0x54] sm:$0xff]
      %v1083 = vld [vmem:[%s874 + $0x5c] sm:$0xff]
      %v1084 = vld [vmem:[%s874 + $0x15] sm:$0xff]
      %v1085 = vld [vmem:[%s874 + $0x1d] sm:$0xff]
      %v1086 = vld [vmem:[%s874 + $0x25] sm:$0xff]
      %v1087 = vld [vmem:[%s874 + $0x2d] sm:$0xff]
      %v1088 = vld [vmem:[%s874 + $0x35] sm:$0xff]
      %v1089 = vld [vmem:[%s874 + $0x3d] sm:$0xff]
      %v1090 = vld [vmem:[%s874 + $0x45] sm:$0xff]
      %v1091 = vld [vmem:[%s874 + $0x4d] sm:$0xff]
      %v1092 = vld [vmem:[%s874 + $0x55] sm:$0xff]
      %v1093 = vld [vmem:[%s874 + $0x5d] sm:$0xff]
      %v1094 = vld [vmem:[%s874 + $0x16] sm:$0xff]
      %v1095 = vld [vmem:[%s874 + $0x1e] sm:$0xff]
      %v1096 = vld [vmem:[%s874 + $0x26] sm:$0xff]
      %v1097 = vld [vmem:[%s874 + $0x2e] sm:$0xff]
      %v1098 = vld [vmem:[%s874 + $0x36] sm:$0xff]
      %v1099 = vld [vmem:[%s874 + $0x3e] sm:$0xff]
      %v1100 = vld [vmem:[%s874 + $0x46] sm:$0xff]
      %v1101 = vld [vmem:[%s874 + $0x4e] sm:$0xff]
      %v1102 = vld [vmem:[%s874 + $0x56] sm:$0xff]
      %v1103 = vld [vmem:[%s874 + $0x5e] sm:$0xff]
      %1114 = vrot.lane.b32.xlu0 %v898, 4
      %v1115 = vpop.permute.xlu0 %1114
      %1116 = vrot.lane.b32.xlu0 %v899, 4
      %v1117 = vpop.permute.xlu0 %1116
      %1118 = vrot.lane.b32.xlu0 %v900, 4
      %v1119 = vpop.permute.xlu0 %1118
      %1120 = vrot.lane.b32.xlu0 %v901, 4
      %v1121 = vpop.permute.xlu0 %1120
      %1122 = vrot.lane.b32.xlu0 %v902, 4
      %v1123 = vpop.permute.xlu0 %1122
      %1124 = vrot.lane.b32.xlu0 %v903, 4
      %v1125 = vpop.permute.xlu0 %1124
      %1126 = vrot.lane.b32.xlu0 %v904, 4
      %v1127 = vpop.permute.xlu0 %1126
      %1128 = vrot.lane.b32.xlu0 %v905, 4
      %v1129 = vpop.permute.xlu0 %1128
      %1130 = vrot.lane.b32.xlu0 %v906, 4
      %v1131 = vpop.permute.xlu0 %1130
      %1132 = vrot.lane.b32.xlu0 %v907, 4
      %v1133 = vpop.permute.xlu0 %1132
      %1154 = vrot.lane.b32.xlu0 %v908, 8
      %v1155 = vpop.permute.xlu0 %1154
      %1156 = vrot.lane.b32.xlu0 %v909, 8
      %v1157 = vpop.permute.xlu0 %1156
      %1158 = vrot.lane.b32.xlu0 %v910, 8
      %v1159 = vpop.permute.xlu0 %1158
      %1160 = vrot.lane.b32.xlu0 %v911, 8
      %v1161 = vpop.permute.xlu0 %1160
      %1162 = vrot.lane.b32.xlu0 %v912, 8
      %v1163 = vpop.permute.xlu0 %1162
      %1164 = vrot.lane.b32.xlu0 %v913, 8
      %v1165 = vpop.permute.xlu0 %1164
      %1166 = vrot.lane.b32.xlu0 %v914, 8
      %v1167 = vpop.permute.xlu0 %1166
      %1168 = vrot.lane.b32.xlu0 %v915, 8
      %v1169 = vpop.permute.xlu0 %1168
      %1170 = vrot.lane.b32.xlu0 %v916, 8
      %v1171 = vpop.permute.xlu0 %1170
      %1172 = vrot.lane.b32.xlu0 %v917, 8
      %v1173 = vpop.permute.xlu0 %1172
      %1185 = vrot.lane.b32.xlu0 %v909, 12
      %v1186 = vpop.permute.xlu0 %1185
      %1187 = vrot.lane.b32.xlu0 %v910, 12
      %v1188 = vpop.permute.xlu0 %1187
      %1189 = vrot.lane.b32.xlu0 %v911, 12
      %v1190 = vpop.permute.xlu0 %1189
      %1191 = vrot.lane.b32.xlu0 %v912, 12
      %v1192 = vpop.permute.xlu0 %1191
      %1193 = vrot.lane.b32.xlu0 %v913, 12
      %v1194 = vpop.permute.xlu0 %1193
      %1195 = vrot.lane.b32.xlu0 %v914, 12
      %v1196 = vpop.permute.xlu0 %1195
      %1197 = vrot.lane.b32.xlu0 %v915, 12
      %v1198 = vpop.permute.xlu0 %1197
      %1199 = vrot.lane.b32.xlu0 %v916, 12
      %v1200 = vpop.permute.xlu0 %1199
      %1201 = vrot.lane.b32.xlu0 %v917, 12
      %v1202 = vpop.permute.xlu0 %1201
      %1203 = vrot.lane.b32.xlu0 %v918, 12
      %v1204 = vpop.permute.xlu0 %1203
      %1225 = vrot.lane.b32.xlu0 %v919, 16
      %v1226 = vpop.permute.xlu0 %1225
      %1227 = vrot.lane.b32.xlu0 %v920, 16
      %v1228 = vpop.permute.xlu0 %1227
      %1229 = vrot.lane.b32.xlu0 %v921, 16
      %v1230 = vpop.permute.xlu0 %1229
      %1231 = vrot.lane.b32.xlu0 %v922, 16
      %v1232 = vpop.permute.xlu0 %1231
      %1233 = vrot.lane.b32.xlu0 %v923, 16
      %v1234 = vpop.permute.xlu0 %1233
      %1235 = vrot.lane.b32.xlu0 %v924, 16
      %v1236 = vpop.permute.xlu0 %1235
      %1237 = vrot.lane.b32.xlu0 %v925, 16
      %v1238 = vpop.permute.xlu0 %1237
      %1239 = vrot.lane.b32.xlu0 %v926, 16
      %v1240 = vpop.permute.xlu0 %1239
      %1241 = vrot.lane.b32.xlu0 %v927, 16
      %v1242 = vpop.permute.xlu0 %1241
      %1243 = vrot.lane.b32.xlu0 %v928, 16
      %v1244 = vpop.permute.xlu0 %1243
      %1265 = vrot.lane.b32.xlu0 %v929, 20
      %v1266 = vpop.permute.xlu0 %1265
      %1267 = vrot.lane.b32.xlu0 %v930, 20
      %v1268 = vpop.permute.xlu0 %1267
      %1269 = vrot.lane.b32.xlu0 %v931, 20
      %v1270 = vpop.permute.xlu0 %1269
      %1271 = vrot.lane.b32.xlu0 %v932, 20
      %v1272 = vpop.permute.xlu0 %1271
      %1273 = vrot.lane.b32.xlu0 %v933, 20
      %v1274 = vpop.permute.xlu0 %1273
      %1275 = vrot.lane.b32.xlu0 %v934, 20
      %v1276 = vpop.permute.xlu0 %1275
      %1277 = vrot.lane.b32.xlu0 %v935, 20
      %v1278 = vpop.permute.xlu0 %1277
      %1279 = vrot.lane.b32.xlu0 %v936, 20
      %v1280 = vpop.permute.xlu0 %1279
      %1281 = vrot.lane.b32.xlu0 %v937, 20
      %v1282 = vpop.permute.xlu0 %1281
      %1283 = vrot.lane.b32.xlu0 %v938, 20
      %v1284 = vpop.permute.xlu0 %1283
      %1296 = vrot.lane.b32.xlu0 %v930, 24
      %v1297 = vpop.permute.xlu0 %1296
      %1298 = vrot.lane.b32.xlu0 %v931, 24
      %v1299 = vpop.permute.xlu0 %1298
      %1300 = vrot.lane.b32.xlu0 %v932, 24
      %v1301 = vpop.permute.xlu0 %1300
      %1302 = vrot.lane.b32.xlu0 %v933, 24
      %v1303 = vpop.permute.xlu0 %1302
      %1304 = vrot.lane.b32.xlu0 %v934, 24
      %v1305 = vpop.permute.xlu0 %1304
      %1306 = vrot.lane.b32.xlu0 %v935, 24
      %v1307 = vpop.permute.xlu0 %1306
      %1308 = vrot.lane.b32.xlu0 %v936, 24
      %v1309 = vpop.permute.xlu0 %1308
      %1310 = vrot.lane.b32.xlu0 %v937, 24
      %v1311 = vpop.permute.xlu0 %1310
      %1312 = vrot.lane.b32.xlu0 %v938, 24
      %v1313 = vpop.permute.xlu0 %1312
      %1314 = vrot.lane.b32.xlu0 %v939, 24
      %v1315 = vpop.permute.xlu0 %1314
      %1336 = vrot.lane.b32.xlu0 %v940, 28
      %v1337 = vpop.permute.xlu0 %1336
      %1338 = vrot.lane.b32.xlu0 %v941, 28
      %v1339 = vpop.permute.xlu0 %1338
      %1340 = vrot.lane.b32.xlu0 %v942, 28
      %v1341 = vpop.permute.xlu0 %1340
      %1342 = vrot.lane.b32.xlu0 %v943, 28
      %v1343 = vpop.permute.xlu0 %1342
      %1344 = vrot.lane.b32.xlu0 %v944, 28
      %v1345 = vpop.permute.xlu0 %1344
      %1346 = vrot.lane.b32.xlu0 %v945, 28
      %v1347 = vpop.permute.xlu0 %1346
      %1348 = vrot.lane.b32.xlu0 %v946, 28
      %v1349 = vpop.permute.xlu0 %1348
      %1350 = vrot.lane.b32.xlu0 %v947, 28
      %v1351 = vpop.permute.xlu0 %1350
      %1352 = vrot.lane.b32.xlu0 %v948, 28
      %v1353 = vpop.permute.xlu0 %1352
      %1354 = vrot.lane.b32.xlu0 %v949, 28
      %v1355 = vpop.permute.xlu0 %1354
      %1376 = vrot.lane.b32.xlu0 %v950, 32
      %v1377 = vpop.permute.xlu0 %1376
      %1378 = vrot.lane.b32.xlu0 %v951, 32
      %v1379 = vpop.permute.xlu0 %1378
      %1380 = vrot.lane.b32.xlu0 %v952, 32
      %v1381 = vpop.permute.xlu0 %1380
      %1382 = vrot.lane.b32.xlu0 %v953, 32
      %v1383 = vpop.permute.xlu0 %1382
      %1384 = vrot.lane.b32.xlu0 %v954, 32
      %v1385 = vpop.permute.xlu0 %1384
      %1386 = vrot.lane.b32.xlu0 %v955, 32
      %v1387 = vpop.permute.xlu0 %1386
      %1388 = vrot.lane.b32.xlu0 %v956, 32
      %v1389 = vpop.permute.xlu0 %1388
      %1390 = vrot.lane.b32.xlu0 %v957, 32
      %v1391 = vpop.permute.xlu0 %1390
      %1392 = vrot.lane.b32.xlu0 %v958, 32
      %v1393 = vpop.permute.xlu0 %1392
      %1394 = vrot.lane.b32.xlu0 %v959, 32
      %v1395 = vpop.permute.xlu0 %1394
      %1416 = vrot.lane.b32.xlu0 %v960, 36
      %v1417 = vpop.permute.xlu0 %1416
      %1418 = vrot.lane.b32.xlu0 %v961, 36
      %v1419 = vpop.permute.xlu0 %1418
      %1420 = vrot.lane.b32.xlu0 %v962, 36
      %v1421 = vpop.permute.xlu0 %1420
      %1422 = vrot.lane.b32.xlu0 %v963, 36
      %v1423 = vpop.permute.xlu0 %1422
      %1424 = vrot.lane.b32.xlu0 %v964, 36
      %v1425 = vpop.permute.xlu0 %1424
      %1426 = vrot.lane.b32.xlu0 %v965, 36
      %v1427 = vpop.permute.xlu0 %1426
      %1428 = vrot.lane.b32.xlu0 %v966, 36
      %v1429 = vpop.permute.xlu0 %1428
      %1430 = vrot.lane.b32.xlu0 %v967, 36
      %v1431 = vpop.permute.xlu0 %1430
      %1432 = vrot.lane.b32.xlu0 %v968, 36
      %v1433 = vpop.permute.xlu0 %1432
      %1434 = vrot.lane.b32.xlu0 %v969, 36
      %v1435 = vpop.permute.xlu0 %1434
      %1456 = vrot.lane.b32.xlu0 %v970, 40
      %v1457 = vpop.permute.xlu0 %1456
      %1458 = vrot.lane.b32.xlu0 %v971, 40
      %v1459 = vpop.permute.xlu0 %1458
      %1460 = vrot.lane.b32.xlu0 %v972, 40
      %v1461 = vpop.permute.xlu0 %1460
      %1462 = vrot.lane.b32.xlu0 %v973, 40
      %v1463 = vpop.permute.xlu0 %1462
      %1464 = vrot.lane.b32.xlu0 %v974, 40
      %v1465 = vpop.permute.xlu0 %1464
      %1466 = vrot.lane.b32.xlu0 %v975, 40
      %v1467 = vpop.permute.xlu0 %1466
      %1468 = vrot.lane.b32.xlu0 %v976, 40
      %v1469 = vpop.permute.xlu0 %1468
      %1470 = vrot.lane.b32.xlu0 %v977, 40
      %v1471 = vpop.permute.xlu0 %1470
      %1472 = vrot.lane.b32.xlu0 %v978, 40
      %v1473 = vpop.permute.xlu0 %1472
      %1474 = vrot.lane.b32.xlu0 %v979, 40
      %v1475 = vpop.permute.xlu0 %1474
      %1496 = vrot.lane.b32.xlu0 %v980, 44
      %v1497 = vpop.permute.xlu0 %1496
      %1498 = vrot.lane.b32.xlu0 %v981, 44
      %v1499 = vpop.permute.xlu0 %1498
      %1500 = vrot.lane.b32.xlu0 %v982, 44
      %v1501 = vpop.permute.xlu0 %1500
      %1502 = vrot.lane.b32.xlu0 %v983, 44
      %v1503 = vpop.permute.xlu0 %1502
      %1504 = vrot.lane.b32.xlu0 %v984, 44
      %v1505 = vpop.permute.xlu0 %1504
      %1506 = vrot.lane.b32.xlu0 %v985, 44
      %v1507 = vpop.permute.xlu0 %1506
      %1508 = vrot.lane.b32.xlu0 %v986, 44
      %v1509 = vpop.permute.xlu0 %1508
      %1510 = vrot.lane.b32.xlu0 %v987, 44
      %v1511 = vpop.permute.xlu0 %1510
      %1512 = vrot.lane.b32.xlu0 %v988, 44
      %v1513 = vpop.permute.xlu0 %1512
      %1514 = vrot.lane.b32.xlu0 %v989, 44
      %v1515 = vpop.permute.xlu0 %1514
      %1527 = vrot.lane.b32.xlu0 %v981, 48
      %v1528 = vpop.permute.xlu0 %1527
      %1529 = vrot.lane.b32.xlu0 %v982, 48
      %v1530 = vpop.permute.xlu0 %1529
      %1531 = vrot.lane.b32.xlu0 %v983, 48
      %v1532 = vpop.permute.xlu0 %1531
      %1533 = vrot.lane.b32.xlu0 %v984, 48
      %v1534 = vpop.permute.xlu0 %1533
      %1535 = vrot.lane.b32.xlu0 %v985, 48
      %v1536 = vpop.permute.xlu0 %1535
      %1537 = vrot.lane.b32.xlu0 %v986, 48
      %v1538 = vpop.permute.xlu0 %1537
      %1539 = vrot.lane.b32.xlu0 %v987, 48
      %v1540 = vpop.permute.xlu0 %1539
      %1541 = vrot.lane.b32.xlu0 %v988, 48
      %v1542 = vpop.permute.xlu0 %1541
      %1543 = vrot.lane.b32.xlu0 %v989, 48
      %v1544 = vpop.permute.xlu0 %1543
      %1545 = vrot.lane.b32.xlu0 %v990, 48
      %v1546 = vpop.permute.xlu0 %1545
      %1567 = vrot.lane.b32.xlu0 %v991, 52
      %v1568 = vpop.permute.xlu0 %1567
      %1569 = vrot.lane.b32.xlu0 %v992, 52
      %v1570 = vpop.permute.xlu0 %1569
      %1571 = vrot.lane.b32.xlu0 %v993, 52
      %v1572 = vpop.permute.xlu0 %1571
      %1573 = vrot.lane.b32.xlu0 %v994, 52
      %v1574 = vpop.permute.xlu0 %1573
      %1575 = vrot.lane.b32.xlu0 %v995, 52
      %v1576 = vpop.permute.xlu0 %1575
      %1577 = vrot.lane.b32.xlu0 %v996, 52
      %v1578 = vpop.permute.xlu0 %1577
      %1579 = vrot.lane.b32.xlu0 %v997, 52
      %v1580 = vpop.permute.xlu0 %1579
      %1581 = vrot.lane.b32.xlu0 %v998, 52
      %v1582 = vpop.permute.xlu0 %1581
      %1583 = vrot.lane.b32.xlu0 %v999, 52
      %v1584 = vpop.permute.xlu0 %1583
      %1585 = vrot.lane.b32.xlu0 %v1000, 52
      %v1586 = vpop.permute.xlu0 %1585
      %1607 = vrot.lane.b32.xlu0 %v1001, 56
      %v1608 = vpop.permute.xlu0 %1607
      %1609 = vrot.lane.b32.xlu0 %v1002, 56
      %v1610 = vpop.permute.xlu0 %1609
      %1611 = vrot.lane.b32.xlu0 %v1003, 56
      %v1612 = vpop.permute.xlu0 %1611
      %1613 = vrot.lane.b32.xlu0 %v1004, 56
      %v1614 = vpop.permute.xlu0 %1613
      %1615 = vrot.lane.b32.xlu0 %v1005, 56
      %v1616 = vpop.permute.xlu0 %1615
      %1617 = vrot.lane.b32.xlu0 %v1006, 56
      %v1618 = vpop.permute.xlu0 %1617
      %1619 = vrot.lane.b32.xlu0 %v1007, 56
      %v1620 = vpop.permute.xlu0 %1619
      %1621 = vrot.lane.b32.xlu0 %v1008, 56
      %v1622 = vpop.permute.xlu0 %1621
      %1623 = vrot.lane.b32.xlu0 %v1009, 56
      %v1624 = vpop.permute.xlu0 %1623
      %1625 = vrot.lane.b32.xlu0 %v1010, 56
      %v1626 = vpop.permute.xlu0 %1625
      %1638 = vrot.lane.b32.xlu0 %v1002, 60
      %v1639 = vpop.permute.xlu0 %1638
      %1640 = vrot.lane.b32.xlu0 %v1003, 60
      %v1641 = vpop.permute.xlu0 %1640
      %1642 = vrot.lane.b32.xlu0 %v1004, 60
      %v1643 = vpop.permute.xlu0 %1642
      %1644 = vrot.lane.b32.xlu0 %v1005, 60
      %v1645 = vpop.permute.xlu0 %1644
      %1646 = vrot.lane.b32.xlu0 %v1006, 60
      %v1647 = vpop.permute.xlu0 %1646
      %1648 = vrot.lane.b32.xlu0 %v1007, 60
      %v1649 = vpop.permute.xlu0 %1648
      %1650 = vrot.lane.b32.xlu0 %v1008, 60
      %v1651 = vpop.permute.xlu0 %1650
      %1652 = vrot.lane.b32.xlu0 %v1009, 60
      %v1653 = vpop.permute.xlu0 %1652
      %1654 = vrot.lane.b32.xlu0 %v1010, 60
      %v1655 = vpop.permute.xlu0 %1654
      %1656 = vrot.lane.b32.xlu0 %v1011, 60
      %v1657 = vpop.permute.xlu0 %1656
      %v1668 = vsel %vm572, %v888, %v1115
      %v1669 = vsel %vm572, %v889, %v1117
      %v1670 = vsel %vm572, %v890, %v1119
      %v1671 = vsel %vm572, %v891, %v1121
      %v1672 = vsel %vm572, %v892, %v1123
      %v1673 = vsel %vm572, %v893, %v1125
      %v1674 = vsel %vm572, %v894, %v1127
      %v1675 = vsel %vm572, %v895, %v1129
      %v1676 = vsel %vm572, %v896, %v1131
      %v1677 = vsel %vm572, %v897, %v1133
      %vm1678 = vcmask 64512
      %v1679 = vsel %vm1678, %v1668, %v1155
      %v1680 = vsel %vm1678, %v1669, %v1157
      %v1681 = vsel %vm1678, %v1670, %v1159
      %v1682 = vsel %vm1678, %v1671, %v1161
      %v1683 = vsel %vm1678, %v1672, %v1163
      %v1684 = vsel %vm1678, %v1673, %v1165
      %v1685 = vsel %vm1678, %v1674, %v1167
      %v1686 = vsel %vm1678, %v1675, %v1169
      %v1687 = vsel %vm1678, %v1676, %v1171
      %v1688 = vsel %vm1678, %v1677, %v1173
      %vm1689 = vcmask 97280
      %v1690 = vsel %vm1689, %v1679, %v1186
      %v1691 = vsel %vm1689, %v1680, %v1188
      %v1692 = vsel %vm1689, %v1681, %v1190
      %v1693 = vsel %vm1689, %v1682, %v1192
      %v1694 = vsel %vm1689, %v1683, %v1194
      %v1695 = vsel %vm1689, %v1684, %v1196
      %v1696 = vsel %vm1689, %v1685, %v1198
      %v1697 = vsel %vm1689, %v1686, %v1200
      %v1698 = vsel %vm1689, %v1687, %v1202
      %v1699 = vsel %vm1689, %v1688, %v1204
      %vm1700 = vcmask 130048
      %v1701 = vsel %vm1700, %v1690, %v1226
      %v1702 = vsel %vm1700, %v1691, %v1228
      %v1703 = vsel %vm1700, %v1692, %v1230
      %v1704 = vsel %vm1700, %v1693, %v1232
      %v1705 = vsel %vm1700, %v1694, %v1234
      %v1706 = vsel %vm1700, %v1695, %v1236
      %v1707 = vsel %vm1700, %v1696, %v1238
      %v1708 = vsel %vm1700, %v1697, %v1240
      %v1709 = vsel %vm1700, %v1698, %v1242
      %v1710 = vsel %vm1700, %v1699, %v1244
      %vm1711 = vcmask 162816
      %v1712 = vsel %vm1711, %v1701, %v1266
      %v1713 = vsel %vm1711, %v1702, %v1268
      %v1714 = vsel %vm1711, %v1703, %v1270
      %v1715 = vsel %vm1711, %v1704, %v1272
      %v1716 = vsel %vm1711, %v1705, %v1274
      %v1717 = vsel %vm1711, %v1706, %v1276
      %v1718 = vsel %vm1711, %v1707, %v1278
      %v1719 = vsel %vm1711, %v1708, %v1280
      %v1720 = vsel %vm1711, %v1709, %v1282
      %v1721 = vsel %vm1711, %v1710, %v1284
      %vm1722 = vcmask 195584
      %v1723 = vsel %vm1722, %v1712, %v1297
      %v1724 = vsel %vm1722, %v1713, %v1299
      %v1725 = vsel %vm1722, %v1714, %v1301
      %v1726 = vsel %vm1722, %v1715, %v1303
      %v1727 = vsel %vm1722, %v1716, %v1305
      %v1728 = vsel %vm1722, %v1717, %v1307
      %v1729 = vsel %vm1722, %v1718, %v1309
      %v1730 = vsel %vm1722, %v1719, %v1311
      %v1731 = vsel %vm1722, %v1720, %v1313
      %v1732 = vsel %vm1722, %v1721, %v1315
      %vm1733 = vcmask 228352
      %v1734 = vsel %vm1733, %v1723, %v1337
      %v1735 = vsel %vm1733, %v1724, %v1339
      %v1736 = vsel %vm1733, %v1725, %v1341
      %v1737 = vsel %vm1733, %v1726, %v1343
      %v1738 = vsel %vm1733, %v1727, %v1345
      %v1739 = vsel %vm1733, %v1728, %v1347
      %v1740 = vsel %vm1733, %v1729, %v1349
      %v1741 = vsel %vm1733, %v1730, %v1351
      %v1742 = vsel %vm1733, %v1731, %v1353
      %v1743 = vsel %vm1733, %v1732, %v1355
      %vm1744 = vcmask 261120
      %v1745 = vsel %vm1744, %v1734, %v1377
      %v1746 = vsel %vm1744, %v1735, %v1379
      %v1747 = vsel %vm1744, %v1736, %v1381
      %v1748 = vsel %vm1744, %v1737, %v1383
      %v1749 = vsel %vm1744, %v1738, %v1385
      %v1750 = vsel %vm1744, %v1739, %v1387
      %v1751 = vsel %vm1744, %v1740, %v1389
      %v1752 = vsel %vm1744, %v1741, %v1391
      %v1753 = vsel %vm1744, %v1742, %v1393
      %v1754 = vsel %vm1744, %v1743, %v1395
      %vm1755 = vcmask 293888
      %v1756 = vsel %vm1755, %v1745, %v1417
      %v1757 = vsel %vm1755, %v1746, %v1419
      %v1758 = vsel %vm1755, %v1747, %v1421
      %v1759 = vsel %vm1755, %v1748, %v1423
      %v1760 = vsel %vm1755, %v1749, %v1425
      %v1761 = vsel %vm1755, %v1750, %v1427
      %v1762 = vsel %vm1755, %v1751, %v1429
      %v1763 = vsel %vm1755, %v1752, %v1431
      %v1764 = vsel %vm1755, %v1753, %v1433
      %v1765 = vsel %vm1755, %v1754, %v1435
      %vm1766 = vcmask 326656
      %v1767 = vsel %vm1766, %v1756, %v1457
      %v1768 = vsel %vm1766, %v1757, %v1459
      %v1769 = vsel %vm1766, %v1758, %v1461
      %v1770 = vsel %vm1766, %v1759, %v1463
      %v1771 = vsel %vm1766, %v1760, %v1465
      %v1772 = vsel %vm1766, %v1761, %v1467
      %v1773 = vsel %vm1766, %v1762, %v1469
      %v1774 = vsel %vm1766, %v1763, %v1471
      %v1775 = vsel %vm1766, %v1764, %v1473
      %v1776 = vsel %vm1766, %v1765, %v1475
      %vm1777 = vcmask 359424
      %v1778 = vsel %vm1777, %v1767, %v1497
      %v1779 = vsel %vm1777, %v1768, %v1499
      %v1780 = vsel %vm1777, %v1769, %v1501
      %v1781 = vsel %vm1777, %v1770, %v1503
      %v1782 = vsel %vm1777, %v1771, %v1505
      %v1783 = vsel %vm1777, %v1772, %v1507
      %v1784 = vsel %vm1777, %v1773, %v1509
      %v1785 = vsel %vm1777, %v1774, %v1511
      %v1786 = vsel %vm1777, %v1775, %v1513
      %v1787 = vsel %vm1777, %v1776, %v1515
      %vm1788 = vcmask 392192
      %v1789 = vsel %vm1788, %v1778, %v1528
      %v1790 = vsel %vm1788, %v1779, %v1530
      %v1791 = vsel %vm1788, %v1780, %v1532
      %v1792 = vsel %vm1788, %v1781, %v1534
      %v1793 = vsel %vm1788, %v1782, %v1536
      %v1794 = vsel %vm1788, %v1783, %v1538
      %v1795 = vsel %vm1788, %v1784, %v1540
      %v1796 = vsel %vm1788, %v1785, %v1542
      %v1797 = vsel %vm1788, %v1786, %v1544
      %v1798 = vsel %vm1788, %v1787, %v1546
      %vm1799 = vcmask 424960
      %v1800 = vsel %vm1799, %v1789, %v1568
      %v1801 = vsel %vm1799, %v1790, %v1570
      %v1802 = vsel %vm1799, %v1791, %v1572
      %v1803 = vsel %vm1799, %v1792, %v1574
      %v1804 = vsel %vm1799, %v1793, %v1576
      %v1805 = vsel %vm1799, %v1794, %v1578
      %v1806 = vsel %vm1799, %v1795, %v1580
      %v1807 = vsel %vm1799, %v1796, %v1582
      %v1808 = vsel %vm1799, %v1797, %v1584
      %v1809 = vsel %vm1799, %v1798, %v1586
      %vm1810 = vcmask 457728
      %v1811 = vsel %vm1810, %v1800, %v1608
      %v1812 = vsel %vm1810, %v1801, %v1610
      %v1813 = vsel %vm1810, %v1802, %v1612
      %v1814 = vsel %vm1810, %v1803, %v1614
      %v1815 = vsel %vm1810, %v1804, %v1616
      %v1816 = vsel %vm1810, %v1805, %v1618
      %v1817 = vsel %vm1810, %v1806, %v1620
      %v1818 = vsel %vm1810, %v1807, %v1622
      %v1819 = vsel %vm1810, %v1808, %v1624
      %v1820 = vsel %vm1810, %v1809, %v1626
      %vm1821 = vcmask 490496
      %v1822 = vsel %vm1821, %v1811, %v1639
      %v1823 = vsel %vm1821, %v1812, %v1641
      %v1824 = vsel %vm1821, %v1813, %v1643
      %v1825 = vsel %vm1821, %v1814, %v1645
      %v1826 = vsel %vm1821, %v1815, %v1647
      %v1827 = vsel %vm1821, %v1816, %v1649
      %v1828 = vsel %vm1821, %v1817, %v1651
      %v1829 = vsel %vm1821, %v1818, %v1653
      %v1830 = vsel %vm1821, %v1819, %v1655
      %v1831 = vsel %vm1821, %v1820, %v1657
      %1842 = vrot.lane.b32.xlu0 %v1022, 4
      %v1843 = vpop.permute.xlu0 %1842
      %1844 = vrot.lane.b32.xlu0 %v1023, 4
      %v1845 = vpop.permute.xlu0 %1844
      %1846 = vrot.lane.b32.xlu0 %v1024, 4
      %v1847 = vpop.permute.xlu0 %1846
      %1848 = vrot.lane.b32.xlu0 %v1025, 4
      %v1849 = vpop.permute.xlu0 %1848
      %1850 = vrot.lane.b32.xlu0 %v1026, 4
      %v1851 = vpop.permute.xlu0 %1850
      %1852 = vrot.lane.b32.xlu0 %v1027, 4
      %v1853 = vpop.permute.xlu0 %1852
      %1854 = vrot.lane.b32.xlu0 %v1028, 4
      %v1855 = vpop.permute.xlu0 %1854
      %1856 = vrot.lane.b32.xlu0 %v1029, 4
      %v1857 = vpop.permute.xlu0 %1856
      %1858 = vrot.lane.b32.xlu0 %v1030, 4
      %v1859 = vpop.permute.xlu0 %1858
      %1860 = vrot.lane.b32.xlu0 %v1031, 4
      %v1861 = vpop.permute.xlu0 %1860
      %1882 = vrot.lane.b32.xlu0 %v1032, 8
      %v1883 = vpop.permute.xlu0 %1882
      %1884 = vrot.lane.b32.xlu0 %v1033, 8
      %v1885 = vpop.permute.xlu0 %1884
      %1886 = vrot.lane.b32.xlu0 %v1034, 8
      %v1887 = vpop.permute.xlu0 %1886
      %1888 = vrot.lane.b32.xlu0 %v1035, 8
      %v1889 = vpop.permute.xlu0 %1888
      %1890 = vrot.lane.b32.xlu0 %v1036, 8
      %v1891 = vpop.permute.xlu0 %1890
      %1892 = vrot.lane.b32.xlu0 %v1037, 8
      %v1893 = vpop.permute.xlu0 %1892
      %1894 = vrot.lane.b32.xlu0 %v1038, 8
      %v1895 = vpop.permute.xlu0 %1894
      %1896 = vrot.lane.b32.xlu0 %v1039, 8
      %v1897 = vpop.permute.xlu0 %1896
      %1898 = vrot.lane.b32.xlu0 %v1040, 8
      %v1899 = vpop.permute.xlu0 %1898
      %1900 = vrot.lane.b32.xlu0 %v1041, 8
      %v1901 = vpop.permute.xlu0 %1900
      %1922 = vrot.lane.b32.xlu0 %v1042, 12
      %v1923 = vpop.permute.xlu0 %1922
      %1924 = vrot.lane.b32.xlu0 %v1043, 12
      %v1925 = vpop.permute.xlu0 %1924
      %1926 = vrot.lane.b32.xlu0 %v1044, 12
      %v1927 = vpop.permute.xlu0 %1926
      %1928 = vrot.lane.b32.xlu0 %v1045, 12
      %v1929 = vpop.permute.xlu0 %1928
      %1930 = vrot.lane.b32.xlu0 %v1046, 12
      %v1931 = vpop.permute.xlu0 %1930
      %1932 = vrot.lane.b32.xlu0 %v1047, 12
      %v1933 = vpop.permute.xlu0 %1932
      %1934 = vrot.lane.b32.xlu0 %v1048, 12
      %v1935 = vpop.permute.xlu0 %1934
      %1936 = vrot.lane.b32.xlu0 %v1049, 12
      %v1937 = vpop.permute.xlu0 %1936
      %1938 = vrot.lane.b32.xlu0 %v1050, 12
      %v1939 = vpop.permute.xlu0 %1938
      %1940 = vrot.lane.b32.xlu0 %v1051, 12
      %v1941 = vpop.permute.xlu0 %1940
      %1962 = vrot.lane.b32.xlu0 %v1052, 16
      %v1963 = vpop.permute.xlu0 %1962
      %1964 = vrot.lane.b32.xlu0 %v1053, 16
      %v1965 = vpop.permute.xlu0 %1964
      %1966 = vrot.lane.b32.xlu0 %v1054, 16
      %v1967 = vpop.permute.xlu0 %1966
      %1968 = vrot.lane.b32.xlu0 %v1055, 16
      %v1969 = vpop.permute.xlu0 %1968
      %1970 = vrot.lane.b32.xlu0 %v1056, 16
      %v1971 = vpop.permute.xlu0 %1970
      %1972 = vrot.lane.b32.xlu0 %v1057, 16
      %v1973 = vpop.permute.xlu0 %1972
      %1974 = vrot.lane.b32.xlu0 %v1058, 16
      %v1975 = vpop.permute.xlu0 %1974
      %1976 = vrot.lane.b32.xlu0 %v1059, 16
      %v1977 = vpop.permute.xlu0 %1976
      %1978 = vrot.lane.b32.xlu0 %v1060, 16
      %v1979 = vpop.permute.xlu0 %1978
      %1980 = vrot.lane.b32.xlu0 %v1061, 16
      %v1981 = vpop.permute.xlu0 %1980
      %1993 = vrot.lane.b32.xlu0 %v1053, 20
      %v1994 = vpop.permute.xlu0 %1993
      %1995 = vrot.lane.b32.xlu0 %v1054, 20
      %v1996 = vpop.permute.xlu0 %1995
      %1997 = vrot.lane.b32.xlu0 %v1055, 20
      %v1998 = vpop.permute.xlu0 %1997
      %1999 = vrot.lane.b32.xlu0 %v1056, 20
      %v2000 = vpop.permute.xlu0 %1999
      %2001 = vrot.lane.b32.xlu0 %v1057, 20
      %v2002 = vpop.permute.xlu0 %2001
      %2003 = vrot.lane.b32.xlu0 %v1058, 20
      %v2004 = vpop.permute.xlu0 %2003
      %2005 = vrot.lane.b32.xlu0 %v1059, 20
      %v2006 = vpop.permute.xlu0 %2005
      %2007 = vrot.lane.b32.xlu0 %v1060, 20
      %v2008 = vpop.permute.xlu0 %2007
      %2009 = vrot.lane.b32.xlu0 %v1061, 20
      %v2010 = vpop.permute.xlu0 %2009
      %2011 = vrot.lane.b32.xlu0 %v1062, 20
      %v2012 = vpop.permute.xlu0 %2011
      %2033 = vrot.lane.b32.xlu0 %v1063, 24
      %v2034 = vpop.permute.xlu0 %2033
      %2035 = vrot.lane.b32.xlu0 %v1064, 24
      %v2036 = vpop.permute.xlu0 %2035
      %2037 = vrot.lane.b32.xlu0 %v1065, 24
      %v2038 = vpop.permute.xlu0 %2037
      %2039 = vrot.lane.b32.xlu0 %v1066, 24
      %v2040 = vpop.permute.xlu0 %2039
      %2041 = vrot.lane.b32.xlu0 %v1067, 24
      %v2042 = vpop.permute.xlu0 %2041
      %2043 = vrot.lane.b32.xlu0 %v1068, 24
      %v2044 = vpop.permute.xlu0 %2043
      %2045 = vrot.lane.b32.xlu0 %v1069, 24
      %v2046 = vpop.permute.xlu0 %2045
      %2047 = vrot.lane.b32.xlu0 %v1070, 24
      %v2048 = vpop.permute.xlu0 %2047
      %2049 = vrot.lane.b32.xlu0 %v1071, 24
      %v2050 = vpop.permute.xlu0 %2049
      %2051 = vrot.lane.b32.xlu0 %v1072, 24
      %v2052 = vpop.permute.xlu0 %2051
      %2073 = vrot.lane.b32.xlu0 %v1073, 28
      %v2074 = vpop.permute.xlu0 %2073
      %2075 = vrot.lane.b32.xlu0 %v1074, 28
      %v2076 = vpop.permute.xlu0 %2075
      %2077 = vrot.lane.b32.xlu0 %v1075, 28
      %v2078 = vpop.permute.xlu0 %2077
      %2079 = vrot.lane.b32.xlu0 %v1076, 28
      %v2080 = vpop.permute.xlu0 %2079
      %2081 = vrot.lane.b32.xlu0 %v1077, 28
      %v2082 = vpop.permute.xlu0 %2081
      %2083 = vrot.lane.b32.xlu0 %v1078, 28
      %v2084 = vpop.permute.xlu0 %2083
      %2085 = vrot.lane.b32.xlu0 %v1079, 28
      %v2086 = vpop.permute.xlu0 %2085
      %2087 = vrot.lane.b32.xlu0 %v1080, 28
      %v2088 = vpop.permute.xlu0 %2087
      %2089 = vrot.lane.b32.xlu0 %v1081, 28
      %v2090 = vpop.permute.xlu0 %2089
      %2091 = vrot.lane.b32.xlu0 %v1082, 28
      %v2092 = vpop.permute.xlu0 %2091
      %2104 = vrot.lane.b32.xlu0 %v1074, 32
      %v2105 = vpop.permute.xlu0 %2104
      %2106 = vrot.lane.b32.xlu0 %v1075, 32
      %v2107 = vpop.permute.xlu0 %2106
      %2108 = vrot.lane.b32.xlu0 %v1076, 32
      %v2109 = vpop.permute.xlu0 %2108
      %2110 = vrot.lane.b32.xlu0 %v1077, 32
      %v2111 = vpop.permute.xlu0 %2110
      %2112 = vrot.lane.b32.xlu0 %v1078, 32
      %v2113 = vpop.permute.xlu0 %2112
      %2114 = vrot.lane.b32.xlu0 %v1079, 32
      %v2115 = vpop.permute.xlu0 %2114
      %2116 = vrot.lane.b32.xlu0 %v1080, 32
      %v2117 = vpop.permute.xlu0 %2116
      %2118 = vrot.lane.b32.xlu0 %v1081, 32
      %v2119 = vpop.permute.xlu0 %2118
      %2120 = vrot.lane.b32.xlu0 %v1082, 32
      %v2121 = vpop.permute.xlu0 %2120
      %2122 = vrot.lane.b32.xlu0 %v1083, 32
      %v2123 = vpop.permute.xlu0 %2122
      %2144 = vrot.lane.b32.xlu0 %v1084, 36
      %v2145 = vpop.permute.xlu0 %2144
      %2146 = vrot.lane.b32.xlu0 %v1085, 36
      %v2147 = vpop.permute.xlu0 %2146
      %2148 = vrot.lane.b32.xlu0 %v1086, 36
      %v2149 = vpop.permute.xlu0 %2148
      %2150 = vrot.lane.b32.xlu0 %v1087, 36
      %v2151 = vpop.permute.xlu0 %2150
      %2152 = vrot.lane.b32.xlu0 %v1088, 36
      %v2153 = vpop.permute.xlu0 %2152
      %2154 = vrot.lane.b32.xlu0 %v1089, 36
      %v2155 = vpop.permute.xlu0 %2154
      %2156 = vrot.lane.b32.xlu0 %v1090, 36
      %v2157 = vpop.permute.xlu0 %2156
      %2158 = vrot.lane.b32.xlu0 %v1091, 36
      %v2159 = vpop.permute.xlu0 %2158
      %2160 = vrot.lane.b32.xlu0 %v1092, 36
      %v2161 = vpop.permute.xlu0 %2160
      %2162 = vrot.lane.b32.xlu0 %v1093, 36
      %v2163 = vpop.permute.xlu0 %2162
      %2184 = vrot.lane.b32.xlu0 %v1094, 40
      %v2185 = vpop.permute.xlu0 %2184
      %2186 = vrot.lane.b32.xlu0 %v1095, 40
      %v2187 = vpop.permute.xlu0 %2186
      %2188 = vrot.lane.b32.xlu0 %v1096, 40
      %v2189 = vpop.permute.xlu0 %2188
      %2190 = vrot.lane.b32.xlu0 %v1097, 40
      %v2191 = vpop.permute.xlu0 %2190
      %2192 = vrot.lane.b32.xlu0 %v1098, 40
      %v2193 = vpop.permute.xlu0 %2192
      %2194 = vrot.lane.b32.xlu0 %v1099, 40
      %v2195 = vpop.permute.xlu0 %2194
      %2196 = vrot.lane.b32.xlu0 %v1100, 40
      %v2197 = vpop.permute.xlu0 %2196
      %2198 = vrot.lane.b32.xlu0 %v1101, 40
      %v2199 = vpop.permute.xlu0 %2198
      %2200 = vrot.lane.b32.xlu0 %v1102, 40
      %v2201 = vpop.permute.xlu0 %2200
      %2202 = vrot.lane.b32.xlu0 %v1103, 40
      %v2203 = vpop.permute.xlu0 %2202
      %v2214 = vsel %vm572, %v1012, %v1843
      %v2215 = vsel %vm572, %v1013, %v1845
      %v2216 = vsel %vm572, %v1014, %v1847
      %v2217 = vsel %vm572, %v1015, %v1849
      %v2218 = vsel %vm572, %v1016, %v1851
      %v2219 = vsel %vm572, %v1017, %v1853
      %v2220 = vsel %vm572, %v1018, %v1855
      %v2221 = vsel %vm572, %v1019, %v1857
      %v2222 = vsel %vm572, %v1020, %v1859
      %v2223 = vsel %vm572, %v1021, %v1861
      %v2224 = vsel %vm1678, %v2214, %v1883
      %v2225 = vsel %vm1678, %v2215, %v1885
      %v2226 = vsel %vm1678, %v2216, %v1887
      %v2227 = vsel %vm1678, %v2217, %v1889
      %v2228 = vsel %vm1678, %v2218, %v1891
      %v2229 = vsel %vm1678, %v2219, %v1893
      %v2230 = vsel %vm1678, %v2220, %v1895
      %v2231 = vsel %vm1678, %v2221, %v1897
      %v2232 = vsel %vm1678, %v2222, %v1899
      %v2233 = vsel %vm1678, %v2223, %v1901
      %v2234 = vsel %vm1689, %v2224, %v1923
      %v2235 = vsel %vm1689, %v2225, %v1925
      %v2236 = vsel %vm1689, %v2226, %v1927
      %v2237 = vsel %vm1689, %v2227, %v1929
      %v2238 = vsel %vm1689, %v2228, %v1931
      %v2239 = vsel %vm1689, %v2229, %v1933
      %v2240 = vsel %vm1689, %v2230, %v1935
      %v2241 = vsel %vm1689, %v2231, %v1937
      %v2242 = vsel %vm1689, %v2232, %v1939
      %v2243 = vsel %vm1689, %v2233, %v1941
      %v2244 = vsel %vm1700, %v2234, %v1963
      %v2245 = vsel %vm1700, %v2235, %v1965
      %v2246 = vsel %vm1700, %v2236, %v1967
      %v2247 = vsel %vm1700, %v2237, %v1969
      %v2248 = vsel %vm1700, %v2238, %v1971
      %v2249 = vsel %vm1700, %v2239, %v1973
      %v2250 = vsel %vm1700, %v2240, %v1975
      %v2251 = vsel %vm1700, %v2241, %v1977
      %v2252 = vsel %vm1700, %v2242, %v1979
      %v2253 = vsel %vm1700, %v2243, %v1981
      %v2254 = vsel %vm1711, %v2244, %v1994
      %v2255 = vsel %vm1711, %v2245, %v1996
      %v2256 = vsel %vm1711, %v2246, %v1998
      %v2257 = vsel %vm1711, %v2247, %v2000
      %v2258 = vsel %vm1711, %v2248, %v2002
      %v2259 = vsel %vm1711, %v2249, %v2004
      %v2260 = vsel %vm1711, %v2250, %v2006
      %v2261 = vsel %vm1711, %v2251, %v2008
      %v2262 = vsel %vm1711, %v2252, %v2010
      %v2263 = vsel %vm1711, %v2253, %v2012
      %v2264 = vsel %vm1722, %v2254, %v2034
      %v2265 = vsel %vm1722, %v2255, %v2036
      %v2266 = vsel %vm1722, %v2256, %v2038
      %v2267 = vsel %vm1722, %v2257, %v2040
      %v2268 = vsel %vm1722, %v2258, %v2042
      %v2269 = vsel %vm1722, %v2259, %v2044
      %v2270 = vsel %vm1722, %v2260, %v2046
      %v2271 = vsel %vm1722, %v2261, %v2048
      %v2272 = vsel %vm1722, %v2262, %v2050
      %v2273 = vsel %vm1722, %v2263, %v2052
      %v2274 = vsel %vm1733, %v2264, %v2074
      %v2275 = vsel %vm1733, %v2265, %v2076
      %v2276 = vsel %vm1733, %v2266, %v2078
      %v2277 = vsel %vm1733, %v2267, %v2080
      %v2278 = vsel %vm1733, %v2268, %v2082
      %v2279 = vsel %vm1733, %v2269, %v2084
      %v2280 = vsel %vm1733, %v2270, %v2086
      %v2281 = vsel %vm1733, %v2271, %v2088
      %v2282 = vsel %vm1733, %v2272, %v2090
      %v2283 = vsel %vm1733, %v2273, %v2092
      %v2284 = vsel %vm1744, %v2274, %v2105
      %v2285 = vsel %vm1744, %v2275, %v2107
      %v2286 = vsel %vm1744, %v2276, %v2109
      %v2287 = vsel %vm1744, %v2277, %v2111
      %v2288 = vsel %vm1744, %v2278, %v2113
      %v2289 = vsel %vm1744, %v2279, %v2115
      %v2290 = vsel %vm1744, %v2280, %v2117
      %v2291 = vsel %vm1744, %v2281, %v2119
      %v2292 = vsel %vm1744, %v2282, %v2121
      %v2293 = vsel %vm1744, %v2283, %v2123
      %v2294 = vsel %vm1755, %v2284, %v2145
      %v2295 = vsel %vm1755, %v2285, %v2147
      %v2296 = vsel %vm1755, %v2286, %v2149
      %v2297 = vsel %vm1755, %v2287, %v2151
      %v2298 = vsel %vm1755, %v2288, %v2153
      %v2299 = vsel %vm1755, %v2289, %v2155
      %v2300 = vsel %vm1755, %v2290, %v2157
      %v2301 = vsel %vm1755, %v2291, %v2159
      %v2302 = vsel %vm1755, %v2292, %v2161
      %v2303 = vsel %vm1755, %v2293, %v2163
      %v2304 = vsel %vm1766, %v2294, %v2185
      %v2305 = vsel %vm1766, %v2295, %v2187
      %v2306 = vsel %vm1766, %v2296, %v2189
      %v2307 = vsel %vm1766, %v2297, %v2191
      %v2308 = vsel %vm1766, %v2298, %v2193
      %v2309 = vsel %vm1766, %v2299, %v2195
      %v2310 = vsel %vm1766, %v2300, %v2197
      %v2311 = vsel %vm1766, %v2301, %v2199
      %v2312 = vsel %vm1766, %v2302, %v2201
      %v2313 = vsel %vm1766, %v2303, %v2203
      %2324 = vrot.lane.b32.xlu0 %v2304, 64
      %v2325 = vpop.permute.xlu0 %2324
      %2326 = vrot.lane.b32.xlu0 %v2305, 64
      %v2327 = vpop.permute.xlu0 %2326
      %2328 = vrot.lane.b32.xlu0 %v2306, 64
      %v2329 = vpop.permute.xlu0 %2328
      %2330 = vrot.lane.b32.xlu0 %v2307, 64
      %v2331 = vpop.permute.xlu0 %2330
      %2332 = vrot.lane.b32.xlu0 %v2308, 64
      %v2333 = vpop.permute.xlu0 %2332
      %2334 = vrot.lane.b32.xlu0 %v2309, 64
      %v2335 = vpop.permute.xlu0 %2334
      %2336 = vrot.lane.b32.xlu0 %v2310, 64
      %v2337 = vpop.permute.xlu0 %2336
      %2338 = vrot.lane.b32.xlu0 %v2311, 64
      %v2339 = vpop.permute.xlu0 %2338
      %2340 = vrot.lane.b32.xlu0 %v2312, 64
      %v2341 = vpop.permute.xlu0 %2340
      %2342 = vrot.lane.b32.xlu0 %v2313, 64
      %v2343 = vpop.permute.xlu0 %2342
      %vm2354 = vcmask 523264
      %v2355 = vsel %vm2354, %v1822, %v2325
      %v2356 = vsel %vm2354, %v1823, %v2327
      %v2357 = vsel %vm2354, %v1824, %v2329
      %v2358 = vsel %vm2354, %v1825, %v2331
      %v2359 = vsel %vm2354, %v1826, %v2333
      %v2360 = vsel %vm2354, %v1827, %v2335
      %v2361 = vsel %vm2354, %v1828, %v2337
      %v2362 = vsel %vm2354, %v1829, %v2339
      %v2363 = vsel %vm2354, %v1830, %v2341
      %v2364 = vsel %vm2354, %v1831, %v2343
      %v2365 = vld [vmem:[%s6] sm:$0xff]
      %v2366 = vld [vmem:[%s6 + $0x8] sm:$0xff]
      %v2367 = vld [vmem:[%s6 + $0x10] sm:$0xff]
      %v2368 = vld [vmem:[%s6 + $0x18] sm:$0xff]
      %v2369 = vld [vmem:[%s6 + $0x20] sm:$0xff]
      %v2370 = vld [vmem:[%s6 + $0x28] sm:$0xff]
      %v2371 = vld [vmem:[%s6 + $0x30] sm:$0xff]
      %v2372 = vld [vmem:[%s6 + $0x38] sm:$0xff]
      %v2373 = vld [vmem:[%s6 + $0x40] sm:$0xff]
      %v2374 = vld [vmem:[%s6 + $0x48] sm:$0xff]
      %v2375 = vld [vmem:[%s6 + $0x50] sm:$0xff]
      %v2376 = vld [vmem:[%s6 + $0x58] sm:$0xff]
      %v2377 = vld [vmem:[%s6 + $0x60] sm:$0xff]
      %v2378 = vld [vmem:[%s6 + $0x68] sm:$0xf]
      %vm2379 = vcmask 883712
      %v2381 = vsel %vm2379, %v2355, 0
      %v2384 = vsel %vm2379, %v2356, 0
      %v2387 = vsel %vm2379, %v2357, 0
      %v2390 = vsel %vm2379, %v2358, 0
      %v2393 = vsel %vm2379, %v2359, 0
      %v2396 = vsel %vm2379, %v2360, 0
      %v2399 = vsel %vm2379, %v2361, 0
      %v2402 = vsel %vm2379, %v2362, 0
      %v2405 = vsel %vm2379, %v2363, 0
      %v2408 = vsel %vm2379, %v2364, 0
      %vm2410 = vcmask 1043456
      %v2412 = vsel %vm2410, %v2378, 0
      %2414 = vmatprep.subr.mxu0 0.0
      %2415 = vmatpush1.msra.mxu0 %v2365
      %2416 = vmatprep.subr.mxu0 0.0
      %2417 = vmatpush1.msra.mxu0 %v2366
      %2418 = vmatprep.subr.mxu0 0.0
      %2419 = vmatpush1.msra.mxu0 %v2367
      %2420 = vmatprep.subr.mxu0 0.0
      %2421 = vmatpush1.msra.mxu0 %v2368
      %2422 = vmatprep.subr.mxu0 0.0
      %2423 = vmatpush1.msra.mxu0 %v2369
      %2424 = vmatprep.subr.mxu0 0.0
      %2425 = vmatpush1.msra.mxu0 %v2370
      %2426 = vmatprep.subr.mxu0 0.0
      %2427 = vmatpush1.msra.mxu0 %v2371
      %2428 = vmatprep.subr.mxu0 0.0
      %2429 = vmatpush1.msra.mxu0 %v2372
      %2430 = vmatprep.subr.mxu0 0.0
      %2431 = vmatpush1.msra.mxu0 %v2373
      %2432 = vmatprep.subr.mxu0 0.0
      %2433 = vmatpush1.msra.mxu0 %v2374
      %2434 = vmatprep.subr.mxu0 0.0
      %2435 = vmatpush1.msra.mxu0 %v2375
      %2436 = vmatprep.subr.mxu0 0.0
      %2437 = vmatpush1.msra.mxu0 %v2376
      %2438 = vmatprep.subr.mxu0 0.0
      %2439 = vmatpush1.msra.mxu0 %v2377
      %2440 = vmatprep.subr.mxu0 0.0
      %2441 = vmatpush1.msra.mxu0 %v2412
      %2442 = vmatprep.subr.mxu0 0.0
      %2443 = vmatpush1.msra.mxu0 0.0
      %2444 = vmatprep.subr.mxu0 0.0
      %2445 = vmatpush1.msra.mxu0 0.0
      %2446 = vmatprep.subr.mxu0 0.0
      %2447 = vmatpush1.msra.mxu0 0.0
      %2448 = vmatprep.subr.mxu0 0.0
      %2449 = vmatpush1.msra.mxu0 0.0
      %2450 = vmatprep.subr.mxu0 0.0
      %2451 = vmatpush1.msra.mxu0 0.0
      %2452 = vmatprep.subr.mxu0 0.0
      %2453 = vmatpush1.msra.mxu0 0.0
      %2454 = vmatprep.subr.mxu0 0.0
      %2455 = vmatpush1.msra.mxu0 0.0
      %2456 = vmatprep.subr.mxu0 0.0
      %2457 = vmatpush1.msra.mxu0 0.0
      %2458 = vmatprep.subr.mxu0 0.0
      %2459 = vmatpush1.msra.mxu0 0.0
      %2460 = vmatprep.subr.mxu0 0.0
      %2461 = vmatpush1.msra.mxu0 0.0
      %2462 = vmatprep.subr.mxu0 0.0
      %2463 = vmatpush1.msra.mxu0 0.0
      %2464 = vmatprep.subr.mxu0 0.0
      %2465 = vmatpush1.msra.mxu0 0.0
      %2466 = vmatprep.subr.mxu0 0.0
      %2467 = vmatpush1.msra.mxu0 0.0
      %2468 = vmatprep.subr.mxu0 0.0
      %2469 = vmatpush1.msra.mxu0 0.0
      %2470 = vmatprep.subr.mxu0 0.0
      %2471 = vmatpush1.msra.mxu0 0.0
      %2472 = vmatprep.subr.mxu0 0.0
      %2473 = vmatpush1.msra.mxu0 0.0
      %2474 = vmatprep.subr.mxu0 0.0
      %2475 = vmatpush1.msra.mxu0 0.0
      %2476 = vmatprep.subr.mxu0 0.0
      %2477 = vmatpush1.msra.mxu0 0.0
      %2478 = vmatprep.mubr.f32.mxu0 0.0
      %2479 = vmatmul.mubr.f32.gmra.mrb[0].mxu0 %v2381
      %v2480 = vpop.f32.mrb[0].mxu0
      %v2481 = vadd.f32 0.0, %v2480
      %v2482 = vpop.f32.mrb[0].mxu0
      %2483 = vmatprep.mubr.f32.mxu0 0.0
      %2484 = vmatmul.mubr.f32.gmra.mrb[0].mxu0 %v2384
      %v2485 = vpop.f32.mrb[0].mxu0
      %v2486 = vadd.f32 0.0, %v2485
      %v2487 = vpop.f32.mrb[0].mxu0
      %2488 = vmatprep.mubr.f32.mxu0 0.0
      %2489 = vmatmul.mubr.f32.gmra.mrb[0].mxu0 %v2387
      %v2490 = vpop.f32.mrb[0].mxu0
      %v2491 = vadd.f32 0.0, %v2490
      %v2492 = vpop.f32.mrb[0].mxu0
      %2493 = vmatprep.mubr.f32.mxu0 0.0
      %2494 = vmatmul.mubr.f32.gmra.mrb[0].mxu0 %v2390
      %v2495 = vpop.f32.mrb[0].mxu0
      %v2496 = vadd.f32 0.0, %v2495
      %v2497 = vpop.f32.mrb[0].mxu0
      %2498 = vmatprep.mubr.f32.mxu0 0.0
      %2499 = vmatmul.mubr.f32.gmra.mrb[0].mxu0 %v2393
      %v2500 = vpop.f32.mrb[0].mxu0
      %v2501 = vadd.f32 0.0, %v2500
      %v2502 = vpop.f32.mrb[0].mxu0
      %2503 = vmatprep.mubr.f32.mxu0 0.0
      %2504 = vmatmul.mubr.f32.gmra.mrb[0].mxu0 %v2396
      %v2505 = vpop.f32.mrb[0].mxu0
      %v2506 = vadd.f32 0.0, %v2505
      %v2507 = vpop.f32.mrb[0].mxu0
      %2508 = vmatprep.mubr.f32.mxu0 0.0
      %2509 = vmatmul.mubr.f32.gmra.mrb[0].mxu0 %v2399
      %v2510 = vpop.f32.mrb[0].mxu0
      %v2511 = vadd.f32 0.0, %v2510
      %v2512 = vpop.f32.mrb[0].mxu0
      %2513 = vmatprep.mubr.f32.mxu0 0.0
      %2514 = vmatmul.mubr.f32.gmra.mrb[0].mxu0 %v2402
      %v2515 = vpop.f32.mrb[0].mxu0
      %v2516 = vadd.f32 0.0, %v2515
      %v2517 = vpop.f32.mrb[0].mxu0
      %2518 = vmatprep.mubr.f32.mxu0 0.0
      %2519 = vmatmul.mubr.f32.gmra.mrb[0].mxu0 %v2405
      %v2520 = vpop.f32.mrb[0].mxu0
      %v2521 = vadd.f32 0.0, %v2520
      %v2522 = vpop.f32.mrb[0].mxu0
      %2523 = vmatprep.mubr.f32.mxu0 0.0
      %2524 = vmatmul.mubr.f32.gmra.mrb[0].mxu0 %v2408
      %v2525 = vpop.f32.mrb[0].mxu0
      %v2526 = vadd.f32 0.0, %v2525
      %v2527 = vpop.f32.mrb[0].mxu0
      %2528 = vdwg.mxu0
      %vm2529 = vcmask 15360
      %v2530 = vsel %vm2529, %v2481, -inf
      %2531 = vmax.xlane.f32.xlu0 %v2530
      %v2532 = vpop.xlane.xlu0 %2531
      %v2533 = vsel %vm2529, %v2486, -inf
      %2534 = vmax.xlane.f32.xlu0 %v2533
      %v2535 = vpop.xlane.xlu0 %2534
      %v2536 = vsel %vm2529, %v2491, -inf
      %2537 = vmax.xlane.f32.xlu0 %v2536
      %v2538 = vpop.xlane.xlu0 %2537
      %v2539 = vsel %vm2529, %v2496, -inf
      %2540 = vmax.xlane.f32.xlu0 %v2539
      %v2541 = vpop.xlane.xlu0 %2540
      %v2542 = vsel %vm2529, %v2501, -inf
      %2543 = vmax.xlane.f32.xlu0 %v2542
      %v2544 = vpop.xlane.xlu0 %2543
      %v2545 = vsel %vm2529, %v2506, -inf
      %2546 = vmax.xlane.f32.xlu0 %v2545
      %v2547 = vpop.xlane.xlu0 %2546
      %v2548 = vsel %vm2529, %v2511, -inf
      %2549 = vmax.xlane.f32.xlu0 %v2548
      %v2550 = vpop.xlane.xlu0 %2549
      %v2551 = vsel %vm2529, %v2516, -inf
      %2552 = vmax.xlane.f32.xlu0 %v2551
      %v2553 = vpop.xlane.xlu0 %2552
      %v2554 = vsel %vm2529, %v2521, -inf
      %2555 = vmax.xlane.f32.xlu0 %v2554
      %v2556 = vpop.xlane.xlu0 %2555
      %v2557 = vsel %vm2529, %v2526, -inf
      %2558 = vmax.xlane.f32.xlu0 %v2557
      %v2559 = vpop.xlane.xlu0 %2558
      %v2560 = vsub.f32 %v2481, %v2532
      %v2561 = vsub.f32 %v2486, %v2535
      %v2562 = vsub.f32 %v2491, %v2538
      %v2563 = vsub.f32 %v2496, %v2541
      %v2564 = vsub.f32 %v2501, %v2544
      %v2565 = vsub.f32 %v2506, %v2547
      %v2566 = vsub.f32 %v2511, %v2550
      %v2567 = vsub.f32 %v2516, %v2553
      %v2568 = vsub.f32 %v2521, %v2556
      %v2569 = vsub.f32 %v2526, %v2559
      %v2570 = vmul.f32 %v2560, 1.442695
      %v2571 = vpow.pop %v2570
      %v2572 = vmul.f32 %v2561, 1.442695
      %v2573 = vpow.pop %v2572
      %v2574 = vmul.f32 %v2562, 1.442695
      %v2575 = vpow.pop %v2574
      %v2576 = vmul.f32 %v2563, 1.442695
      %v2577 = vpow.pop %v2576
      %v2578 = vmul.f32 %v2564, 1.442695
      %v2579 = vpow.pop %v2578
      %v2580 = vmul.f32 %v2565, 1.442695
      %v2581 = vpow.pop %v2580
      %v2582 = vmul.f32 %v2566, 1.442695
      %v2583 = vpow.pop %v2582
      %v2584 = vmul.f32 %v2567, 1.442695
      %v2585 = vpow.pop %v2584
      %v2586 = vmul.f32 %v2568, 1.442695
      %v2587 = vpow.pop %v2586
      %v2588 = vmul.f32 %v2569, 1.442695
      %v2589 = vpow.pop %v2588
      %v2590 = vsel %vm2529, %v2571, 0.0
      %2591 = vadd.xlane.f32.xlu0 %v2590
      %v2592 = vpop.xlane.xlu0 %2591
      %v2593 = vsel %vm2529, %v2573, 0.0
      %2594 = vadd.xlane.f32.xlu0 %v2593
      %v2595 = vpop.xlane.xlu0 %2594
      %v2596 = vsel %vm2529, %v2575, 0.0
      %2597 = vadd.xlane.f32.xlu0 %v2596
      %v2598 = vpop.xlane.xlu0 %2597
      %v2599 = vsel %vm2529, %v2577, 0.0
      %2600 = vadd.xlane.f32.xlu0 %v2599
      %v2601 = vpop.xlane.xlu0 %2600
      %v2602 = vsel %vm2529, %v2579, 0.0
      %2603 = vadd.xlane.f32.xlu0 %v2602
      %v2604 = vpop.xlane.xlu0 %2603
      %v2605 = vsel %vm2529, %v2581, 0.0
      %2606 = vadd.xlane.f32.xlu0 %v2605
      %v2607 = vpop.xlane.xlu0 %2606
      %v2608 = vsel %vm2529, %v2583, 0.0
      %2609 = vadd.xlane.f32.xlu0 %v2608
      %v2610 = vpop.xlane.xlu0 %2609
      %v2611 = vsel %vm2529, %v2585, 0.0
      %2612 = vadd.xlane.f32.xlu0 %v2611
      %v2613 = vpop.xlane.xlu0 %2612
      %v2614 = vsel %vm2529, %v2587, 0.0
      %2615 = vadd.xlane.f32.xlu0 %v2614
      %v2616 = vpop.xlane.xlu0 %2615
      %v2617 = vsel %vm2529, %v2589, 0.0
      %2618 = vadd.xlane.f32.xlu0 %v2617
      %v2619 = vpop.xlane.xlu0 %2618
      %v2620 = vrcp.pop %v2592
      %v2621 = vmul.f32 %v2571, %v2620
      %v2622 = vrcp.pop %v2595
      %v2623 = vmul.f32 %v2573, %v2622
      %v2624 = vrcp.pop %v2598
      %v2625 = vmul.f32 %v2575, %v2624
      %v2626 = vrcp.pop %v2601
      %v2627 = vmul.f32 %v2577, %v2626
      %v2628 = vrcp.pop %v2604
      %v2629 = vmul.f32 %v2579, %v2628
      %v2630 = vrcp.pop %v2607
      %v2631 = vmul.f32 %v2581, %v2630
      %v2632 = vrcp.pop %v2610
      %v2633 = vmul.f32 %v2583, %v2632
      %v2634 = vrcp.pop %v2613
      %v2635 = vmul.f32 %v2585, %v2634
      %v2636 = vrcp.pop %v2616
      %v2637 = vmul.f32 %v2587, %v2636
      %v2638 = vrcp.pop %v2619
      %v2639 = vmul.f32 %v2589, %v2638
      %2640 = vst.msk [vmem:[%s396] sm:$0xff] %vm2529, %v2621
      %2641 = vst.msk [vmem:[%s396 + $0x8] sm:$0xff] %vm2529, %v2623
      %2642 = vst.msk [vmem:[%s396 + $0x10] sm:$0xff] %vm2529, %v2625
      %2643 = vst.msk [vmem:[%s396 + $0x18] sm:$0xff] %vm2529, %v2627
      %2644 = vst.msk [vmem:[%s396 + $0x20] sm:$0xff] %vm2529, %v2629
      %2645 = vst.msk [vmem:[%s396 + $0x28] sm:$0xff] %vm2529, %v2631
      %2646 = vst.msk [vmem:[%s396 + $0x30] sm:$0xff] %vm2529, %v2633
      %2647 = vst.msk [vmem:[%s396 + $0x38] sm:$0xff] %vm2529, %v2635
      %2648 = vst.msk [vmem:[%s396 + $0x40] sm:$0xff] %vm2529, %v2637
      %2649 = vst.msk [vmem:[%s396 + $0x48] sm:$0xff] %vm2529, %v2639
      %p2650 = scmp.lt.s32.totalorder %s22, 1
      %s2651 = scalar_select %p2650, %s22, 1
      %p2652 = scmp.lt.s32.totalorder %s23, 7
      %s2653 = scalar_select %p2652, %s23, 7
      %s2654 = smul.addr %s2653, 10
      %s2655 = smul.addr %s2651, 80
      %s2656 = sadd.s32 %s2654, %s2655
      %s2657 = smul.addr %s2656, 8
      %s2658 = scalar_lea.vmem %s7, %s2657
      // Predicated region
      $region49: #{output_pallas.3} parent=47 // pred_check
        %p2659 = pneg %p222
      $region50: #{output_pallas.3} parent=47 // pred_check_branch
        %2661 = sbr.rel (%p2659) target = $region52
      $region51: #{output_pallas.3} parent=47 // pred_region
        _
      $region52: #{output_pallas.3} parent=47 // pred_fallthru
        _
    $region48: #{output_pallas.3} parent=5 // pred_fallthru
      _
    %p2662 = scmp.le.s32.totalorder 2, %s13
    // Predicated region
    $region53: #{output_pallas.3} parent=5 // pred_check
      %p2663 = pneg %p2662
    $region54: #{output_pallas.3} parent=5 // pred_check_branch
      %2665 = sbr.rel (%p2663) target = $region56
    $region55: #{output_pallas.3} parent=5 // pred_region
      %s2666 = ssub.s32 %s13, 2
      // Predicated region
      $region57: #{output_pallas.3} parent=55 // pred_check
        %p2667 = pneg %p228
      $region58: #{output_pallas.3} parent=55 // pred_check_branch
        %2669 = sbr.rel (%p2667) target = $region60
      $region59: #{output_pallas.3} parent=55 // pred_region
        %p2670 = scmp.lt.s32.totalorder %s24, 1
        %s2671 = scalar_select %p2670, %s24, 1
        %p2672 = scmp.lt.s32.totalorder %s25, 7
        %s2673 = scalar_select %p2672, %s25, 7
        %s2674 = smul.addr %s2673, 10
        %s2675 = smul.addr %s2671, 80
        %s2676 = sadd.s32 %s2674, %s2675
        %s2677 = smul.addr %s2676, 8
        %s2678 = scalar_lea.vmem %s7, %s2677
      $region60: #{output_pallas.3} parent=55 // pred_fallthru
        _
    $region56: #{output_pallas.3} parent=5 // pred_fallthru
      _
  $region6: #{output_pallas.3} parent=0 // loop_footer
    %s17 = sadd.s32 1, %s13
  $region7: #{output_pallas.3} parent=0 // loop_footer_branch
    %12 = sbr.rel target = $region3
  $region8: #{output_pallas.3} parent=0 // loop_exit
    _

</llo_original>
